<compile_context>
chip_gen: v7x
topology: tpu7x:2x2x1
jax: 0.10.0
libtpu: 0.0.40
codegen_flags: <defaults>
</compile_context>

<pallas_src>
import functools

import jax
import jax.numpy as jnp
from jax.experimental import pallas as pl
from jax.experimental.pallas import tpu as pltpu


def _dot_t(a, b):
    """a^T @ b on the MXU without materializing a transpose: (N,P),(N,Q)->(P,Q)."""
    return jax.lax.dot_general(
        a, b, dimension_numbers=(((0,), (0,)), ((), ())),
        preferred_element_type=jnp.float32)


def class_stats_kernel(x_ref, labels_ref, means_ref, regcov_ref):
    """Fused class statistics.

    x_ref      : (N, D) f32   context features
    labels_ref : (N, 1) i32   context labels in [0, C)
    means_ref  : (C, D) f32   per-class means (mean_pooling)
    regcov_ref : (C, D, D) f32  lam_c*cov_c + (1-lam_c)*task_cov + I
    """
    N, D = x_ref.shape
    C = means_ref.shape[0]

    x = x_ref[...]
    labels = labels_ref[...]                                           # (N, 1)

    # One-hot class membership built in-kernel (VPU compare; no gather).
    onehot = (jax.lax.broadcasted_iota(jnp.int32, (N, C), 1)
              == labels).astype(jnp.float32)                           # (N, C)

    ones = jnp.ones((N, 1), jnp.float32)
    counts = _dot_t(onehot, ones)                                      # (C, 1)
    class_sums = _dot_t(onehot, x)                                     # (C, D)
    means = class_sums / counts                                        # (C, D)
    means_ref[...] = means

    # Task-level covariance (unbiased, over all N context rows).
    task_mean = jnp.mean(x, axis=0, keepdims=True)                     # (1, D)
    xc = x - task_mean
    task_cov = _dot_t(xc, xc) * (1.0 / (N - 1))                        # (D, D)

    eye = jnp.eye(D, dtype=jnp.float32)

    # Per-class covariance via mask weighting: rows outside the class contribute
    # exact zeros to the matmul, so it matches index_select + center + matmul.
    for c in range(C):                                                 # static, small C
        mask_c = onehot[:, c:c + 1]                                    # (N, 1)
        n_c = counts[c:c + 1, :]                                       # (1, 1)
        xcc = (x - means[c:c + 1, :]) * mask_c                         # (N, D)
        cov_c = _dot_t(xcc, xcc) / (n_c - 1.0)                         # (D, D)
        lam = n_c / (n_c + 1.0)                                        # (1, 1)
        regcov_ref[c, :, :] = lam * cov_c + (1.0 - lam) * task_cov + eye


def maha_logits_kernel(means_ref, prec_ref, tgt_ref, logits_ref):
    """logits[m, c] = -(mu_c - t_m)^T P_c (mu_c - t_m)   -> (M, C)."""
    C, D = means_ref.shape
    tgt = tgt_ref[...]                                                 # (M, D)
    for c in range(C):                                                 # static, small C
        diff_c = means_ref[c:c + 1, :] - tgt                           # (M, D)
        fh_c = jnp.dot(diff_c, prec_ref[c],
                       preferred_element_type=jnp.float32)             # (M, D)
        logits_ref[:, c:c + 1] = -jnp.sum(fh_c * diff_c, axis=1, keepdims=True)


@functools.partial(jax.jit, static_argnames=("num_classes",))
def maha_classifier_forward(context_features, context_labels, target_features, *,
                            num_classes):
    C = num_classes
    N, D = context_features.shape
    M = target_features.shape[0]

    x = context_features.astype(jnp.float32)
    t = target_features.astype(jnp.float32)
    labels_2d = context_labels.astype(jnp.int32).reshape(N, 1)

    stats_cost = pl.CostEstimate(
        flops=int(2 * N * C * D + 2 * N * D * D * (1 + C) + 4 * C * D * D),
        transcendentals=0,
        bytes_accessed=int(4 * (N * D + N + C * D + C * D * D)),
    )
    class_means, reg_cov = pl.pallas_call(
        class_stats_kernel,
        out_shape=(jax.ShapeDtypeStruct((C, D), jnp.float32),
                   jax.ShapeDtypeStruct((C, D, D), jnp.float32)),
        grid=(1,),
        in_specs=[pl.BlockSpec((N, D), lambda i: (0, 0)),
                  pl.BlockSpec((N, 1), lambda i: (0, 0))],
        out_specs=(pl.BlockSpec((C, D), lambda i: (0, 0)),
                   pl.BlockSpec((C, D, D), lambda i: (0, 0, 0))),
        compiler_params=pltpu.CompilerParams(dimension_semantics=("arbitrary",)),
        cost_estimate=stats_cost,
    )(x, labels_2d)

    # TODO(synk): dense SPD matrix inversion (torch.inverse) has no clean Pallas
    # TPU primitive; it runs as a batched jnp.linalg.inv between the two kernels.
    precisions = jnp.linalg.inv(reg_cov)

    logits_cost = pl.CostEstimate(
        flops=int(2 * C * M * D * D + 3 * C * M * D),
        transcendentals=0,
        bytes_accessed=int(4 * (C * D + C * D * D + M * D + M * C)),
    )
    sample_logits = pl.pallas_call(
        maha_logits_kernel,
        out_shape=jax.ShapeDtypeStruct((M, C), jnp.float32),
        grid=(1,),
        in_specs=[pl.BlockSpec((C, D), lambda i: (0, 0)),
                  pl.BlockSpec((C, D, D), lambda i: (0, 0, 0)),
                  pl.BlockSpec((M, D), lambda i: (0, 0))],
        out_specs=pl.BlockSpec((M, C), lambda i: (0, 0)),
        compiler_params=pltpu.CompilerParams(dimension_semantics=("arbitrary",)),
        cost_estimate=logits_cost,
    )(class_means, precisions, t)

    return sample_logits, class_means


def reference_forward(ctx, labels, tgt, num_classes):
    """Pure-JAX mirror of the PyTorch forward, used only as a sanity check."""
    def cov(e):
        n = e.shape[0]
        ec = e - jnp.mean(e, axis=0, keepdims=True)
        return ec.T @ ec / (n - 1)

    D = ctx.shape[1]
    task_cov = cov(ctx)
    eye = jnp.eye(D, dtype=jnp.float32)
    means, precs = [], []
    for c in range(num_classes):
        cls = ctx[labels == c]
        n_c = cls.shape[0]
        means.append(jnp.mean(cls, axis=0))
        lam = n_c / (n_c + 1.0)
        precs.append(jnp.linalg.inv(lam * cov(cls) + (1.0 - lam) * task_cov + eye))
    means = jnp.stack(means)                                   # (C, D)
    precs = jnp.stack(precs)                                   # (C, D, D)
    diff = means[:, None, :] - tgt[None, :, :]                 # (C, M, D)
    fh = jnp.einsum('cmd,cde->cme', diff, precs)
    logits = -jnp.sum(fh * diff, axis=2).T                     # (M, C)
    return logits, means


if __name__ == "__main__":
    key = jax.random.PRNGKey(0)
    k_ctx, k_tgt, k_perm = jax.random.split(key, 3)

    C, K, D, M = 4, 4, 32, 8          # 4-way, 4-shot, 32-d features, 8 query points
    N = C * K
    context_features = jax.random.normal(k_ctx, (N, D), jnp.float32)
    context_labels = jax.random.permutation(
        k_perm, jnp.repeat(jnp.arange(C, dtype=jnp.int32), K))
    target_features = jax.random.normal(k_tgt, (M, D), jnp.float32)

    logits, class_means = maha_classifier_forward(
        context_features, context_labels, target_features, num_classes=C)
    jax.block_until_ready((logits, class_means))

    assert logits.shape == (M, C) and class_means.shape == (C, D)
    assert bool(jnp.all(jnp.isfinite(logits))) and bool(jnp.all(jnp.isfinite(class_means)))

    ref_logits, ref_means = reference_forward(
        context_features, context_labels, target_features, C)
    assert bool(jnp.allclose(class_means, ref_means, rtol=2e-2, atol=2e-2))
    assert bool(jnp.allclose(logits, ref_logits, rtol=2e-2, atol=2e-2))

    print("KERNEL_OK")
</pallas_src>

<mosaic_0001>
module attributes {stable_mosaic.version = 11 : i64} {
  func.func @class_stats_kernel(%arg0: i32, %arg1: memref<16x32xf32, #tpu.memory_space<vmem>>, %arg2: memref<16x1xi32, #tpu.memory_space<vmem>>, %arg3: memref<4x32xf32, #tpu.memory_space<vmem>>, %arg4: memref<4x32x32xf32, #tpu.memory_space<vmem>>) attributes {dimension_semantics = [#tpu.dimension_semantics<arbitrary>], iteration_bounds = array<i64: 1>, scalar_prefetch = 0 : i64, scratch_operands = 0 : i64, tpu.core_type = #tpu.core_type<tc>, window_params = [{pipeline_mode = #tpu.pipeline_mode<synchronous>, transform_indices = @transform_0, window_bounds = array<i64: 16, 32>}, {pipeline_mode = #tpu.pipeline_mode<synchronous>, transform_indices = @transform_1, window_bounds = array<i64: 16, 1>}, {pipeline_mode = #tpu.pipeline_mode<synchronous>, transform_indices = @transform_2, window_bounds = array<i64: 4, 32>}, {pipeline_mode = #tpu.pipeline_mode<synchronous>, transform_indices = @transform_3, window_bounds = array<i64: 4, 32, 32>}]} {
    %c0 = arith.constant 0 : index
    %c0_0 = arith.constant 0 : index
    %0 = vector.load %arg1[%c0, %c0_0] : memref<16x32xf32, #tpu.memory_space<vmem>>, vector<16x32xf32>
    %c0_1 = arith.constant 0 : index
    %c0_2 = arith.constant 0 : index
    %1 = vector.load %arg2[%c0_1, %c0_2] : memref<16x1xi32, #tpu.memory_space<vmem>>, vector<16x1xi32>
    %2 = tpu.iota {dimensions = array<i32: 1>} : vector<16x4xi32>
    %3 = vector.broadcast %1 : vector<16x1xi32> to vector<16x4xi32>
    %4 = arith.cmpi eq, %2, %3 : vector<16x4xi32>
    %5 = arith.extui %4 : vector<16x4xi1> to vector<16x4xi32>
    %6 = arith.sitofp %5 : vector<16x4xi32> to vector<16x4xf32>
    %cst = arith.constant 1.000000e+00 : f32
    %7 = vector.broadcast %cst : f32 to vector<16x1xf32>
    %cst_3 = arith.constant dense<0.000000e+00> : vector<4x1xf32>
    %8 = tpu.matmul %6, %7, %cst_3 {dimension_numbers = #tpu.dot_dimension_numbers<[0], [0], [1], [1], [0, 1, 1, 1], [], []>} : vector<16x4xf32>, vector<16x1xf32>, vector<4x1xf32> -> vector<4x1xf32>
    %cst_4 = arith.constant dense<0.000000e+00> : vector<4x32xf32>
    %9 = tpu.matmul %6, %0, %cst_4 {dimension_numbers = #tpu.dot_dimension_numbers<[0], [0], [1], [1], [0, 1, 1, 1], [], []>} : vector<16x4xf32>, vector<16x32xf32>, vector<4x32xf32> -> vector<4x32xf32>
    %10 = vector.broadcast %8 : vector<4x1xf32> to vector<4x32xf32>
    %11 = arith.divf %9, %10 : vector<4x32xf32>
    %c0_5 = arith.constant 0 : index
    %c0_6 = arith.constant 0 : index
    %12 = vector.load %arg3[%c0_5, %c0_6] : memref<4x32xf32, #tpu.memory_space<vmem>>, vector<4x32xf32>
    tpu.vector_store %arg3[%c0_5, %c0_6], %11 {strides = array<i32>} : memref<4x32xf32, #tpu.memory_space<vmem>>, vector<4x32xf32>,
    %cst_7 = arith.constant dense<0.000000e+00> : vector<32xf32>
    %13 = vector.multi_reduction <add>, %0, %cst_7 [0] : vector<16x32xf32> to vector<32xf32>
    %14 = vector.shape_cast %13 : vector<32xf32> to vector<1x32xf32>
    %cst_8 = arith.constant 1.600000e+01 : f32
    %15 = vector.broadcast %cst_8 : f32 to vector<1x32xf32>
    %16 = arith.divf %14, %15 : vector<1x32xf32>
    %17 = vector.broadcast %16 : vector<1x32xf32> to vector<16x32xf32>
    %18 = arith.subf %0, %17 : vector<16x32xf32>
    %cst_9 = arith.constant dense<0.000000e+00> : vector<32x32xf32>
    %19 = tpu.matmul %18, %18, %cst_9 {dimension_numbers = #tpu.dot_dimension_numbers<[0], [0], [1], [1], [0, 1, 1, 1], [], []>} : vector<16x32xf32>, vector<16x32xf32>, vector<32x32xf32> -> vector<32x32xf32>
    %cst_10 = arith.constant 0.0666666701 : f32
    %20 = vector.broadcast %cst_10 : f32 to vector<32x32xf32>
    %21 = arith.mulf %19, %20 : vector<32x32xf32>
    %22 = tpu.iota {dimensions = array<i32: 0>} : vector<32x32xi32>
    %23 = tpu.iota {dimensions = array<i32: 1>} : vector<32x32xi32>
    %c0_i32 = arith.constant 0 : i32
    %24 = vector.broadcast %c0_i32 : i32 to vector<32x32xi32>
    %25 = arith.addi %22, %24 : vector<32x32xi32>
    %26 = arith.cmpi eq, %25, %23 : vector<32x32xi32>
    %27 = arith.extui %26 : vector<32x32xi1> to vector<32x32xi32>
    %28 = arith.sitofp %27 : vector<32x32xi32> to vector<32x32xf32>
    %29 = vector.extract_strided_slice %6 {offsets = [0, 0], sizes = [16, 1], strides = [1, 1]} : vector<16x4xf32> to vector<16x1xf32>
    %30 = vector.extract_strided_slice %8 {offsets = [0, 0], sizes = [1, 1], strides = [1, 1]} : vector<4x1xf32> to vector<1x1xf32>
    %31 = vector.extract_strided_slice %11 {offsets = [0, 0], sizes = [1, 32], strides = [1, 1]} : vector<4x32xf32> to vector<1x32xf32>
    %32 = vector.broadcast %31 : vector<1x32xf32> to vector<16x32xf32>
    %33 = arith.subf %0, %32 : vector<16x32xf32>
    %34 = vector.broadcast %29 : vector<16x1xf32> to vector<16x32xf32>
    %35 = arith.mulf %33, %34 : vector<16x32xf32>
    %cst_11 = arith.constant dense<0.000000e+00> : vector<32x32xf32>
    %36 = tpu.matmul %35, %35, %cst_11 {dimension_numbers = #tpu.dot_dimension_numbers<[0], [0], [1], [1], [0, 1, 1, 1], [], []>} : vector<16x32xf32>, vector<16x32xf32>, vector<32x32xf32> -> vector<32x32xf32>
    %cst_12 = arith.constant 1.000000e+00 : f32
    %37 = vector.broadcast %cst_12 : f32 to vector<1x1xf32>
    %38 = arith.subf %30, %37 : vector<1x1xf32>
    %39 = vector.broadcast %38 : vector<1x1xf32> to vector<32x32xf32>
    %40 = arith.divf %36, %39 : vector<32x32xf32>
    %cst_13 = arith.constant 1.000000e+00 : f32
    %41 = vector.broadcast %cst_13 : f32 to vector<1x1xf32>
    %42 = arith.addf %30, %41 : vector<1x1xf32>
    %43 = arith.divf %30, %42 : vector<1x1xf32>
    %44 = vector.broadcast %43 : vector<1x1xf32> to vector<32x32xf32>
    %45 = arith.mulf %44, %40 : vector<32x32xf32>
    %cst_14 = arith.constant 1.000000e+00 : f32
    %46 = vector.broadcast %cst_14 : f32 to vector<1x1xf32>
    %47 = arith.subf %46, %43 : vector<1x1xf32>
    %48 = vector.broadcast %47 : vector<1x1xf32> to vector<32x32xf32>
    %49 = arith.mulf %48, %21 : vector<32x32xf32>
    %50 = arith.addf %45, %49 : vector<32x32xf32>
    %51 = arith.addf %50, %28 : vector<32x32xf32>
    %c0_15 = arith.constant 0 : index
    %c0_16 = arith.constant 0 : index
    %c0_17 = arith.constant 0 : index
    %52 = vector.load %arg4[%c0_15, %c0_16, %c0_17] : memref<4x32x32xf32, #tpu.memory_space<vmem>>, vector<1x32x32xf32>
    %53 = vector.shape_cast %52 : vector<1x32x32xf32> to vector<32x32xf32>
    %54 = vector.shape_cast %51 : vector<32x32xf32> to vector<1x32x32xf32>
    tpu.vector_store %arg4[%c0_15, %c0_16, %c0_17], %54 {strides = array<i32>} : memref<4x32x32xf32, #tpu.memory_space<vmem>>, vector<1x32x32xf32>,
    %55 = vector.extract_strided_slice %6 {offsets = [0, 1], sizes = [16, 1], strides = [1, 1]} : vector<16x4xf32> to vector<16x1xf32>
    %56 = vector.extract_strided_slice %8 {offsets = [1, 0], sizes = [1, 1], strides = [1, 1]} : vector<4x1xf32> to vector<1x1xf32>
    %57 = vector.extract_strided_slice %11 {offsets = [1, 0], sizes = [1, 32], strides = [1, 1]} : vector<4x32xf32> to vector<1x32xf32>
    %58 = vector.broadcast %57 : vector<1x32xf32> to vector<16x32xf32>
    %59 = arith.subf %0, %58 : vector<16x32xf32>
    %60 = vector.broadcast %55 : vector<16x1xf32> to vector<16x32xf32>
    %61 = arith.mulf %59, %60 : vector<16x32xf32>
    %cst_18 = arith.constant dense<0.000000e+00> : vector<32x32xf32>
    %62 = tpu.matmul %61, %61, %cst_18 {dimension_numbers = #tpu.dot_dimension_numbers<[0], [0], [1], [1], [0, 1, 1, 1], [], []>} : vector<16x32xf32>, vector<16x32xf32>, vector<32x32xf32> -> vector<32x32xf32>
    %cst_19 = arith.constant 1.000000e+00 : f32
    %63 = vector.broadcast %cst_19 : f32 to vector<1x1xf32>
    %64 = arith.subf %56, %63 : vector<1x1xf32>
    %65 = vector.broadcast %64 : vector<1x1xf32> to vector<32x32xf32>
    %66 = arith.divf %62, %65 : vector<32x32xf32>
    %cst_20 = arith.constant 1.000000e+00 : f32
    %67 = vector.broadcast %cst_20 : f32 to vector<1x1xf32>
    %68 = arith.addf %56, %67 : vector<1x1xf32>
    %69 = arith.divf %56, %68 : vector<1x1xf32>
    %70 = vector.broadcast %69 : vector<1x1xf32> to vector<32x32xf32>
    %71 = arith.mulf %70, %66 : vector<32x32xf32>
    %cst_21 = arith.constant 1.000000e+00 : f32
    %72 = vector.broadcast %cst_21 : f32 to vector<1x1xf32>
    %73 = arith.subf %72, %69 : vector<1x1xf32>
    %74 = vector.broadcast %73 : vector<1x1xf32> to vector<32x32xf32>
    %75 = arith.mulf %74, %21 : vector<32x32xf32>
    %76 = arith.addf %71, %75 : vector<32x32xf32>
    %77 = arith.addf %76, %28 : vector<32x32xf32>
    %c1 = arith.constant 1 : index
    %c0_22 = arith.constant 0 : index
    %c0_23 = arith.constant 0 : index
    %78 = vector.load %arg4[%c1, %c0_22, %c0_23] : memref<4x32x32xf32, #tpu.memory_space<vmem>>, vector<1x32x32xf32>
    %79 = vector.shape_cast %78 : vector<1x32x32xf32> to vector<32x32xf32>
    %80 = vector.shape_cast %77 : vector<32x32xf32> to vector<1x32x32xf32>
    tpu.vector_store %arg4[%c1, %c0_22, %c0_23], %80 {strides = array<i32>} : memref<4x32x32xf32, #tpu.memory_space<vmem>>, vector<1x32x32xf32>,
    %81 = vector.extract_strided_slice %6 {offsets = [0, 2], sizes = [16, 1], strides = [1, 1]} : vector<16x4xf32> to vector<16x1xf32>
    %82 = vector.extract_strided_slice %8 {offsets = [2, 0], sizes = [1, 1], strides = [1, 1]} : vector<4x1xf32> to vector<1x1xf32>
    %83 = vector.extract_strided_slice %11 {offsets = [2, 0], sizes = [1, 32], strides = [1, 1]} : vector<4x32xf32> to vector<1x32xf32>
    %84 = vector.broadcast %83 : vector<1x32xf32> to vector<16x32xf32>
    %85 = arith.subf %0, %84 : vector<16x32xf32>
    %86 = vector.broadcast %81 : vector<16x1xf32> to vector<16x32xf32>
    %87 = arith.mulf %85, %86 : vector<16x32xf32>
    %cst_24 = arith.constant dense<0.000000e+00> : vector<32x32xf32>
    %88 = tpu.matmul %87, %87, %cst_24 {dimension_numbers = #tpu.dot_dimension_numbers<[0], [0], [1], [1], [0, 1, 1, 1], [], []>} : vector<16x32xf32>, vector<16x32xf32>, vector<32x32xf32> -> vector<32x32xf32>
    %cst_25 = arith.constant 1.000000e+00 : f32
    %89 = vector.broadcast %cst_25 : f32 to vector<1x1xf32>
    %90 = arith.subf %82, %89 : vector<1x1xf32>
    %91 = vector.broadcast %90 : vector<1x1xf32> to vector<32x32xf32>
    %92 = arith.divf %88, %91 : vector<32x32xf32>
    %cst_26 = arith.constant 1.000000e+00 : f32
    %93 = vector.broadcast %cst_26 : f32 to vector<1x1xf32>
    %94 = arith.addf %82, %93 : vector<1x1xf32>
    %95 = arith.divf %82, %94 : vector<1x1xf32>
    %96 = vector.broadcast %95 : vector<1x1xf32> to vector<32x32xf32>
    %97 = arith.mulf %96, %92 : vector<32x32xf32>
    %cst_27 = arith.constant 1.000000e+00 : f32
    %98 = vector.broadcast %cst_27 : f32 to vector<1x1xf32>
    %99 = arith.subf %98, %95 : vector<1x1xf32>
    %100 = vector.broadcast %99 : vector<1x1xf32> to vector<32x32xf32>
    %101 = arith.mulf %100, %21 : vector<32x32xf32>
    %102 = arith.addf %97, %101 : vector<32x32xf32>
    %103 = arith.addf %102, %28 : vector<32x32xf32>
    %c2 = arith.constant 2 : index
    %c0_28 = arith.constant 0 : index
    %c0_29 = arith.constant 0 : index
    %104 = vector.load %arg4[%c2, %c0_28, %c0_29] : memref<4x32x32xf32, #tpu.memory_space<vmem>>, vector<1x32x32xf32>
    %105 = vector.shape_cast %104 : vector<1x32x32xf32> to vector<32x32xf32>
    %106 = vector.shape_cast %103 : vector<32x32xf32> to vector<1x32x32xf32>
    tpu.vector_store %arg4[%c2, %c0_28, %c0_29], %106 {strides = array<i32>} : memref<4x32x32xf32, #tpu.memory_space<vmem>>, vector<1x32x32xf32>,
    %107 = vector.extract_strided_slice %6 {offsets = [0, 3], sizes = [16, 1], strides = [1, 1]} : vector<16x4xf32> to vector<16x1xf32>
    %108 = vector.extract_strided_slice %8 {offsets = [3, 0], sizes = [1, 1], strides = [1, 1]} : vector<4x1xf32> to vector<1x1xf32>
    %109 = vector.extract_strided_slice %11 {offsets = [3, 0], sizes = [1, 32], strides = [1, 1]} : vector<4x32xf32> to vector<1x32xf32>
    %110 = vector.broadcast %109 : vector<1x32xf32> to vector<16x32xf32>
    %111 = arith.subf %0, %110 : vector<16x32xf32>
    %112 = vector.broadcast %107 : vector<16x1xf32> to vector<16x32xf32>
    %113 = arith.mulf %111, %112 : vector<16x32xf32>
    %cst_30 = arith.constant dense<0.000000e+00> : vector<32x32xf32>
    %114 = tpu.matmul %113, %113, %cst_30 {dimension_numbers = #tpu.dot_dimension_numbers<[0], [0], [1], [1], [0, 1, 1, 1], [], []>} : vector<16x32xf32>, vector<16x32xf32>, vector<32x32xf32> -> vector<32x32xf32>
    %cst_31 = arith.constant 1.000000e+00 : f32
    %115 = vector.broadcast %cst_31 : f32 to vector<1x1xf32>
    %116 = arith.subf %108, %115 : vector<1x1xf32>
    %117 = vector.broadcast %116 : vector<1x1xf32> to vector<32x32xf32>
    %118 = arith.divf %114, %117 : vector<32x32xf32>
    %cst_32 = arith.constant 1.000000e+00 : f32
    %119 = vector.broadcast %cst_32 : f32 to vector<1x1xf32>
    %120 = arith.addf %108, %119 : vector<1x1xf32>
    %121 = arith.divf %108, %120 : vector<1x1xf32>
    %122 = vector.broadcast %121 : vector<1x1xf32> to vector<32x32xf32>
    %123 = arith.mulf %122, %118 : vector<32x32xf32>
    %cst_33 = arith.constant 1.000000e+00 : f32
    %124 = vector.broadcast %cst_33 : f32 to vector<1x1xf32>
    %125 = arith.subf %124, %121 : vector<1x1xf32>
    %126 = vector.broadcast %125 : vector<1x1xf32> to vector<32x32xf32>
    %127 = arith.mulf %126, %21 : vector<32x32xf32>
    %128 = arith.addf %123, %127 : vector<32x32xf32>
    %129 = arith.addf %128, %28 : vector<32x32xf32>
    %c3 = arith.constant 3 : index
    %c0_34 = arith.constant 0 : index
    %c0_35 = arith.constant 0 : index
    %130 = vector.load %arg4[%c3, %c0_34, %c0_35] : memref<4x32x32xf32, #tpu.memory_space<vmem>>, vector<1x32x32xf32>
    %131 = vector.shape_cast %130 : vector<1x32x32xf32> to vector<32x32xf32>
    %132 = vector.shape_cast %129 : vector<32x32xf32> to vector<1x32x32xf32>
    tpu.vector_store %arg4[%c3, %c0_34, %c0_35], %132 {strides = array<i32>} : memref<4x32x32xf32, #tpu.memory_space<vmem>>, vector<1x32x32xf32>,
    return
  }
  func.func @transform_0(%arg0: i32) -> (i32, i32) {
    %c0_i32 = arith.constant 0 : i32
    %c0_i32_0 = arith.constant 0 : i32
    %c0_i32_1 = arith.constant 0 : i32
    return %c0_i32, %c0_i32_0 : i32, i32
  }
  func.func @transform_1(%arg0: i32) -> (i32, i32) {
    %c0_i32 = arith.constant 0 : i32
    %c0_i32_0 = arith.constant 0 : i32
    %c0_i32_1 = arith.constant 0 : i32
    return %c0_i32, %c0_i32_0 : i32, i32
  }
  func.func @transform_2(%arg0: i32) -> (i32, i32) {
    %c0_i32 = arith.constant 0 : i32
    %c0_i32_0 = arith.constant 0 : i32
    %c0_i32_1 = arith.constant 0 : i32
    return %c0_i32, %c0_i32_0 : i32, i32
  }
  func.func @transform_3(%arg0: i32) -> (i32, i32, i32) {
    %c0_i32 = arith.constant 0 : i32
    %c0_i32_0 = arith.constant 0 : i32
    %c0_i32_1 = arith.constant 0 : i32
    %c0_i32_2 = arith.constant 0 : i32
    return %c0_i32, %c0_i32_0, %c0_i32_1 : i32, i32, i32
  }
}

module attributes {stable_mosaic.version = 11 : i64} {
  func.func @maha_logits_kernel(%arg0: i32, %arg1: memref<4x32xf32, #tpu.memory_space<vmem>>, %arg2: memref<4x32x32xf32, #tpu.memory_space<vmem>>, %arg3: memref<8x32xf32, #tpu.memory_space<vmem>>, %arg4: memref<8x4xf32, #tpu.memory_space<vmem>>) attributes {dimension_semantics = [#tpu.dimension_semantics<arbitrary>], iteration_bounds = array<i64: 1>, scalar_prefetch = 0 : i64, scratch_operands = 0 : i64, tpu.core_type = #tpu.core_type<tc>, window_params = [{pipeline_mode = #tpu.pipeline_mode<synchronous>, transform_indices = @transform_0, window_bounds = array<i64: 4, 32>}, {pipeline_mode = #tpu.pipeline_mode<synchronous>, transform_indices = @transform_1, window_bounds = array<i64: 4, 32, 32>}, {pipeline_mode = #tpu.pipeline_mode<synchronous>, transform_indices = @transform_2, window_bounds = array<i64: 8, 32>}, {pipeline_mode = #tpu.pipeline_mode<synchronous>, transform_indices = @transform_3, window_bounds = array<i64: 8, 4>}]} {
    %c0 = arith.constant 0 : index
    %c0_0 = arith.constant 0 : index
    %0 = vector.load %arg3[%c0, %c0_0] : memref<8x32xf32, #tpu.memory_space<vmem>>, vector<8x32xf32>
    %c0_1 = arith.constant 0 : index
    %c0_2 = arith.constant 0 : index
    %1 = vector.load %arg1[%c0_1, %c0_2] : memref<4x32xf32, #tpu.memory_space<vmem>>, vector<1x32xf32>
    %2 = vector.broadcast %1 : vector<1x32xf32> to vector<8x32xf32>
    %3 = arith.subf %2, %0 : vector<8x32xf32>
    %c0_3 = arith.constant 0 : index
    %c0_4 = arith.constant 0 : index
    %c0_5 = arith.constant 0 : index
    %4 = vector.load %arg2[%c0_3, %c0_4, %c0_5] : memref<4x32x32xf32, #tpu.memory_space<vmem>>, vector<1x32x32xf32>
    %5 = vector.shape_cast %4 : vector<1x32x32xf32> to vector<32x32xf32>
    %cst = arith.constant dense<0.000000e+00> : vector<8x32xf32>
    %6 = tpu.matmul %3, %5, %cst {dimension_numbers = #tpu.dot_dimension_numbers<[1], [0], [0], [1], [0, 0, 1, 1], [], []>} : vector<8x32xf32>, vector<32x32xf32>, vector<8x32xf32> -> vector<8x32xf32>
    %7 = arith.mulf %6, %3 : vector<8x32xf32>
    %cst_6 = arith.constant dense<0.000000e+00> : vector<8xf32>
    %8 = vector.multi_reduction <add>, %7, %cst_6 [1] : vector<8x32xf32> to vector<8xf32>
    %9 = vector.shape_cast %8 : vector<8xf32> to vector<8x1xf32>
    %cst_7 = arith.constant 0.000000e+00 : f32
    %10 = vector.broadcast %cst_7 : f32 to vector<8x1xf32>
    %11 = arith.subf %10, %9 : vector<8x1xf32>
    %c0_8 = arith.constant 0 : index
    %c0_9 = arith.constant 0 : index
    %12 = vector.load %arg4[%c0_8, %c0_9] : memref<8x4xf32, #tpu.memory_space<vmem>>, vector<8x1xf32>
    tpu.vector_store %arg4[%c0_8, %c0_9], %11 {strides = array<i32>} : memref<8x4xf32, #tpu.memory_space<vmem>>, vector<8x1xf32>,
    %c1 = arith.constant 1 : index
    %c0_10 = arith.constant 0 : index
    %13 = vector.load %arg1[%c1, %c0_10] : memref<4x32xf32, #tpu.memory_space<vmem>>, vector<1x32xf32>
    %14 = vector.broadcast %13 : vector<1x32xf32> to vector<8x32xf32>
    %15 = arith.subf %14, %0 : vector<8x32xf32>
    %c1_11 = arith.constant 1 : index
    %c0_12 = arith.constant 0 : index
    %c0_13 = arith.constant 0 : index
    %16 = vector.load %arg2[%c1_11, %c0_12, %c0_13] : memref<4x32x32xf32, #tpu.memory_space<vmem>>, vector<1x32x32xf32>
    %17 = vector.shape_cast %16 : vector<1x32x32xf32> to vector<32x32xf32>
    %cst_14 = arith.constant dense<0.000000e+00> : vector<8x32xf32>
    %18 = tpu.matmul %15, %17, %cst_14 {dimension_numbers = #tpu.dot_dimension_numbers<[1], [0], [0], [1], [0, 0, 1, 1], [], []>} : vector<8x32xf32>, vector<32x32xf32>, vector<8x32xf32> -> vector<8x32xf32>
    %19 = arith.mulf %18, %15 : vector<8x32xf32>
    %cst_15 = arith.constant dense<0.000000e+00> : vector<8xf32>
    %20 = vector.multi_reduction <add>, %19, %cst_15 [1] : vector<8x32xf32> to vector<8xf32>
    %21 = vector.shape_cast %20 : vector<8xf32> to vector<8x1xf32>
    %cst_16 = arith.constant 0.000000e+00 : f32
    %22 = vector.broadcast %cst_16 : f32 to vector<8x1xf32>
    %23 = arith.subf %22, %21 : vector<8x1xf32>
    %c0_17 = arith.constant 0 : index
    %c1_18 = arith.constant 1 : index
    %24 = vector.load %arg4[%c0_17, %c1_18] : memref<8x4xf32, #tpu.memory_space<vmem>>, vector<8x1xf32>
    tpu.vector_store %arg4[%c0_17, %c1_18], %23 {strides = array<i32>} : memref<8x4xf32, #tpu.memory_space<vmem>>, vector<8x1xf32>,
    %c2 = arith.constant 2 : index
    %c0_19 = arith.constant 0 : index
    %25 = vector.load %arg1[%c2, %c0_19] : memref<4x32xf32, #tpu.memory_space<vmem>>, vector<1x32xf32>
    %26 = vector.broadcast %25 : vector<1x32xf32> to vector<8x32xf32>
    %27 = arith.subf %26, %0 : vector<8x32xf32>
    %c2_20 = arith.constant 2 : index
    %c0_21 = arith.constant 0 : index
    %c0_22 = arith.constant 0 : index
    %28 = vector.load %arg2[%c2_20, %c0_21, %c0_22] : memref<4x32x32xf32, #tpu.memory_space<vmem>>, vector<1x32x32xf32>
    %29 = vector.shape_cast %28 : vector<1x32x32xf32> to vector<32x32xf32>
    %cst_23 = arith.constant dense<0.000000e+00> : vector<8x32xf32>
    %30 = tpu.matmul %27, %29, %cst_23 {dimension_numbers = #tpu.dot_dimension_numbers<[1], [0], [0], [1], [0, 0, 1, 1], [], []>} : vector<8x32xf32>, vector<32x32xf32>, vector<8x32xf32> -> vector<8x32xf32>
    %31 = arith.mulf %30, %27 : vector<8x32xf32>
    %cst_24 = arith.constant dense<0.000000e+00> : vector<8xf32>
    %32 = vector.multi_reduction <add>, %31, %cst_24 [1] : vector<8x32xf32> to vector<8xf32>
    %33 = vector.shape_cast %32 : vector<8xf32> to vector<8x1xf32>
    %cst_25 = arith.constant 0.000000e+00 : f32
    %34 = vector.broadcast %cst_25 : f32 to vector<8x1xf32>
    %35 = arith.subf %34, %33 : vector<8x1xf32>
    %c0_26 = arith.constant 0 : index
    %c2_27 = arith.constant 2 : index
    %36 = vector.load %arg4[%c0_26, %c2_27] : memref<8x4xf32, #tpu.memory_space<vmem>>, vector<8x1xf32>
    tpu.vector_store %arg4[%c0_26, %c2_27], %35 {strides = array<i32>} : memref<8x4xf32, #tpu.memory_space<vmem>>, vector<8x1xf32>,
    %c3 = arith.constant 3 : index
    %c0_28 = arith.constant 0 : index
    %37 = vector.load %arg1[%c3, %c0_28] : memref<4x32xf32, #tpu.memory_space<vmem>>, vector<1x32xf32>
    %38 = vector.broadcast %37 : vector<1x32xf32> to vector<8x32xf32>
    %39 = arith.subf %38, %0 : vector<8x32xf32>
    %c3_29 = arith.constant 3 : index
    %c0_30 = arith.constant 0 : index
    %c0_31 = arith.constant 0 : index
    %40 = vector.load %arg2[%c3_29, %c0_30, %c0_31] : memref<4x32x32xf32, #tpu.memory_space<vmem>>, vector<1x32x32xf32>
    %41 = vector.shape_cast %40 : vector<1x32x32xf32> to vector<32x32xf32>
    %cst_32 = arith.constant dense<0.000000e+00> : vector<8x32xf32>
    %42 = tpu.matmul %39, %41, %cst_32 {dimension_numbers = #tpu.dot_dimension_numbers<[1], [0], [0], [1], [0, 0, 1, 1], [], []>} : vector<8x32xf32>, vector<32x32xf32>, vector<8x32xf32> -> vector<8x32xf32>
    %43 = arith.mulf %42, %39 : vector<8x32xf32>
    %cst_33 = arith.constant dense<0.000000e+00> : vector<8xf32>
    %44 = vector.multi_reduction <add>, %43, %cst_33 [1] : vector<8x32xf32> to vector<8xf32>
    %45 = vector.shape_cast %44 : vector<8xf32> to vector<8x1xf32>
    %cst_34 = arith.constant 0.000000e+00 : f32
    %46 = vector.broadcast %cst_34 : f32 to vector<8x1xf32>
    %47 = arith.subf %46, %45 : vector<8x1xf32>
    %c0_35 = arith.constant 0 : index
    %c3_36 = arith.constant 3 : index
    %48 = vector.load %arg4[%c0_35, %c3_36] : memref<8x4xf32, #tpu.memory_space<vmem>>, vector<8x1xf32>
    tpu.vector_store %arg4[%c0_35, %c3_36], %47 {strides = array<i32>} : memref<8x4xf32, #tpu.memory_space<vmem>>, vector<8x1xf32>,
    return
  }
  func.func @transform_0(%arg0: i32) -> (i32, i32) {
    %c0_i32 = arith.constant 0 : i32
    %c0_i32_0 = arith.constant 0 : i32
    %c0_i32_1 = arith.constant 0 : i32
    return %c0_i32, %c0_i32_0 : i32, i32
  }
  func.func @transform_1(%arg0: i32) -> (i32, i32, i32) {
    %c0_i32 = arith.constant 0 : i32
    %c0_i32_0 = arith.constant 0 : i32
    %c0_i32_1 = arith.constant 0 : i32
    %c0_i32_2 = arith.constant 0 : i32
    return %c0_i32, %c0_i32_0, %c0_i32_1 : i32, i32, i32
  }
  func.func @transform_2(%arg0: i32) -> (i32, i32) {
    %c0_i32 = arith.constant 0 : i32
    %c0_i32_0 = arith.constant 0 : i32
    %c0_i32_1 = arith.constant 0 : i32
    return %c0_i32, %c0_i32_0 : i32, i32
  }
  func.func @transform_3(%arg0: i32) -> (i32, i32) {
    %c0_i32 = arith.constant 0 : i32
    %c0_i32_0 = arith.constant 0 : i32
    %c0_i32_1 = arith.constant 0 : i32
    return %c0_i32, %c0_i32_0 : i32, i32
  }
}

</mosaic_0001>

<llo_original>
// kernel: custom-call.11
$region0: #{custom-call.11}
  %s0 = inlined_call_operand.vmem [shape: f32[4,32,32], index: 0, kind: input, shape index: {}]
  %s1 = inlined_call_operand.vmem [shape: f32[4,32,32], index: 1, kind: output, shape index: {0}]
  %s2 = inlined_call_operand.hbm [shape: s32[4,32], index: 2, kind: output, shape index: {1}]
  %s3 = inlined_call_operand.vmem [shape: s32[4,32], index: 3, kind: output, shape index: {2}]
  %4 = xla_tuple %s1, %s2, %s3
  $region1: #{custom-call.11} parent=0
    #allocation0 [shape = 'u8[32768]{0}', space=vmem, size = 0x8000, scoped, tag = 'operand span for operand 0']
    #allocation1 [shape = 'u8[32768]{0}', space=vmem, size = 0x8000, scoped, tag = 'operand span for operand 1']
    #allocation2 [shape = 'u8[4096]{0}', space=vmem, size = 0x1000, scoped, tag = 'operand span for operand 2']
    #allocation3 [shape = 'u8[4096]{0}', space=vmem, size = 0x1000, scoped, tag = 'packed  for operand 2']
    #allocation4 [shape = 's32[2]{0}', space=sflag, size = 0x8, scoped, tag = 'scoped memory for custom-call.11']
    #allocation5 [shape = 'u8[4096]{0}', space=vmem, size = 0x1000, scoped, tag = 'operand span for operand 3']
    #allocation6 [shape = 'u8[4096]{0}', space=vmem, size = 0x1000, scoped, tag = 'packed  for operand 3']
    %5 = vsyncpa [#allocation4], 0
    %s6 = scalar_lea.sflag [#allocation4], 1
    %7 = vsyncpa %s6, 0
    loop: start=0, step=1, limit=6
    $region2: #{custom-call.11} parent=1 // loop_pre_header
      _
    $region3: #{custom-call.11} parent=1 // loop_header
      %s9 = sphi 0, %s13
      %p10 = scmp.ge.s32.totalorder %s9, 6
      %s21 = sphi 0, %s23
      %s24 = sphi 0, %s21
      %s25 = sphi 0, %s24
      %s41 = sphi 0, %s25
      %s49 = sphi 0, %s51
      %s52 = sphi 0, %s49
      %s53 = sphi 0, %s52
      %s69 = sphi 0, %s53
    $region4: #{custom-call.11} parent=1 // loop_header_branch
      %12 = sbr.rel (%p10) target = $region8
    $region5: #{custom-call.11} parent=1 // loop_body
      %s14 = ssub.s32 %s9, 1
      %s15 = ssub.s32 %s9, 2
      %s16 = sadd.s32 %s9, 1
      %s17 = sshrl.u32 %s9, 3
      %s18 = sshrl.u32 %s16, 3
      %s19 = ssub.s32 %s17, %s18
      %p20 = scmp.eq.s32.totalorder %s19, 0
      %s22 = sadd.s32 %s21, 1
      %s23 = scalar_select %p20, %s21, %s22
      %p26 = pneg %p20
      %p27 = scmp.eq.s32.totalorder %s9, 3
      %p28 = por %p26, %p27
      %p29 = scmp.ne.s32.totalorder %s21, %s24
      %p30 = scmp.eq.s32.totalorder %s9, 0
      %p31 = por %p29, %p30
      %p32 = scmp.ne.s32.totalorder %s21, %s24
      %p33 = scmp.eq.s32.totalorder %s14, 3
      %p34 = por %p32, %p33
      %p35 = scmp.ne.s32.totalorder %s24, %s25
      %p36 = scmp.eq.s32.totalorder %s14, 0
      %p37 = por %p35, %p36
      %p38 = scmp.ne.s32.totalorder %s24, %s25
      %p39 = scmp.eq.s32.totalorder %s15, 3
      %p40 = por %p38, %p39
      %p42 = scmp.ne.s32.totalorder %s25, %s41
      %p43 = scmp.eq.s32.totalorder %s15, 0
      %p44 = por %p42, %p43
      %s45 = sshrl.u32 %s9, 3
      %s46 = sshrl.u32 %s16, 3
      %s47 = ssub.s32 %s45, %s46
      %p48 = scmp.eq.s32.totalorder %s47, 0
      %s50 = sadd.s32 %s49, 1
      %s51 = scalar_select %p48, %s49, %s50
      %p54 = pneg %p48
      %p55 = scmp.eq.s32.totalorder %s9, 3
      %p56 = por %p54, %p55
      %p57 = scmp.ne.s32.totalorder %s49, %s52
      %p58 = scmp.eq.s32.totalorder %s9, 0
      %p59 = por %p57, %p58
      %p60 = scmp.ne.s32.totalorder %s49, %s52
      %p61 = scmp.eq.s32.totalorder %s14, 3
      %p62 = por %p60, %p61
      %p63 = scmp.ne.s32.totalorder %s52, %s53
      %p64 = scmp.eq.s32.totalorder %s14, 0
      %p65 = por %p63, %p64
      %p66 = scmp.ne.s32.totalorder %s52, %s53
      %p67 = scmp.eq.s32.totalorder %s15, 3
      %p68 = por %p66, %p67
      %p70 = scmp.ne.s32.totalorder %s53, %s69
      %p71 = scmp.eq.s32.totalorder %s15, 0
      %p72 = por %p70, %p71
      %p73 = scmp.le.s32.totalorder 1, %s9
      %p74 = scmp.lt.s32.totalorder %s9, 5
      %p75 = pnand %p73, %p74
      %p76 = pneg %p75
      // Predicated region
      $region9: #{custom-call.11} parent=5 // pred_check
        _
      $region10: #{custom-call.11} parent=5 // pred_check_branch
        %78 = sbr.rel (%p75) target = $region12
      $region11: #{custom-call.11} parent=5 // pred_region
        %s79 = ssub.s32 %s9, 1
      $region12: #{custom-call.11} parent=5 // pred_fallthru
        _
      %p80 = scmp.lt.s32.totalorder %s9, 4
      // Predicated region
      $region13: #{custom-call.11} parent=5 // pred_check
        %p81 = pneg %p80
      $region14: #{custom-call.11} parent=5 // pred_check_branch
        %83 = sbr.rel (%p81) target = $region16
      $region15: #{custom-call.11} parent=5 // pred_region
        %s84 = sand.u32 %s9, 1
        %s85 = sand.u32 %s9, 1
        %s86 = smul.addr %s85, 32
        %s87 = scalar_lea.vmem [#allocation0], %s86
        %s88 = smul.addr %s9, 32
        %s89 = scalar_lea.vmem %s0, %s88
        // Predicated region
        $region17: #{custom-call.11} parent=15 // pred_check
          _
        $region18: #{custom-call.11} parent=15 // pred_check_branch
          %91 = sbr.rel (0) target = $region20
        $region19: #{custom-call.11} parent=15 // pred_region
          // Predicated region
          $region21: #{custom-call.11} parent=19 // pred_check
            _
          $region22: #{custom-call.11} parent=19 // pred_check_branch
            %93 = sbr.rel (0) target = $region24
          $region23: #{custom-call.11} parent=19 // pred_region
            loop: start=0, step=1, limit=1
            $region25: #{custom-call.11} parent=23 // loop_pre_header
              _
            $region26: #{custom-call.11} parent=23 // loop_header
              %s95 = sphi 0, %s99
              %p96 = scmp.ge.s32.totalorder %s95, 1
              %s100 = sphi %s89, %s89
              %s101 = sphi %s87, %s87
            $region27: #{custom-call.11} parent=23 // loop_header_branch
              %98 = sbr.rel (%p96) target = $region31
            $region28: #{custom-call.11} parent=23 // loop_body
              %v102 = vld [vmem:[%s100] sm:$0xff]
              %103 = vst [vmem:[%s101] sm:$0xff] %v102
              %v104 = vld [vmem:[%s100 + $0x8] sm:$0xff]
              %105 = vst [vmem:[%s101 + $0x8] sm:$0xff] %v104
              %v106 = vld [vmem:[%s100 + $0x10] sm:$0xff]
              %107 = vst [vmem:[%s101 + $0x10] sm:$0xff] %v106
              %v108 = vld [vmem:[%s100 + $0x18] sm:$0xff]
              %109 = vst [vmem:[%s101 + $0x18] sm:$0xff] %v108
            $region29: #{custom-call.11} parent=23 // loop_footer
              %s99 = sadd.s32 1, %s95
            $region30: #{custom-call.11} parent=23 // loop_footer_branch
              %94 = sbr.rel target = $region26
            $region31: #{custom-call.11} parent=23 // loop_exit
              _
          $region24: #{custom-call.11} parent=19 // pred_fallthru
            _
          // Predicated region
          $region32: #{custom-call.11} parent=19 // pred_check
            _
          $region33: #{custom-call.11} parent=19 // pred_check_branch
            %111 = sbr.rel target = $region35
          $region34: #{custom-call.11} parent=19 // pred_region
            _
          $region35: #{custom-call.11} parent=19 // pred_fallthru
            _
        $region20: #{custom-call.11} parent=15 // pred_fallthru
          _
        %112 = vnop
      $region16: #{custom-call.11} parent=5 // pred_fallthru
        _
      %p113 = scmp.le.s32.totalorder 1, %s9
      %p114 = scmp.lt.s32.totalorder %s9, 5
      %p115 = pnand %p113, %p114
      %p116 = pneg %p115
      // Predicated region
      $region36: #{custom-call.11} parent=5 // pred_check
        _
      $region37: #{custom-call.11} parent=5 // pred_check_branch
        %118 = sbr.rel (%p115) target = $region39
      $region38: #{custom-call.11} parent=5 // pred_region
        #allocation7 [shape = 's32[32,128]{1,0}', space=vmem, size = 0x4000, scoped, tag = 'scratch for permutations']
        %s119 = ssub.s32 %s9, 1
        %s120 = sand.u32 %s14, 1
        %s121 = sand.u32 %s14, 1
        %s122 = smul.addr %s121, 32
        %s123 = scalar_lea.vmem [#allocation0], %s122
        %s124 = sand.u32 %s14, 1
        %s125 = sand.u32 %s14, 1
        %s126 = smul.addr %s125, 32
        %s127 = scalar_lea.vmem [#allocation0], %s126
        %s128 = sand.u32 %s14, 1
        %s129 = sand.u32 %s14, 1
        %s130 = smul.addr %s129, 32
        %s131 = scalar_lea.vmem [#allocation1], %s130
        %p132 = pneg %p37
        %p133 = pneg %p34
        %s134 = sand.u32 %s24, 1
        %s135 = scalar_lea.sflag [#allocation4], %s134
        %s136 = sand.u32 %s24, 1
        %s137 = smul.addr %s136, 4
        %s138 = scalar_lea.vmem [#allocation3], %s137
        %p139 = pneg %p65
        %p140 = pneg %p62
        %s141 = sand.u32 %s52, 1
        %s142 = sand.u32 %s52, 1
        %s143 = smul.addr %s142, 4
        %s144 = scalar_lea.vmem [#allocation6], %s143
        %s145 = sshrl.u32 %s14, 3
        %s146 = sshrl.u32 %s14, 3
        %v147 = vld [vmem:[%s123] sm:$0xff]
        %148 = vst [vmem:[%s131] sm:$0xff] %v147
        %s149 = scalar_lea.vmem %s131, 8 [#allocation1]
        %s150 = scalar_lea.vmem %s123, 8 [#allocation0]
        %v151 = vld [vmem:[%s150] sm:$0xff]
        %152 = vst [vmem:[%s149] sm:$0xff] %v151
        %s153 = scalar_lea.vmem %s131, 16 [#allocation1]
        %s154 = scalar_lea.vmem %s123, 16 [#allocation0]
        %v155 = vld [vmem:[%s154] sm:$0xff]
        %156 = vst [vmem:[%s153] sm:$0xff] %v155
        %s157 = scalar_lea.vmem %s131, 24 [#allocation1]
        %s158 = scalar_lea.vmem %s123, 24 [#allocation0]
        %v159 = vld [vmem:[%s158] sm:$0xff]
        %160 = vst [vmem:[%s157] sm:$0xff] %v159
        %s161 = sand.u32 %s14, 7
        %s162 = scalar_lea.vmem [#allocation2], %s161
        %s163 = sand.u32 %s14, 7
        %s164 = scalar_lea.vmem [#allocation5], %s163
        %165 = vst [vmem:[%s162] sm:$0x1] 0
        %v166 = vlaneseq
        %v167 = vshrl.u32 %v166, 7
        %v168 = vmov %v167
        loop: start=0, step=1, limit=4
        $region40: #{custom-call.11} parent=38 // loop_pre_header
          _
        $region41: #{custom-call.11} parent=38 // loop_header
          %s170 = sphi 0, %s174
          %p171 = scmp.ge.s32.totalorder %s170, 4
        $region42: #{custom-call.11} parent=38 // loop_header_branch
          %173 = sbr.rel (%p171) target = $region46
        $region43: #{custom-call.11} parent=38 // loop_body
          %s175 = smul.addr %s170, 8
          %s176 = scalar_lea.vmem [#allocation7], %s175
          %s177 = smul.u32 %s170, 8
          %v178 = vstv %s177
          %v179 = vadd.s32 %v168, %v178
          %180 = vst [vmem:[%s176] sm:$0xff] %v179
        $region44: #{custom-call.11} parent=38 // loop_footer
          %s174 = sadd.s32 1, %s170
        $region45: #{custom-call.11} parent=38 // loop_footer_branch
          %169 = sbr.rel target = $region41
        $region46: #{custom-call.11} parent=38 // loop_exit
          _
        loop: start=0, step=1, limit=32
        $region47: #{custom-call.11} parent=38 // loop_pre_header
          _
        $region48: #{custom-call.11} parent=38 // loop_header
          %s182 = sphi 0, %s186
          %p183 = scmp.ge.s32.totalorder %s182, 32
        $region49: #{custom-call.11} parent=38 // loop_header_branch
          %185 = sbr.rel (%p183) target = $region53
        $region50: #{custom-call.11} parent=38 // loop_body
          %v187 = vstv %s182
          %v188 = vlaneseq
          %v189 = vshrl.u32 %v188, 7
          %v190 = vmov %v189
          %v191 = vld [vmem:[%s131] sm:$0xff]
          %v192 = vand.u32 2147483647, %v191
          %v194 = vstv %s182
          %vm195 = vcmp.ge.s32.totalorder %v190, %v194
          %vm196 = vcmp.lt.s32.totalorder %v190, 32
          %vm197 = vmand %vm195, %vm196
          %vm198 = vcmp.lt.f32.partialorder -inf, %v192
          %vm199 = vmand %vm197, %vm198
          %v200 = vsel %vm199, %v190, %v187
          %v201 = vsel %vm199, %v192, -inf
          %s202 = scalar_lea.vmem %s131, 8 [#allocation1]
          %v203 = vld [vmem:[%s202] sm:$0xff]
          %v204 = vand.u32 2147483647, %v203
          %v205 = vadd.s32 %v190, 8
          %v206 = vstv %s182
          %vm207 = vcmp.ge.s32.totalorder %v205, %v206
          %vm208 = vcmp.lt.s32.totalorder %v205, 32
          %vm209 = vmand %vm207, %vm208
          %vm210 = vcmp.lt.f32.partialorder %v201, %v204
          %vm211 = vmand %vm209, %vm210
          %v212 = vsel %vm211, %v205, %v200
          %v213 = vsel %vm211, %v204, %v201
          %s214 = scalar_lea.vmem %s131, 16 [#allocation1]
          %v215 = vld [vmem:[%s214] sm:$0xff]
          %v216 = vand.u32 2147483647, %v215
          %v217 = vadd.s32 %v190, 16
          %v218 = vstv %s182
          %vm219 = vcmp.ge.s32.totalorder %v217, %v218
          %vm220 = vcmp.lt.s32.totalorder %v217, 32
          %vm221 = vmand %vm219, %vm220
          %vm222 = vcmp.lt.f32.partialorder %v213, %v216
          %vm223 = vmand %vm221, %vm222
          %v224 = vsel %vm223, %v217, %v212
          %v225 = vsel %vm223, %v216, %v213
          %s226 = scalar_lea.vmem %s131, 24 [#allocation1]
          %v227 = vld [vmem:[%s226] sm:$0xff]
          %v228 = vand.u32 2147483647, %v227
          %v229 = vadd.s32 %v190, 24
          %v230 = vstv %s182
          %vm231 = vcmp.ge.s32.totalorder %v229, %v230
          %vm232 = vcmp.lt.s32.totalorder %v229, 32
          %vm233 = vmand %vm231, %vm232
          %vm234 = vcmp.lt.f32.partialorder %v225, %v228
          %vm235 = vmand %vm233, %vm234
          %v236 = vsel %vm235, %v229, %v224
          %v237 = vsel %vm235, %v228, %v225
          %v238 = vrot.slane %v237, 1
          %v239 = vrot.slane %v236, 1
          %vm240 = vcmp.ge.f32.partialorder %v238, %v237
          %v241 = vsel %vm240, %v238, %v237
          %v242 = vsel %vm240, %v239, %v236
          %v243 = vrot.slane %v238, 1
          %v244 = vrot.slane %v239, 1
          %vm245 = vcmp.ge.f32.partialorder %v243, %v241
          %v246 = vsel %vm245, %v243, %v241
          %v247 = vsel %vm245, %v244, %v242
          %v248 = vrot.slane %v243, 1
          %v249 = vrot.slane %v244, 1
          %vm250 = vcmp.ge.f32.partialorder %v248, %v246
          %v251 = vsel %vm250, %v248, %v246
          %v252 = vsel %vm250, %v249, %v247
          %v253 = vrot.slane %v248, 1
          %v254 = vrot.slane %v249, 1
          %vm255 = vcmp.ge.f32.partialorder %v253, %v251
          %v256 = vsel %vm255, %v253, %v251
          %v257 = vsel %vm255, %v254, %v252
          %v258 = vrot.slane %v253, 1
          %v259 = vrot.slane %v254, 1
          %vm260 = vcmp.ge.f32.partialorder %v258, %v256
          %v261 = vsel %vm260, %v258, %v256
          %v262 = vsel %vm260, %v259, %v257
          %v263 = vrot.slane %v258, 1
          %v264 = vrot.slane %v259, 1
          %vm265 = vcmp.ge.f32.partialorder %v263, %v261
          %v266 = vsel %vm265, %v263, %v261
          %v267 = vsel %vm265, %v264, %v262
          %v268 = vrot.slane %v263, 1
          %v269 = vrot.slane %v264, 1
          %vm270 = vcmp.ge.f32.partialorder %v268, %v266
          %v271 = vsel %vm270, %v268, %v266
          %v272 = vsel %vm270, %v269, %v267
          %s273 = ssub.s32 128, %s182
          %274 = vrot.lane.b32.xlu0 %v272, %s273
          %v275 = vpop.permute.xlu0 %274
          %s276 = vtos %v275
          %v277 = vstv %s182
          %v278 = vlaneseq
          %v279 = vand.u32 %v278, 127
          %vm280 = vcmp.eq.s32.totalorder %v279, %v277
          %v281 = vstv %s276
          %v282 = vld [vmem:[%s162] ss:$0 sm:$0xff]
          %v283 = vsel %vm280, %v281, %v282
          %284 = vst [vmem:[%s162] sm:$0x1] %v283
          %s285 = scalar_lea.vmem %s131, %s182 [#allocation1]
          %s286 = scalar_lea.vmem %s131, %s276 [#allocation1]
          %v287 = vld [vmem:[%s285] ss:$0 sm:$0xff]
          %v288 = vld [vmem:[%s286] ss:$0 sm:$0xff]
          %289 = vst [vmem:[%s286] sm:$0x1] %v287
          %290 = vst [vmem:[%s285] sm:$0x1] %v288
          %s291 = scalar_lea.vmem [#allocation7], %s182
          %s292 = scalar_lea.vmem [#allocation7], %s276
          %v293 = vld [vmem:[%s291] ss:$0 sm:$0xff]
          %v294 = vld [vmem:[%s292] ss:$0 sm:$0xff]
          %295 = vst [vmem:[%s292] sm:$0x1] %v293
          %296 = vst [vmem:[%s291] sm:$0x1] %v294
          %vm297 = vcmp.ne.f32.partialorder %v288, 0.0
          %vm298 = vmand %vm280, %vm297
          %v299 = vsel %vm298, %v288, 1.0
          %v300 = vlaneseq
          %v301 = vand.u32 %v300, 127
          %v302 = vstv %s182
          %vm303 = vcmp.gt.s32.totalorder %v301, %v302
          %v304 = vsel %vm303, %v288, 0.0
          %v305 = vlaneseq
          %v306 = vshrl.u32 %v305, 7
          %v307 = vmov %v306
          %v308 = vld [vmem:[%s131] sm:$0xff]
          %v310 = vstv %s182
          %vm311 = vcmp.gt.s32.totalorder %v307, %v310
          %v312 = vsel %vm311, %v299, 1.0
          %v313 = vrcp.pop %v312
          %v314 = vmul.f32 %v308, %v313
          %vm315 = vmand %vm311, %vm280
          %v316 = vsel %vm315, %v314, 0.0
          %317 = vadd.xlane.f32.xlu0 %v316
          %v318 = vpop.xlane.xlu0 %317
          %v319 = vmul.f32 %v318, %v304
          %v320 = vsub.f32 %v314, %v319
          %321 = vst [vmem:[%s131] sm:$0xff] %v320
          %s322 = scalar_lea.vmem %s131, 8 [#allocation1]
          %v323 = vld [vmem:[%s322] sm:$0xff]
          %v324 = vadd.s32 %v307, 8
          %v325 = vstv %s182
          %vm326 = vcmp.gt.s32.totalorder %v324, %v325
          %v327 = vsel %vm326, %v299, 1.0
          %v328 = vrcp.pop %v327
          %v329 = vmul.f32 %v323, %v328
          %vm330 = vmand %vm326, %vm280
          %v331 = vsel %vm330, %v329, 0.0
          %332 = vadd.xlane.f32.xlu0 %v331
          %v333 = vpop.xlane.xlu0 %332
          %v334 = vmul.f32 %v333, %v304
          %v335 = vsub.f32 %v329, %v334
          %336 = vst [vmem:[%s322] sm:$0xff] %v335
          %s337 = scalar_lea.vmem %s131, 16 [#allocation1]
          %v338 = vld [vmem:[%s337] sm:$0xff]
          %v339 = vadd.s32 %v307, 16
          %v340 = vstv %s182
          %vm341 = vcmp.gt.s32.totalorder %v339, %v340
          %v342 = vsel %vm341, %v299, 1.0
          %v343 = vrcp.pop %v342
          %v344 = vmul.f32 %v338, %v343
          %vm345 = vmand %vm341, %vm280
          %v346 = vsel %vm345, %v344, 0.0
          %347 = vadd.xlane.f32.xlu0 %v346
          %v348 = vpop.xlane.xlu0 %347
          %v349 = vmul.f32 %v348, %v304
          %v350 = vsub.f32 %v344, %v349
          %351 = vst [vmem:[%s337] sm:$0xff] %v350
          %s352 = scalar_lea.vmem %s131, 24 [#allocation1]
          %v353 = vld [vmem:[%s352] sm:$0xff]
          %v354 = vadd.s32 %v307, 24
          %v355 = vstv %s182
          %vm356 = vcmp.gt.s32.totalorder %v354, %v355
          %v357 = vsel %vm356, %v299, 1.0
          %v358 = vrcp.pop %v357
          %v359 = vmul.f32 %v353, %v358
          %vm360 = vmand %vm356, %vm280
          %v361 = vsel %vm360, %v359, 0.0
          %362 = vadd.xlane.f32.xlu0 %v361
          %v363 = vpop.xlane.xlu0 %362
          %v364 = vmul.f32 %v363, %v304
          %v365 = vsub.f32 %v359, %v364
          %366 = vst [vmem:[%s352] sm:$0xff] %v365
        $region51: #{custom-call.11} parent=38 // loop_footer
          %s186 = sadd.s32 1, %s182
        $region52: #{custom-call.11} parent=38 // loop_footer_branch
          %181 = sbr.rel target = $region48
        $region53: #{custom-call.11} parent=38 // loop_exit
          _
        %v367 = vld [vmem:[#allocation7] sm:$0xff]
        %s368 = scalar_lea.vmem [#allocation7], 8
        %v369 = vld [vmem:[%s368] sm:$0xff]
        %s370 = scalar_lea.vmem [#allocation7], 16
        %v371 = vld [vmem:[%s370] sm:$0xff]
        %s372 = scalar_lea.vmem [#allocation7], 24
        %v373 = vld [vmem:[%s372] sm:$0xff]
        %s374 = scalar_lea.vmem [#allocation7], 32
        %s375 = scalar_lea.vmem [#allocation7], 40
        %s376 = scalar_lea.vmem [#allocation7], 48
        %s377 = scalar_lea.vmem [#allocation7], 56
        %s378 = scalar_lea.vmem [#allocation7], 64
        %s379 = scalar_lea.vmem [#allocation7], 72
        %s380 = scalar_lea.vmem [#allocation7], 80
        %s381 = scalar_lea.vmem [#allocation7], 88
        %s382 = scalar_lea.vmem [#allocation7], 96
        %s383 = scalar_lea.vmem [#allocation7], 104
        %s384 = scalar_lea.vmem [#allocation7], 112
        %s385 = scalar_lea.vmem [#allocation7], 120
        %386 = vxpose.xlu0.b32.start [1/16] %v367, 128
        %387 = vxpose.xlu0.b32.cont [2/16] %v369, 128
        %388 = vxpose.xlu0.b32.cont [3/16] %v371, 128
        %389 = vxpose.xlu0.b32.cont [4/16] %v373, 128
        %390 = vxpose.xlu0.b32.cont [5/16] 0, 128
        %391 = vxpose.xlu0.b32.cont [6/16] 0, 128
        %392 = vxpose.xlu0.b32.cont [7/16] 0, 128
        %393 = vxpose.xlu0.b32.cont [8/16] 0, 128
        %394 = vxpose.xlu0.b32.cont [9/16] 0, 128
        %395 = vxpose.xlu0.b32.cont [10/16] 0, 128
        %396 = vxpose.xlu0.b32.cont [11/16] 0, 128
        %397 = vxpose.xlu0.b32.cont [12/16] 0, 128
        %398 = vxpose.xlu0.b32.cont [13/16] 0, 128
        %399 = vxpose.xlu0.b32.cont [14/16] 0, 128
        %400 = vxpose.xlu0.b32.cont [15/16] 0, 128
        %401 = vxpose.xlu0.b32.end [16/16] 0, 128
        %v402 = vpop.trf.xlu0
        %v403 = vpop.trf.xlu0
        %v404 = vpop.trf.xlu0
        %v405 = vpop.trf.xlu0
        %v406 = vpop.trf.xlu0
        %v407 = vpop.trf.xlu0
        %v408 = vpop.trf.xlu0
        %v409 = vpop.trf.xlu0
        %v410 = vpop.trf.xlu0
        %v411 = vpop.trf.xlu0
        %v412 = vpop.trf.xlu0
        %v413 = vpop.trf.xlu0
        %v414 = vpop.trf.xlu0
        %v415 = vpop.trf.xlu0
        %v416 = vpop.trf.xlu0
        %v417 = vpop.trf.xlu0
        %418 = vst [vmem:[%s164] sm:$0x1] %v402
        %s420 = sshllo.u32 0, 4
        %v422 = vld [vmem:[#allocation2] sm:%s420]
        %s423 = sshllo.u32 0, 4
        %424 = vst [vmem:[%s138] sm:%s423] %v422
        %s426 = sshllo.u32 0, 4
        %v428 = vld [vmem:[#allocation5] sm:%s426]
        %s429 = sshllo.u32 0, 4
        %430 = vst [vmem:[%s144] sm:%s429] %v428
        %s431 = sand.u32 %s14, 1
        %s432 = sand.u32 %s14, 1
        %s433 = smul.addr %s432, 32
        %s434 = scalar_lea.vmem [#allocation1], %s433
        %s435 = sand.u32 %s24, 1
        %s436 = scalar_lea.sflag [#allocation4], %s435
        %s437 = sand.u32 %s24, 1
        %s438 = smul.addr %s437, 4
        %s439 = scalar_lea.vmem [#allocation3], %s438
        %s440 = sand.u32 %s52, 1
        %s441 = sand.u32 %s52, 1
        %s442 = smul.addr %s441, 4
        %s443 = scalar_lea.vmem [#allocation6], %s442
        %s444 = smul.addr %s14, 32
        %s445 = scalar_lea.vmem %s1, %s444
        // Predicated region
        $region54: #{custom-call.11} parent=38 // pred_check
          _
        $region55: #{custom-call.11} parent=38 // pred_check_branch
          %447 = sbr.rel (0) target = $region57
        $region56: #{custom-call.11} parent=38 // pred_region
          // Predicated region
          $region58: #{custom-call.11} parent=56 // pred_check
            _
          $region59: #{custom-call.11} parent=56 // pred_check_branch
            %449 = sbr.rel (0) target = $region61
          $region60: #{custom-call.11} parent=56 // pred_region
            loop: start=0, step=1, limit=1
            $region62: #{custom-call.11} parent=60 // loop_pre_header
              _
            $region63: #{custom-call.11} parent=60 // loop_header
              %s451 = sphi 0, %s455
              %p452 = scmp.ge.s32.totalorder %s451, 1
              %s456 = sphi %s434, %s434
              %s457 = sphi %s445, %s445
            $region64: #{custom-call.11} parent=60 // loop_header_branch
              %454 = sbr.rel (%p452) target = $region68
            $region65: #{custom-call.11} parent=60 // loop_body
              %v458 = vld [vmem:[%s456] sm:$0xff]
              %459 = vst [vmem:[%s457] sm:$0xff] %v458
              %v460 = vld [vmem:[%s456 + $0x8] sm:$0xff]
              %461 = vst [vmem:[%s457 + $0x8] sm:$0xff] %v460
              %v462 = vld [vmem:[%s456 + $0x10] sm:$0xff]
              %463 = vst [vmem:[%s457 + $0x10] sm:$0xff] %v462
              %v464 = vld [vmem:[%s456 + $0x18] sm:$0xff]
              %465 = vst [vmem:[%s457 + $0x18] sm:$0xff] %v464
            $region66: #{custom-call.11} parent=60 // loop_footer
              %s455 = sadd.s32 1, %s451
            $region67: #{custom-call.11} parent=60 // loop_footer_branch
              %450 = sbr.rel target = $region63
            $region68: #{custom-call.11} parent=60 // loop_exit
              _
          $region61: #{custom-call.11} parent=56 // pred_fallthru
            _
          // Predicated region
          $region69: #{custom-call.11} parent=56 // pred_check
            _
          $region70: #{custom-call.11} parent=56 // pred_check_branch
            %467 = sbr.rel target = $region72
          $region71: #{custom-call.11} parent=56 // pred_region
            _
          $region72: #{custom-call.11} parent=56 // pred_fallthru
            _
        $region57: #{custom-call.11} parent=38 // pred_fallthru
          _
        %468 = vnop
        // Predicated region
        $region73: #{custom-call.11} parent=38 // pred_check
          %p469 = pneg %p34
        $region74: #{custom-call.11} parent=38 // pred_check_branch
          %471 = sbr.rel (%p469) target = $region76
        $region75: #{custom-call.11} parent=38 // pred_region
          %s472 = sshrl.u32 %s14, 3
          %s474 = ssub.s32 64, 64
          %475 = vsyncadd %s436, %s474
          %s476 = smul.addr %s472, 64
          %s477 = scalar_lea.hbm %s2, %s476
          %s479 = sshll.u32 %s439, 4
          %s480 = int_to_ptr.vmem [resolvable:$true] %s479
          %482 = dma.vmem_to_hbm [thread:$0]  %s480, 64, %s477, %s436
        $region76: #{custom-call.11} parent=38 // pred_fallthru
          _
        // Predicated region
        $region77: #{custom-call.11} parent=38 // pred_check
          %p483 = pneg %p62
        $region78: #{custom-call.11} parent=38 // pred_check_branch
          %485 = sbr.rel (%p483) target = $region80
        $region79: #{custom-call.11} parent=38 // pred_region
          %s486 = sshrl.u32 %s14, 3
          %s487 = smul.addr %s486, 4
          %s488 = scalar_lea.vmem %s3, %s487
          // Predicated region
          $region81: #{custom-call.11} parent=79 // pred_check
            _
          $region82: #{custom-call.11} parent=79 // pred_check_branch
            %490 = sbr.rel (0) target = $region84
          $region83: #{custom-call.11} parent=79 // pred_region
            // Predicated region
            $region85: #{custom-call.11} parent=83 // pred_check
              _
            $region86: #{custom-call.11} parent=83 // pred_check_branch
              %492 = sbr.rel target = $region88
            $region87: #{custom-call.11} parent=83 // pred_region
              // Predicated region
              $region100: #{custom-call.11} parent=87 // pred_check
                _
              $region101: #{custom-call.11} parent=87 // pred_check_branch
                %507 = sbr.rel (0) target = $region103
              $region102: #{custom-call.11} parent=87 // pred_region
                loop: start=0, step=1, limit=1
                $region104: #{custom-call.11} parent=102 // loop_pre_header
                  _
                $region105: #{custom-call.11} parent=102 // loop_header
                  %s510 = sphi 0, %s514
                  %p511 = scmp.ge.s32.totalorder %s510, 1
                  %s515 = sphi %s443, %s443
                  %s516 = sphi %s488, %s488
                $region106: #{custom-call.11} parent=102 // loop_header_branch
                  %513 = sbr.rel (%p511) target = $region110
                $region107: #{custom-call.11} parent=102 // loop_body
                  %v517 = vld [vmem:[%s515] sm:$0xf]
                  %518 = vst [vmem:[%s516] sm:$0xf] %v517
                $region108: #{custom-call.11} parent=102 // loop_footer
                  %s514 = sadd.s32 1, %s510
                $region109: #{custom-call.11} parent=102 // loop_footer_branch
                  %509 = sbr.rel target = $region105
                $region110: #{custom-call.11} parent=102 // loop_exit
                  _
              $region103: #{custom-call.11} parent=87 // pred_fallthru
                _
            $region88: #{custom-call.11} parent=83 // pred_fallthru
              _
            // Predicated region
            $region89: #{custom-call.11} parent=83 // pred_check
              _
            $region90: #{custom-call.11} parent=83 // pred_check_branch
              %494 = sbr.rel (0) target = $region92
            $region91: #{custom-call.11} parent=83 // pred_region
              loop: start=0, step=1, limit=1
              $region93: #{custom-call.11} parent=91 // loop_pre_header
                _
              $region94: #{custom-call.11} parent=91 // loop_header
                %s497 = sphi 0, %s501
                %p498 = scmp.ge.s32.totalorder %s497, 1
                %s502 = sphi %s443, %s443
                %s503 = sphi %s488, %s488
              $region95: #{custom-call.11} parent=91 // loop_header_branch
                %500 = sbr.rel (%p498) target = $region99
              $region96: #{custom-call.11} parent=91 // loop_body
                %v504 = vld [vmem:[%s502] sm:$0xf]
                %505 = vst [vmem:[%s503] sm:$0xf] %v504
              $region97: #{custom-call.11} parent=91 // loop_footer
                %s501 = sadd.s32 1, %s497
              $region98: #{custom-call.11} parent=91 // loop_footer_branch
                %496 = sbr.rel target = $region94
              $region99: #{custom-call.11} parent=91 // loop_exit
                _
            $region92: #{custom-call.11} parent=83 // pred_fallthru
              _
          $region84: #{custom-call.11} parent=79 // pred_fallthru
            _
          %519 = vnop
        $region80: #{custom-call.11} parent=38 // pred_fallthru
          _
      $region39: #{custom-call.11} parent=5 // pred_fallthru
        _
      %p520 = scmp.le.s32.totalorder 2, %s9
      // Predicated region
      $region111: #{custom-call.11} parent=5 // pred_check
        %p521 = pneg %p520
      $region112: #{custom-call.11} parent=5 // pred_check_branch
        %523 = sbr.rel (%p521) target = $region114
      $region113: #{custom-call.11} parent=5 // pred_region
        %s524 = ssub.s32 %s9, 2
        %s525 = sand.u32 %s15, 1
        %s526 = sand.u32 %s15, 1
        %s527 = smul.addr %s526, 32
        %s528 = scalar_lea.vmem [#allocation1], %s527
        // Predicated region
        $region115: #{custom-call.11} parent=113 // pred_check
          %p529 = pneg %p40
        $region116: #{custom-call.11} parent=113 // pred_check_branch
          %531 = sbr.rel (%p529) target = $region118
        $region117: #{custom-call.11} parent=113 // pred_region
          %s532 = sand.u32 %s25, 1
          %s533 = scalar_lea.sflag [#allocation4], %s532
          %s534 = sand.u32 %s25, 1
          %s535 = smul.addr %s534, 4
          %s536 = scalar_lea.vmem [#allocation3], %s535
          %537 = dma.done %s533, 64
        $region118: #{custom-call.11} parent=113 // pred_fallthru
          _
        // Predicated region
        $region119: #{custom-call.11} parent=113 // pred_check
          %p538 = pneg %p68
        $region120: #{custom-call.11} parent=113 // pred_check_branch
          %540 = sbr.rel (%p538) target = $region122
        $region121: #{custom-call.11} parent=113 // pred_region
          %s541 = sand.u32 %s53, 1
          %s542 = sand.u32 %s53, 1
          %s543 = smul.addr %s542, 4
          %s544 = scalar_lea.vmem [#allocation6], %s543
        $region122: #{custom-call.11} parent=113 // pred_fallthru
          _
      $region114: #{custom-call.11} parent=5 // pred_fallthru
        _
    $region6: #{custom-call.11} parent=1 // loop_footer
      %s13 = sadd.s32 1, %s9
    $region7: #{custom-call.11} parent=1 // loop_footer_branch
      %8 = sbr.rel target = $region3
    $region8: #{custom-call.11} parent=1 // loop_exit
      _
    %545 = vsyncpa [#allocation4], 1
    %s546 = scalar_lea.sflag [#allocation4], 1
    %547 = vsyncpa %s546, 1

// kernel: custom-call.13
$region0: #{custom-call.13}
  %s0 = inlined_call_operand.vmem [shape: f32[4,1,32,32], index: 0, kind: input, shape index: {}]
  %s1 = inlined_call_operand.vmem [shape: f32[4,1,32,32], index: 1, kind: output, shape index: {}]
  $region1: #{custom-call.13} parent=0
    #allocation0 [shape = 'u8[32768]{0}', space=vmem, size = 0x8000, scoped, tag = 'operand span for operand 0']
    #allocation1 [shape = 'u8[32768]{0}', space=vmem, size = 0x8000, scoped, tag = 'operand span for operand 1']
    loop: start=0, step=1, limit=6
    $region2: #{custom-call.13} parent=1 // loop_pre_header
      _
    $region3: #{custom-call.13} parent=1 // loop_header
      %s3 = sphi 0, %s7
      %p4 = scmp.ge.s32.totalorder %s3, 6
      %s10 = sphi 0, %s36
      %s11 = sphi 0, %s32
      %s12 = sphi 0, %s28
      %s13 = sphi 0, %s24
      %s14 = sphi 0, %s10
      %s15 = sphi 0, %s11
      %s16 = sphi 0, %s12
      %s17 = sphi 0, %s13
      %s18 = sphi 0, %s14
      %s19 = sphi 0, %s15
      %s20 = sphi 0, %s16
      %s21 = sphi 0, %s17
    $region4: #{custom-call.13} parent=1 // loop_header_branch
      %6 = sbr.rel (%p4) target = $region8
    $region5: #{custom-call.13} parent=1 // loop_body
      %s8 = ssub.s32 %s3, 1
      %s9 = ssub.s32 %s3, 2
      %s22 = sadd.s32 1, %s13
      %p23 = scmp.ge.s32.totalorder %s22, 1
      %s24 = scalar_select %p23, 0, %s22
      %s25 = sadd.s32 1, %s12
      %s26 = scalar_select %p23, %s25, %s12
      %p27 = scmp.ge.s32.totalorder %s26, 1
      %s28 = scalar_select %p27, 0, %s26
      %s29 = sadd.s32 1, %s11
      %s30 = scalar_select %p27, %s29, %s11
      %p31 = scmp.ge.s32.totalorder %s30, 1
      %s32 = scalar_select %p31, 0, %s30
      %s33 = sadd.s32 1, %s10
      %s34 = scalar_select %p31, %s33, %s10
      %p35 = scmp.ge.s32.totalorder %s34, 4
      %s36 = scalar_select %p35, 0, %s34
      %p37 = scmp.le.s32.totalorder 1, %s3
      %p38 = scmp.lt.s32.totalorder %s3, 5
      %p39 = pnand %p37, %p38
      %p40 = pneg %p39
      // Predicated region
      $region9: #{custom-call.13} parent=5 // pred_check
        _
      $region10: #{custom-call.13} parent=5 // pred_check_branch
        %42 = sbr.rel (%p39) target = $region12
      $region11: #{custom-call.13} parent=5 // pred_region
        %s43 = ssub.s32 %s3, 1
      $region12: #{custom-call.13} parent=5 // pred_fallthru
        _
      %p44 = scmp.lt.s32.totalorder %s3, 4
      // Predicated region
      $region13: #{custom-call.13} parent=5 // pred_check
        %p45 = pneg %p44
      $region14: #{custom-call.13} parent=5 // pred_check_branch
        %47 = sbr.rel (%p45) target = $region16
      $region15: #{custom-call.13} parent=5 // pred_region
        %s48 = sand.u32 %s3, 1
        %s49 = sand.u32 %s3, 1
        %s50 = smul.addr %s49, 32
        %s51 = scalar_lea.vmem [#allocation0], %s50
        %s52 = sadd.s32 %s13, %s12
        %s53 = smul.addr %s11, 4
        %s54 = sadd.s32 %s52, %s53
        %s55 = smul.addr %s10, 4
        %s56 = sadd.s32 %s54, %s55
        %s57 = smul.addr %s56, 8
        %s58 = scalar_lea.vmem %s0, %s57
        // Predicated region
        $region17: #{custom-call.13} parent=15 // pred_check
          _
        $region18: #{custom-call.13} parent=15 // pred_check_branch
          %60 = sbr.rel (0) target = $region20
        $region19: #{custom-call.13} parent=15 // pred_region
          // Predicated region
          $region21: #{custom-call.13} parent=19 // pred_check
            _
          $region22: #{custom-call.13} parent=19 // pred_check_branch
            %62 = sbr.rel (0) target = $region24
          $region23: #{custom-call.13} parent=19 // pred_region
            // Predicated region
            $region36: #{custom-call.13} parent=23 // pred_check
              _
            $region37: #{custom-call.13} parent=23 // pred_check_branch
              %83 = sbr.rel (0) target = $region39
            $region38: #{custom-call.13} parent=23 // pred_region
              loop: start=0, step=1, limit=1
              $region40: #{custom-call.13} parent=38 // loop_pre_header
                _
              $region41: #{custom-call.13} parent=38 // loop_header
                %s85 = sphi 0, %s89
                %p86 = scmp.ge.s32.totalorder %s85, 1
                %s90 = sphi %s58, %s58
                %s91 = sphi %s51, %s51
              $region42: #{custom-call.13} parent=38 // loop_header_branch
                %88 = sbr.rel (%p86) target = $region46
              $region43: #{custom-call.13} parent=38 // loop_body
                %v92 = vld [vmem:[%s90] sm:$0xff]
                %93 = vst [vmem:[%s91] sm:$0xff] %v92
                %v94 = vld [vmem:[%s90 + $0x8] sm:$0xff]
                %95 = vst [vmem:[%s91 + $0x8] sm:$0xff] %v94
                %v96 = vld [vmem:[%s90 + $0x10] sm:$0xff]
                %97 = vst [vmem:[%s91 + $0x10] sm:$0xff] %v96
                %v98 = vld [vmem:[%s90 + $0x18] sm:$0xff]
                %99 = vst [vmem:[%s91 + $0x18] sm:$0xff] %v98
              $region44: #{custom-call.13} parent=38 // loop_footer
                %s89 = sadd.s32 1, %s85
              $region45: #{custom-call.13} parent=38 // loop_footer_branch
                %84 = sbr.rel target = $region41
              $region46: #{custom-call.13} parent=38 // loop_exit
                _
            $region39: #{custom-call.13} parent=23 // pred_fallthru
              _
            // Predicated region
            $region47: #{custom-call.13} parent=23 // pred_check
              _
            $region48: #{custom-call.13} parent=23 // pred_check_branch
              %101 = sbr.rel target = $region50
            $region49: #{custom-call.13} parent=23 // pred_region
              _
            $region50: #{custom-call.13} parent=23 // pred_fallthru
              _
          $region24: #{custom-call.13} parent=19 // pred_fallthru
            _
          // Predicated region
          $region25: #{custom-call.13} parent=19 // pred_check
            _
          $region26: #{custom-call.13} parent=19 // pred_check_branch
            %64 = sbr.rel target = $region28
          $region27: #{custom-call.13} parent=19 // pred_region
            loop: start=0, step=1, limit=1
            $region29: #{custom-call.13} parent=27 // loop_pre_header
              _
            $region30: #{custom-call.13} parent=27 // loop_header
              %s67 = sphi 0, %s71
              %p68 = scmp.ge.s32.totalorder %s67, 1
              %s72 = sphi %s58, %s58
              %s73 = sphi %s51, %s51
            $region31: #{custom-call.13} parent=27 // loop_header_branch
              %70 = sbr.rel (%p68) target = $region35
            $region32: #{custom-call.13} parent=27 // loop_body
              %v74 = vld [vmem:[%s72] sm:$0xff]
              %75 = vst [vmem:[%s73] sm:$0xff] %v74
              %v76 = vld [vmem:[%s72 + $0x8] sm:$0xff]
              %77 = vst [vmem:[%s73 + $0x8] sm:$0xff] %v76
              %v78 = vld [vmem:[%s72 + $0x10] sm:$0xff]
              %79 = vst [vmem:[%s73 + $0x10] sm:$0xff] %v78
              %v80 = vld [vmem:[%s72 + $0x18] sm:$0xff]
              %81 = vst [vmem:[%s73 + $0x18] sm:$0xff] %v80
            $region33: #{custom-call.13} parent=27 // loop_footer
              %s71 = sadd.s32 1, %s67
            $region34: #{custom-call.13} parent=27 // loop_footer_branch
              %66 = sbr.rel target = $region30
            $region35: #{custom-call.13} parent=27 // loop_exit
              _
          $region28: #{custom-call.13} parent=19 // pred_fallthru
            _
        $region20: #{custom-call.13} parent=15 // pred_fallthru
          _
        %102 = vnop
      $region16: #{custom-call.13} parent=5 // pred_fallthru
        _
      %p103 = scmp.le.s32.totalorder 1, %s3
      %p104 = scmp.lt.s32.totalorder %s3, 5
      %p105 = pnand %p103, %p104
      %p106 = pneg %p105
      // Predicated region
      $region51: #{custom-call.13} parent=5 // pred_check
        _
      $region52: #{custom-call.13} parent=5 // pred_check_branch
        %108 = sbr.rel (%p105) target = $region54
      $region53: #{custom-call.13} parent=5 // pred_region
        #allocation2 [shape = 'f32[32,32]{1,0}', space=vmem, size = 0x4000, scoped, tag = 'rescaled input a']
        %s109 = ssub.s32 %s3, 1
        %s110 = sand.u32 %s8, 1
        %s111 = sand.u32 %s8, 1
        %s112 = smul.addr %s111, 32
        %s113 = scalar_lea.vmem [#allocation0], %s112
        %s114 = sand.u32 %s8, 1
        %s115 = sand.u32 %s8, 1
        %s116 = smul.addr %s115, 32
        %s117 = scalar_lea.vmem [#allocation0], %s116
        %s118 = sand.u32 %s8, 1
        %s119 = sand.u32 %s8, 1
        %s120 = smul.addr %s119, 32
        %s121 = scalar_lea.vmem [#allocation1], %s120
        %v122 = vlaneseq
        %v123 = vand.u32 %v122, 127
        %vm124 = vcmp.lt.s32.totalorder %v123, 32
        %v125 = vlaneseq
        %v126 = vshrl.u32 %v125, 7
        %vm128 = vcmp.eq.s32.totalorder %v126, %v123
        %v129 = vld [vmem:[%s113] sm:$0xff]
        %v130 = vsel %vm128, %v129, 0.0
        %131 = vadd.xlane.f32.xlu0 %v130
        %v132 = vpop.xlane.xlu0 %131
        %vm133 = vcmp.ge.s32.totalorder %v126, %v123
        %vm134 = vmand %vm133, %vm124
        %v135 = vsel %vm134, %v129, 0.0
        %v136 = vrcp.pop %v132
        %v137 = vmul.f32 %v135, %v136
        %138 = vst [vmem:[#allocation2] sm:$0xff] %v137
        %s139 = scalar_lea.vmem %s113, 8 [#allocation0]
        %s140 = scalar_lea.vmem [#allocation2], 8
        %v141 = vlaneseq
        %v142 = vshrl.u32 %v141, 7
        %v143 = vadd.s32 %v142, 8
        %vm144 = vcmp.eq.s32.totalorder %v143, %v123
        %v145 = vld [vmem:[%s139] sm:$0xff]
        %v146 = vsel %vm144, %v145, 0.0
        %147 = vadd.xlane.f32.xlu0 %v146
        %v148 = vpop.xlane.xlu0 %147
        %vm149 = vcmp.ge.s32.totalorder %v143, %v123
        %vm150 = vmand %vm149, %vm124
        %v151 = vsel %vm150, %v145, 0.0
        %v152 = vrcp.pop %v148
        %v153 = vmul.f32 %v151, %v152
        %154 = vst [vmem:[%s140] sm:$0xff] %v153
        %s155 = scalar_lea.vmem %s113, 16 [#allocation0]
        %s156 = scalar_lea.vmem [#allocation2], 16
        %v157 = vlaneseq
        %v158 = vshrl.u32 %v157, 7
        %v159 = vadd.s32 %v158, 16
        %vm160 = vcmp.eq.s32.totalorder %v159, %v123
        %v161 = vld [vmem:[%s155] sm:$0xff]
        %v162 = vsel %vm160, %v161, 0.0
        %163 = vadd.xlane.f32.xlu0 %v162
        %v164 = vpop.xlane.xlu0 %163
        %vm165 = vcmp.ge.s32.totalorder %v159, %v123
        %vm166 = vmand %vm165, %vm124
        %v167 = vsel %vm166, %v161, 0.0
        %v168 = vrcp.pop %v164
        %v169 = vmul.f32 %v167, %v168
        %170 = vst [vmem:[%s156] sm:$0xff] %v169
        %s171 = scalar_lea.vmem %s113, 24 [#allocation0]
        %s172 = scalar_lea.vmem [#allocation2], 24
        %v173 = vlaneseq
        %v174 = vshrl.u32 %v173, 7
        %v175 = vadd.s32 %v174, 24
        %vm176 = vcmp.eq.s32.totalorder %v175, %v123
        %v177 = vld [vmem:[%s171] sm:$0xff]
        %v178 = vsel %vm176, %v177, 0.0
        %179 = vadd.xlane.f32.xlu0 %v178
        %v180 = vpop.xlane.xlu0 %179
        %vm181 = vcmp.ge.s32.totalorder %v175, %v123
        %vm182 = vmand %vm181, %vm124
        %v183 = vsel %vm182, %v177, 0.0
        %v184 = vrcp.pop %v180
        %v185 = vmul.f32 %v183, %v184
        %186 = vst [vmem:[%s172] sm:$0xff] %v185
        %v187 = vlaneseq
        %v188 = vand.u32 %v187, 127
        %v189 = vlaneseq
        %v190 = vshrl.u32 %v189, 7
        %vm192 = vcmp.eq.s32.totalorder %v188, %v190
        %v193 = vlaneseq
        %v194 = vand.u32 %v193, 127
        %vm195 = vcmp.eq.s32.totalorder %v194, 0
        %v196 = vsel %vm195, 1.0, -1.0
        %v197 = vsel %vm192, %v196, 0.0
        %v198 = vlaneseq
        %v199 = vand.u32 %v198, 127
        %v200 = vlaneseq
        %v201 = vshrl.u32 %v200, 7
        %v202 = vadd.s32 %v201, 8
        %vm203 = vcmp.eq.s32.totalorder %v199, %v202
        %v204 = vsel %vm203, -1.0, 0.0
        %v205 = vlaneseq
        %v206 = vand.u32 %v205, 127
        %v207 = vlaneseq
        %v208 = vshrl.u32 %v207, 7
        %v209 = vadd.s32 %v208, 16
        %vm210 = vcmp.eq.s32.totalorder %v206, %v209
        %v211 = vsel %vm210, -1.0, 0.0
        %v212 = vlaneseq
        %v213 = vand.u32 %v212, 127
        %v214 = vlaneseq
        %v215 = vshrl.u32 %v214, 7
        %v216 = vadd.s32 %v215, 24
        %vm217 = vcmp.eq.s32.totalorder %v213, %v216
        %v218 = vsel %vm217, -1.0, 0.0
        %s219 = scalar_lea.vmem [#allocation2], 1
        %v220 = vld [vmem:[%s219] ss:$0 sm:$0xff]
        %v221 = vxor.u32 %v220, 2147483648
        %v222 = vlaneseq
        %v223 = vand.u32 %v222, 127
        %vm224 = vcmp.eq.s32.totalorder %v223, 1
        %v225 = vmul.f32 %v221, %v197
        %226 = vadd.xlane.f32.xlu0 %v225
        %v227 = vpop.xlane.xlu0 %226
        %v228 = vsel %vm224, %v227, %v197
        %s229 = scalar_lea.vmem [#allocation2], 2
        %v230 = vld [vmem:[%s229] ss:$0 sm:$0xff]
        %v231 = vxor.u32 %v230, 2147483648
        %v232 = vlaneseq
        %v233 = vand.u32 %v232, 127
        %vm234 = vcmp.eq.s32.totalorder %v233, 2
        %v235 = vmul.f32 %v231, %v228
        %236 = vadd.xlane.f32.xlu0 %v235
        %v237 = vpop.xlane.xlu0 %236
        %v238 = vsel %vm234, %v237, %v228
        %s239 = scalar_lea.vmem [#allocation2], 3
        %v240 = vld [vmem:[%s239] ss:$0 sm:$0xff]
        %v241 = vxor.u32 %v240, 2147483648
        %v242 = vlaneseq
        %v243 = vand.u32 %v242, 127
        %vm244 = vcmp.eq.s32.totalorder %v243, 3
        %v245 = vmul.f32 %v241, %v238
        %246 = vadd.xlane.f32.xlu0 %v245
        %v247 = vpop.xlane.xlu0 %246
        %v248 = vsel %vm244, %v247, %v238
        %s249 = scalar_lea.vmem [#allocation2], 4
        %v250 = vld [vmem:[%s249] ss:$0 sm:$0xff]
        %v251 = vxor.u32 %v250, 2147483648
        %v252 = vlaneseq
        %v253 = vand.u32 %v252, 127
        %vm254 = vcmp.eq.s32.totalorder %v253, 4
        %v255 = vmul.f32 %v251, %v248
        %256 = vadd.xlane.f32.xlu0 %v255
        %v257 = vpop.xlane.xlu0 %256
        %v258 = vsel %vm254, %v257, %v248
        %s259 = scalar_lea.vmem [#allocation2], 5
        %v260 = vld [vmem:[%s259] ss:$0 sm:$0xff]
        %v261 = vxor.u32 %v260, 2147483648
        %v262 = vlaneseq
        %v263 = vand.u32 %v262, 127
        %vm264 = vcmp.eq.s32.totalorder %v263, 5
        %v265 = vmul.f32 %v261, %v258
        %266 = vadd.xlane.f32.xlu0 %v265
        %v267 = vpop.xlane.xlu0 %266
        %v268 = vsel %vm264, %v267, %v258
        %s269 = scalar_lea.vmem [#allocation2], 6
        %v270 = vld [vmem:[%s269] ss:$0 sm:$0xff]
        %v271 = vxor.u32 %v270, 2147483648
        %v272 = vlaneseq
        %v273 = vand.u32 %v272, 127
        %vm274 = vcmp.eq.s32.totalorder %v273, 6
        %v275 = vmul.f32 %v271, %v268
        %276 = vadd.xlane.f32.xlu0 %v275
        %v277 = vpop.xlane.xlu0 %276
        %v278 = vsel %vm274, %v277, %v268
        %s279 = scalar_lea.vmem [#allocation2], 7
        %v280 = vld [vmem:[%s279] ss:$0 sm:$0xff]
        %v281 = vxor.u32 %v280, 2147483648
        %v282 = vlaneseq
        %v283 = vand.u32 %v282, 127
        %vm284 = vcmp.eq.s32.totalorder %v283, 7
        %v285 = vmul.f32 %v281, %v278
        %286 = vadd.xlane.f32.xlu0 %v285
        %v287 = vpop.xlane.xlu0 %286
        %v288 = vsel %vm284, %v287, %v278
        %s289 = scalar_lea.vmem [#allocation2], 8
        %v290 = vld [vmem:[%s289] ss:$0 sm:$0xff]
        %v291 = vxor.u32 %v290, 2147483648
        %v292 = vlaneseq
        %v293 = vand.u32 %v292, 127
        %vm294 = vcmp.eq.s32.totalorder %v293, 8
        %v295 = vmul.f32 %v291, %v288
        %296 = vadd.xlane.f32.xlu0 %v295
        %v297 = vpop.xlane.xlu0 %296
        %v298 = vsel %vm294, %v297, %v288
        %v299 = vmul.f32 %v291, %v204
        %300 = vadd.xlane.f32.xlu0 %v299
        %v301 = vpop.xlane.xlu0 %300
        %v302 = vsel %vm294, %v301, %v204
        %s303 = scalar_lea.vmem [#allocation2], 9
        %v304 = vld [vmem:[%s303] ss:$0 sm:$0xff]
        %v305 = vxor.u32 %v304, 2147483648
        %v306 = vlaneseq
        %v307 = vand.u32 %v306, 127
        %vm308 = vcmp.eq.s32.totalorder %v307, 9
        %v309 = vmul.f32 %v305, %v298
        %310 = vadd.xlane.f32.xlu0 %v309
        %v311 = vpop.xlane.xlu0 %310
        %v312 = vsel %vm308, %v311, %v298
        %v313 = vmul.f32 %v305, %v302
        %314 = vadd.xlane.f32.xlu0 %v313
        %v315 = vpop.xlane.xlu0 %314
        %v316 = vsel %vm308, %v315, %v302
        %s317 = scalar_lea.vmem [#allocation2], 10
        %v318 = vld [vmem:[%s317] ss:$0 sm:$0xff]
        %v319 = vxor.u32 %v318, 2147483648
        %v320 = vlaneseq
        %v321 = vand.u32 %v320, 127
        %vm322 = vcmp.eq.s32.totalorder %v321, 10
        %v323 = vmul.f32 %v319, %v312
        %324 = vadd.xlane.f32.xlu0 %v323
        %v325 = vpop.xlane.xlu0 %324
        %v326 = vsel %vm322, %v325, %v312
        %v327 = vmul.f32 %v319, %v316
        %328 = vadd.xlane.f32.xlu0 %v327
        %v329 = vpop.xlane.xlu0 %328
        %v330 = vsel %vm322, %v329, %v316
        %s331 = scalar_lea.vmem [#allocation2], 11
        %v332 = vld [vmem:[%s331] ss:$0 sm:$0xff]
        %v333 = vxor.u32 %v332, 2147483648
        %v334 = vlaneseq
        %v335 = vand.u32 %v334, 127
        %vm336 = vcmp.eq.s32.totalorder %v335, 11
        %v337 = vmul.f32 %v333, %v326
        %338 = vadd.xlane.f32.xlu0 %v337
        %v339 = vpop.xlane.xlu0 %338
        %v340 = vsel %vm336, %v339, %v326
        %v341 = vmul.f32 %v333, %v330
        %342 = vadd.xlane.f32.xlu0 %v341
        %v343 = vpop.xlane.xlu0 %342
        %v344 = vsel %vm336, %v343, %v330
        %s345 = scalar_lea.vmem [#allocation2], 12
        %v346 = vld [vmem:[%s345] ss:$0 sm:$0xff]
        %v347 = vxor.u32 %v346, 2147483648
        %v348 = vlaneseq
        %v349 = vand.u32 %v348, 127
        %vm350 = vcmp.eq.s32.totalorder %v349, 12
        %v351 = vmul.f32 %v347, %v340
        %352 = vadd.xlane.f32.xlu0 %v351
        %v353 = vpop.xlane.xlu0 %352
        %v354 = vsel %vm350, %v353, %v340
        %v355 = vmul.f32 %v347, %v344
        %356 = vadd.xlane.f32.xlu0 %v355
        %v357 = vpop.xlane.xlu0 %356
        %v358 = vsel %vm350, %v357, %v344
        %s359 = scalar_lea.vmem [#allocation2], 13
        %v360 = vld [vmem:[%s359] ss:$0 sm:$0xff]
        %v361 = vxor.u32 %v360, 2147483648
        %v362 = vlaneseq
        %v363 = vand.u32 %v362, 127
        %vm364 = vcmp.eq.s32.totalorder %v363, 13
        %v365 = vmul.f32 %v361, %v354
        %366 = vadd.xlane.f32.xlu0 %v365
        %v367 = vpop.xlane.xlu0 %366
        %v368 = vsel %vm364, %v367, %v354
        %v369 = vmul.f32 %v361, %v358
        %370 = vadd.xlane.f32.xlu0 %v369
        %v371 = vpop.xlane.xlu0 %370
        %v372 = vsel %vm364, %v371, %v358
        %s373 = scalar_lea.vmem [#allocation2], 14
        %v374 = vld [vmem:[%s373] ss:$0 sm:$0xff]
        %v375 = vxor.u32 %v374, 2147483648
        %v376 = vlaneseq
        %v377 = vand.u32 %v376, 127
        %vm378 = vcmp.eq.s32.totalorder %v377, 14
        %v379 = vmul.f32 %v375, %v368
        %380 = vadd.xlane.f32.xlu0 %v379
        %v381 = vpop.xlane.xlu0 %380
        %v382 = vsel %vm378, %v381, %v368
        %v383 = vmul.f32 %v375, %v372
        %384 = vadd.xlane.f32.xlu0 %v383
        %v385 = vpop.xlane.xlu0 %384
        %v386 = vsel %vm378, %v385, %v372
        %s387 = scalar_lea.vmem [#allocation2], 15
        %v388 = vld [vmem:[%s387] ss:$0 sm:$0xff]
        %v389 = vxor.u32 %v388, 2147483648
        %v390 = vlaneseq
        %v391 = vand.u32 %v390, 127
        %vm392 = vcmp.eq.s32.totalorder %v391, 15
        %v393 = vmul.f32 %v389, %v382
        %394 = vadd.xlane.f32.xlu0 %v393
        %v395 = vpop.xlane.xlu0 %394
        %v396 = vsel %vm392, %v395, %v382
        %v397 = vmul.f32 %v389, %v386
        %398 = vadd.xlane.f32.xlu0 %v397
        %v399 = vpop.xlane.xlu0 %398
        %v400 = vsel %vm392, %v399, %v386
        %s401 = scalar_lea.vmem [#allocation2], 16
        %v402 = vld [vmem:[%s401] ss:$0 sm:$0xff]
        %v403 = vxor.u32 %v402, 2147483648
        %v404 = vlaneseq
        %v405 = vand.u32 %v404, 127
        %vm406 = vcmp.eq.s32.totalorder %v405, 16
        %v407 = vmul.f32 %v403, %v396
        %408 = vadd.xlane.f32.xlu0 %v407
        %v409 = vpop.xlane.xlu0 %408
        %v410 = vsel %vm406, %v409, %v396
        %v411 = vmul.f32 %v403, %v400
        %412 = vadd.xlane.f32.xlu0 %v411
        %v413 = vpop.xlane.xlu0 %412
        %v414 = vsel %vm406, %v413, %v400
        %v415 = vmul.f32 %v403, %v211
        %416 = vadd.xlane.f32.xlu0 %v415
        %v417 = vpop.xlane.xlu0 %416
        %v418 = vsel %vm406, %v417, %v211
        %s419 = scalar_lea.vmem [#allocation2], 17
        %v420 = vld [vmem:[%s419] ss:$0 sm:$0xff]
        %v421 = vxor.u32 %v420, 2147483648
        %v422 = vlaneseq
        %v423 = vand.u32 %v422, 127
        %vm424 = vcmp.eq.s32.totalorder %v423, 17
        %v425 = vmul.f32 %v421, %v410
        %426 = vadd.xlane.f32.xlu0 %v425
        %v427 = vpop.xlane.xlu0 %426
        %v428 = vsel %vm424, %v427, %v410
        %v429 = vmul.f32 %v421, %v414
        %430 = vadd.xlane.f32.xlu0 %v429
        %v431 = vpop.xlane.xlu0 %430
        %v432 = vsel %vm424, %v431, %v414
        %v433 = vmul.f32 %v421, %v418
        %434 = vadd.xlane.f32.xlu0 %v433
        %v435 = vpop.xlane.xlu0 %434
        %v436 = vsel %vm424, %v435, %v418
        %s437 = scalar_lea.vmem [#allocation2], 18
        %v438 = vld [vmem:[%s437] ss:$0 sm:$0xff]
        %v439 = vxor.u32 %v438, 2147483648
        %v440 = vlaneseq
        %v441 = vand.u32 %v440, 127
        %vm442 = vcmp.eq.s32.totalorder %v441, 18
        %v443 = vmul.f32 %v439, %v428
        %444 = vadd.xlane.f32.xlu0 %v443
        %v445 = vpop.xlane.xlu0 %444
        %v446 = vsel %vm442, %v445, %v428
        %v447 = vmul.f32 %v439, %v432
        %448 = vadd.xlane.f32.xlu0 %v447
        %v449 = vpop.xlane.xlu0 %448
        %v450 = vsel %vm442, %v449, %v432
        %v451 = vmul.f32 %v439, %v436
        %452 = vadd.xlane.f32.xlu0 %v451
        %v453 = vpop.xlane.xlu0 %452
        %v454 = vsel %vm442, %v453, %v436
        %s455 = scalar_lea.vmem [#allocation2], 19
        %v456 = vld [vmem:[%s455] ss:$0 sm:$0xff]
        %v457 = vxor.u32 %v456, 2147483648
        %v458 = vlaneseq
        %v459 = vand.u32 %v458, 127
        %vm460 = vcmp.eq.s32.totalorder %v459, 19
        %v461 = vmul.f32 %v457, %v446
        %462 = vadd.xlane.f32.xlu0 %v461
        %v463 = vpop.xlane.xlu0 %462
        %v464 = vsel %vm460, %v463, %v446
        %v465 = vmul.f32 %v457, %v450
        %466 = vadd.xlane.f32.xlu0 %v465
        %v467 = vpop.xlane.xlu0 %466
        %v468 = vsel %vm460, %v467, %v450
        %v469 = vmul.f32 %v457, %v454
        %470 = vadd.xlane.f32.xlu0 %v469
        %v471 = vpop.xlane.xlu0 %470
        %v472 = vsel %vm460, %v471, %v454
        %s473 = scalar_lea.vmem [#allocation2], 20
        %v474 = vld [vmem:[%s473] ss:$0 sm:$0xff]
        %v475 = vxor.u32 %v474, 2147483648
        %v476 = vlaneseq
        %v477 = vand.u32 %v476, 127
        %vm478 = vcmp.eq.s32.totalorder %v477, 20
        %v479 = vmul.f32 %v475, %v464
        %480 = vadd.xlane.f32.xlu0 %v479
        %v481 = vpop.xlane.xlu0 %480
        %v482 = vsel %vm478, %v481, %v464
        %v483 = vmul.f32 %v475, %v468
        %484 = vadd.xlane.f32.xlu0 %v483
        %v485 = vpop.xlane.xlu0 %484
        %v486 = vsel %vm478, %v485, %v468
        %v487 = vmul.f32 %v475, %v472
        %488 = vadd.xlane.f32.xlu0 %v487
        %v489 = vpop.xlane.xlu0 %488
        %v490 = vsel %vm478, %v489, %v472
        %s491 = scalar_lea.vmem [#allocation2], 21
        %v492 = vld [vmem:[%s491] ss:$0 sm:$0xff]
        %v493 = vxor.u32 %v492, 2147483648
        %v494 = vlaneseq
        %v495 = vand.u32 %v494, 127
        %vm496 = vcmp.eq.s32.totalorder %v495, 21
        %v497 = vmul.f32 %v493, %v482
        %498 = vadd.xlane.f32.xlu0 %v497
        %v499 = vpop.xlane.xlu0 %498
        %v500 = vsel %vm496, %v499, %v482
        %v501 = vmul.f32 %v493, %v486
        %502 = vadd.xlane.f32.xlu0 %v501
        %v503 = vpop.xlane.xlu0 %502
        %v504 = vsel %vm496, %v503, %v486
        %v505 = vmul.f32 %v493, %v490
        %506 = vadd.xlane.f32.xlu0 %v505
        %v507 = vpop.xlane.xlu0 %506
        %v508 = vsel %vm496, %v507, %v490
        %s509 = scalar_lea.vmem [#allocation2], 22
        %v510 = vld [vmem:[%s509] ss:$0 sm:$0xff]
        %v511 = vxor.u32 %v510, 2147483648
        %v512 = vlaneseq
        %v513 = vand.u32 %v512, 127
        %vm514 = vcmp.eq.s32.totalorder %v513, 22
        %v515 = vmul.f32 %v511, %v500
        %516 = vadd.xlane.f32.xlu0 %v515
        %v517 = vpop.xlane.xlu0 %516
        %v518 = vsel %vm514, %v517, %v500
        %v519 = vmul.f32 %v511, %v504
        %520 = vadd.xlane.f32.xlu0 %v519
        %v521 = vpop.xlane.xlu0 %520
        %v522 = vsel %vm514, %v521, %v504
        %v523 = vmul.f32 %v511, %v508
        %524 = vadd.xlane.f32.xlu0 %v523
        %v525 = vpop.xlane.xlu0 %524
        %v526 = vsel %vm514, %v525, %v508
        %s527 = scalar_lea.vmem [#allocation2], 23
        %v528 = vld [vmem:[%s527] ss:$0 sm:$0xff]
        %v529 = vxor.u32 %v528, 2147483648
        %v530 = vlaneseq
        %v531 = vand.u32 %v530, 127
        %vm532 = vcmp.eq.s32.totalorder %v531, 23
        %v533 = vmul.f32 %v529, %v518
        %534 = vadd.xlane.f32.xlu0 %v533
        %v535 = vpop.xlane.xlu0 %534
        %v536 = vsel %vm532, %v535, %v518
        %v537 = vmul.f32 %v529, %v522
        %538 = vadd.xlane.f32.xlu0 %v537
        %v539 = vpop.xlane.xlu0 %538
        %v540 = vsel %vm532, %v539, %v522
        %v541 = vmul.f32 %v529, %v526
        %542 = vadd.xlane.f32.xlu0 %v541
        %v543 = vpop.xlane.xlu0 %542
        %v544 = vsel %vm532, %v543, %v526
        %s545 = scalar_lea.vmem [#allocation2], 24
        %v546 = vld [vmem:[%s545] ss:$0 sm:$0xff]
        %v547 = vxor.u32 %v546, 2147483648
        %v548 = vlaneseq
        %v549 = vand.u32 %v548, 127
        %vm550 = vcmp.eq.s32.totalorder %v549, 24
        %v551 = vmul.f32 %v547, %v536
        %552 = vadd.xlane.f32.xlu0 %v551
        %v553 = vpop.xlane.xlu0 %552
        %v554 = vsel %vm550, %v553, %v536
        %v555 = vmul.f32 %v547, %v540
        %556 = vadd.xlane.f32.xlu0 %v555
        %v557 = vpop.xlane.xlu0 %556
        %v558 = vsel %vm550, %v557, %v540
        %v559 = vmul.f32 %v547, %v544
        %560 = vadd.xlane.f32.xlu0 %v559
        %v561 = vpop.xlane.xlu0 %560
        %v562 = vsel %vm550, %v561, %v544
        %v563 = vmul.f32 %v547, %v218
        %564 = vadd.xlane.f32.xlu0 %v563
        %v565 = vpop.xlane.xlu0 %564
        %v566 = vsel %vm550, %v565, %v218
        %s567 = scalar_lea.vmem [#allocation2], 25
        %v568 = vld [vmem:[%s567] ss:$0 sm:$0xff]
        %v569 = vxor.u32 %v568, 2147483648
        %v570 = vlaneseq
        %v571 = vand.u32 %v570, 127
        %vm572 = vcmp.eq.s32.totalorder %v571, 25
        %v573 = vmul.f32 %v569, %v554
        %574 = vadd.xlane.f32.xlu0 %v573
        %v575 = vpop.xlane.xlu0 %574
        %v576 = vsel %vm572, %v575, %v554
        %v577 = vmul.f32 %v569, %v558
        %578 = vadd.xlane.f32.xlu0 %v577
        %v579 = vpop.xlane.xlu0 %578
        %v580 = vsel %vm572, %v579, %v558
        %v581 = vmul.f32 %v569, %v562
        %582 = vadd.xlane.f32.xlu0 %v581
        %v583 = vpop.xlane.xlu0 %582
        %v584 = vsel %vm572, %v583, %v562
        %v585 = vmul.f32 %v569, %v566
        %586 = vadd.xlane.f32.xlu0 %v585
        %v587 = vpop.xlane.xlu0 %586
        %v588 = vsel %vm572, %v587, %v566
        %s589 = scalar_lea.vmem [#allocation2], 26
        %v590 = vld [vmem:[%s589] ss:$0 sm:$0xff]
        %v591 = vxor.u32 %v590, 2147483648
        %v592 = vlaneseq
        %v593 = vand.u32 %v592, 127
        %vm594 = vcmp.eq.s32.totalorder %v593, 26
        %v595 = vmul.f32 %v591, %v576
        %596 = vadd.xlane.f32.xlu0 %v595
        %v597 = vpop.xlane.xlu0 %596
        %v598 = vsel %vm594, %v597, %v576
        %v599 = vmul.f32 %v591, %v580
        %600 = vadd.xlane.f32.xlu0 %v599
        %v601 = vpop.xlane.xlu0 %600
        %v602 = vsel %vm594, %v601, %v580
        %v603 = vmul.f32 %v591, %v584
        %604 = vadd.xlane.f32.xlu0 %v603
        %v605 = vpop.xlane.xlu0 %604
        %v606 = vsel %vm594, %v605, %v584
        %v607 = vmul.f32 %v591, %v588
        %608 = vadd.xlane.f32.xlu0 %v607
        %v609 = vpop.xlane.xlu0 %608
        %v610 = vsel %vm594, %v609, %v588
        %s611 = scalar_lea.vmem [#allocation2], 27
        %v612 = vld [vmem:[%s611] ss:$0 sm:$0xff]
        %v613 = vxor.u32 %v612, 2147483648
        %v614 = vlaneseq
        %v615 = vand.u32 %v614, 127
        %vm616 = vcmp.eq.s32.totalorder %v615, 27
        %v617 = vmul.f32 %v613, %v598
        %618 = vadd.xlane.f32.xlu0 %v617
        %v619 = vpop.xlane.xlu0 %618
        %v620 = vsel %vm616, %v619, %v598
        %v621 = vmul.f32 %v613, %v602
        %622 = vadd.xlane.f32.xlu0 %v621
        %v623 = vpop.xlane.xlu0 %622
        %v624 = vsel %vm616, %v623, %v602
        %v625 = vmul.f32 %v613, %v606
        %626 = vadd.xlane.f32.xlu0 %v625
        %v627 = vpop.xlane.xlu0 %626
        %v628 = vsel %vm616, %v627, %v606
        %v629 = vmul.f32 %v613, %v610
        %630 = vadd.xlane.f32.xlu0 %v629
        %v631 = vpop.xlane.xlu0 %630
        %v632 = vsel %vm616, %v631, %v610
        %s633 = scalar_lea.vmem [#allocation2], 28
        %v634 = vld [vmem:[%s633] ss:$0 sm:$0xff]
        %v635 = vxor.u32 %v634, 2147483648
        %v636 = vlaneseq
        %v637 = vand.u32 %v636, 127
        %vm638 = vcmp.eq.s32.totalorder %v637, 28
        %v639 = vmul.f32 %v635, %v620
        %640 = vadd.xlane.f32.xlu0 %v639
        %v641 = vpop.xlane.xlu0 %640
        %v642 = vsel %vm638, %v641, %v620
        %v643 = vmul.f32 %v635, %v624
        %644 = vadd.xlane.f32.xlu0 %v643
        %v645 = vpop.xlane.xlu0 %644
        %v646 = vsel %vm638, %v645, %v624
        %v647 = vmul.f32 %v635, %v628
        %648 = vadd.xlane.f32.xlu0 %v647
        %v649 = vpop.xlane.xlu0 %648
        %v650 = vsel %vm638, %v649, %v628
        %v651 = vmul.f32 %v635, %v632
        %652 = vadd.xlane.f32.xlu0 %v651
        %v653 = vpop.xlane.xlu0 %652
        %v654 = vsel %vm638, %v653, %v632
        %s655 = scalar_lea.vmem [#allocation2], 29
        %v656 = vld [vmem:[%s655] ss:$0 sm:$0xff]
        %v657 = vxor.u32 %v656, 2147483648
        %v658 = vlaneseq
        %v659 = vand.u32 %v658, 127
        %vm660 = vcmp.eq.s32.totalorder %v659, 29
        %v661 = vmul.f32 %v657, %v642
        %662 = vadd.xlane.f32.xlu0 %v661
        %v663 = vpop.xlane.xlu0 %662
        %v664 = vsel %vm660, %v663, %v642
        %v665 = vmul.f32 %v657, %v646
        %666 = vadd.xlane.f32.xlu0 %v665
        %v667 = vpop.xlane.xlu0 %666
        %v668 = vsel %vm660, %v667, %v646
        %v669 = vmul.f32 %v657, %v650
        %670 = vadd.xlane.f32.xlu0 %v669
        %v671 = vpop.xlane.xlu0 %670
        %v672 = vsel %vm660, %v671, %v650
        %v673 = vmul.f32 %v657, %v654
        %674 = vadd.xlane.f32.xlu0 %v673
        %v675 = vpop.xlane.xlu0 %674
        %v676 = vsel %vm660, %v675, %v654
        %s677 = scalar_lea.vmem [#allocation2], 30
        %v678 = vld [vmem:[%s677] ss:$0 sm:$0xff]
        %v679 = vxor.u32 %v678, 2147483648
        %v680 = vlaneseq
        %v681 = vand.u32 %v680, 127
        %vm682 = vcmp.eq.s32.totalorder %v681, 30
        %v683 = vmul.f32 %v679, %v664
        %684 = vadd.xlane.f32.xlu0 %v683
        %v685 = vpop.xlane.xlu0 %684
        %v686 = vsel %vm682, %v685, %v664
        %v687 = vmul.f32 %v679, %v668
        %688 = vadd.xlane.f32.xlu0 %v687
        %v689 = vpop.xlane.xlu0 %688
        %v690 = vsel %vm682, %v689, %v668
        %v691 = vmul.f32 %v679, %v672
        %692 = vadd.xlane.f32.xlu0 %v691
        %v693 = vpop.xlane.xlu0 %692
        %v694 = vsel %vm682, %v693, %v672
        %v695 = vmul.f32 %v679, %v676
        %696 = vadd.xlane.f32.xlu0 %v695
        %v697 = vpop.xlane.xlu0 %696
        %v698 = vsel %vm682, %v697, %v676
        %s699 = scalar_lea.vmem [#allocation2], 31
        %v700 = vld [vmem:[%s699] ss:$0 sm:$0xff]
        %v701 = vxor.u32 %v700, 2147483648
        %v702 = vlaneseq
        %v703 = vand.u32 %v702, 127
        %vm704 = vcmp.eq.s32.totalorder %v703, 31
        %v705 = vmul.f32 %v701, %v686
        %706 = vadd.xlane.f32.xlu0 %v705
        %v707 = vpop.xlane.xlu0 %706
        %v708 = vsel %vm704, %v707, %v686
        %v709 = vmul.f32 %v701, %v690
        %710 = vadd.xlane.f32.xlu0 %v709
        %v711 = vpop.xlane.xlu0 %710
        %v712 = vsel %vm704, %v711, %v690
        %v713 = vmul.f32 %v701, %v694
        %714 = vadd.xlane.f32.xlu0 %v713
        %v715 = vpop.xlane.xlu0 %714
        %v716 = vsel %vm704, %v715, %v694
        %v717 = vmul.f32 %v701, %v698
        %718 = vadd.xlane.f32.xlu0 %v717
        %v719 = vpop.xlane.xlu0 %718
        %v720 = vsel %vm704, %v719, %v698
        %v721 = vrcp.pop %v132
        %v722 = vmul.f32 %v708, %v721
        %vm723 = vweird.f32 %v132
        %v724 = vsel %vm723, %v708, %v722
        %725 = vst [vmem:[%s121] sm:$0xff] %v724
        %v726 = vrcp.pop %v148
        %v727 = vmul.f32 %v712, %v726
        %vm728 = vweird.f32 %v148
        %v729 = vsel %vm728, %v712, %v727
        %s730 = scalar_lea.vmem %s121, 8 [#allocation1]
        %731 = vst [vmem:[%s730] sm:$0xff] %v729
        %v732 = vrcp.pop %v164
        %v733 = vmul.f32 %v716, %v732
        %vm734 = vweird.f32 %v164
        %v735 = vsel %vm734, %v716, %v733
        %s736 = scalar_lea.vmem %s121, 16 [#allocation1]
        %737 = vst [vmem:[%s736] sm:$0xff] %v735
        %v738 = vrcp.pop %v180
        %v739 = vmul.f32 %v720, %v738
        %vm740 = vweird.f32 %v180
        %v741 = vsel %vm740, %v720, %v739
        %s742 = scalar_lea.vmem %s121, 24 [#allocation1]
        %743 = vst [vmem:[%s742] sm:$0xff] %v741
        %s744 = sand.u32 %s8, 1
        %s745 = sand.u32 %s8, 1
        %s746 = smul.addr %s745, 32
        %s747 = scalar_lea.vmem [#allocation1], %s746
        %s748 = sadd.s32 %s17, %s16
        %s749 = smul.addr %s15, 4
        %s750 = sadd.s32 %s748, %s749
        %s751 = smul.addr %s14, 4
        %s752 = sadd.s32 %s750, %s751
        %s753 = smul.addr %s752, 8
        %s754 = scalar_lea.vmem %s1, %s753
        // Predicated region
        $region55: #{custom-call.13} parent=53 // pred_check
          _
        $region56: #{custom-call.13} parent=53 // pred_check_branch
          %756 = sbr.rel (0) target = $region58
        $region57: #{custom-call.13} parent=53 // pred_region
          // Predicated region
          $region59: #{custom-call.13} parent=57 // pred_check
            _
          $region60: #{custom-call.13} parent=57 // pred_check_branch
            %758 = sbr.rel (0) target = $region62
          $region61: #{custom-call.13} parent=57 // pred_region
            // Predicated region
            $region74: #{custom-call.13} parent=61 // pred_check
              _
            $region75: #{custom-call.13} parent=61 // pred_check_branch
              %779 = sbr.rel (0) target = $region77
            $region76: #{custom-call.13} parent=61 // pred_region
              loop: start=0, step=1, limit=1
              $region78: #{custom-call.13} parent=76 // loop_pre_header
                _
              $region79: #{custom-call.13} parent=76 // loop_header
                %s781 = sphi 0, %s785
                %p782 = scmp.ge.s32.totalorder %s781, 1
                %s786 = sphi %s747, %s747
                %s787 = sphi %s754, %s754
              $region80: #{custom-call.13} parent=76 // loop_header_branch
                %784 = sbr.rel (%p782) target = $region84
              $region81: #{custom-call.13} parent=76 // loop_body
                %v788 = vld [vmem:[%s786] sm:$0xff]
                %789 = vst [vmem:[%s787] sm:$0xff] %v788
                %v790 = vld [vmem:[%s786 + $0x8] sm:$0xff]
                %791 = vst [vmem:[%s787 + $0x8] sm:$0xff] %v790
                %v792 = vld [vmem:[%s786 + $0x10] sm:$0xff]
                %793 = vst [vmem:[%s787 + $0x10] sm:$0xff] %v792
                %v794 = vld [vmem:[%s786 + $0x18] sm:$0xff]
                %795 = vst [vmem:[%s787 + $0x18] sm:$0xff] %v794
              $region82: #{custom-call.13} parent=76 // loop_footer
                %s785 = sadd.s32 1, %s781
              $region83: #{custom-call.13} parent=76 // loop_footer_branch
                %780 = sbr.rel target = $region79
              $region84: #{custom-call.13} parent=76 // loop_exit
                _
            $region77: #{custom-call.13} parent=61 // pred_fallthru
              _
            // Predicated region
            $region85: #{custom-call.13} parent=61 // pred_check
              _
            $region86: #{custom-call.13} parent=61 // pred_check_branch
              %797 = sbr.rel target = $region88
            $region87: #{custom-call.13} parent=61 // pred_region
              _
            $region88: #{custom-call.13} parent=61 // pred_fallthru
              _
          $region62: #{custom-call.13} parent=57 // pred_fallthru
            _
          // Predicated region
          $region63: #{custom-call.13} parent=57 // pred_check
            _
          $region64: #{custom-call.13} parent=57 // pred_check_branch
            %760 = sbr.rel target = $region66
          $region65: #{custom-call.13} parent=57 // pred_region
            loop: start=0, step=1, limit=1
            $region67: #{custom-call.13} parent=65 // loop_pre_header
              _
            $region68: #{custom-call.13} parent=65 // loop_header
              %s763 = sphi 0, %s767
              %p764 = scmp.ge.s32.totalorder %s763, 1
              %s768 = sphi %s747, %s747
              %s769 = sphi %s754, %s754
            $region69: #{custom-call.13} parent=65 // loop_header_branch
              %766 = sbr.rel (%p764) target = $region73
            $region70: #{custom-call.13} parent=65 // loop_body
              %v770 = vld [vmem:[%s768] sm:$0xff]
              %771 = vst [vmem:[%s769] sm:$0xff] %v770
              %v772 = vld [vmem:[%s768 + $0x8] sm:$0xff]
              %773 = vst [vmem:[%s769 + $0x8] sm:$0xff] %v772
              %v774 = vld [vmem:[%s768 + $0x10] sm:$0xff]
              %775 = vst [vmem:[%s769 + $0x10] sm:$0xff] %v774
              %v776 = vld [vmem:[%s768 + $0x18] sm:$0xff]
              %777 = vst [vmem:[%s769 + $0x18] sm:$0xff] %v776
            $region71: #{custom-call.13} parent=65 // loop_footer
              %s767 = sadd.s32 1, %s763
            $region72: #{custom-call.13} parent=65 // loop_footer_branch
              %762 = sbr.rel target = $region68
            $region73: #{custom-call.13} parent=65 // loop_exit
              _
          $region66: #{custom-call.13} parent=57 // pred_fallthru
            _
        $region58: #{custom-call.13} parent=53 // pred_fallthru
          _
        %798 = vnop
      $region54: #{custom-call.13} parent=5 // pred_fallthru
        _
      %p799 = scmp.le.s32.totalorder 2, %s3
      // Predicated region
      $region89: #{custom-call.13} parent=5 // pred_check
        %p800 = pneg %p799
      $region90: #{custom-call.13} parent=5 // pred_check_branch
        %802 = sbr.rel (%p800) target = $region92
      $region91: #{custom-call.13} parent=5 // pred_region
        %s803 = ssub.s32 %s3, 2
        %s804 = sand.u32 %s9, 1
        %s805 = sand.u32 %s9, 1
        %s806 = smul.addr %s805, 32
        %s807 = scalar_lea.vmem [#allocation1], %s806
      $region92: #{custom-call.13} parent=5 // pred_fallthru
        _
    $region6: #{custom-call.13} parent=1 // loop_footer
      %s7 = sadd.s32 1, %s3
    $region7: #{custom-call.13} parent=1 // loop_footer_branch
      %2 = sbr.rel target = $region3
    $region8: #{custom-call.13} parent=1 // loop_exit
      _

// kernel: custom-call.12
$region0: #{custom-call.12}
  %s0 = inlined_call_operand.vmem [shape: f32[4,1,32,32], index: 0, kind: input, shape index: {}]
  %s1 = inlined_call_operand.vmem [shape: f32[4,1,32,32], index: 1, kind: output, shape index: {}]
  $region1: #{custom-call.12} parent=0
    #allocation0 [shape = 'u8[32768]{0}', space=vmem, size = 0x8000, scoped, tag = 'operand span for operand 0']
    #allocation1 [shape = 'u8[32768]{0}', space=vmem, size = 0x8000, scoped, tag = 'operand span for operand 1']
    loop: start=0, step=1, limit=6
    $region2: #{custom-call.12} parent=1 // loop_pre_header
      _
    $region3: #{custom-call.12} parent=1 // loop_header
      %s3 = sphi 0, %s7
      %p4 = scmp.ge.s32.totalorder %s3, 6
      %s10 = sphi 0, %s36
      %s11 = sphi 0, %s32
      %s12 = sphi 0, %s28
      %s13 = sphi 0, %s24
      %s14 = sphi 0, %s10
      %s15 = sphi 0, %s11
      %s16 = sphi 0, %s12
      %s17 = sphi 0, %s13
      %s18 = sphi 0, %s14
      %s19 = sphi 0, %s15
      %s20 = sphi 0, %s16
      %s21 = sphi 0, %s17
    $region4: #{custom-call.12} parent=1 // loop_header_branch
      %6 = sbr.rel (%p4) target = $region8
    $region5: #{custom-call.12} parent=1 // loop_body
      %s8 = ssub.s32 %s3, 1
      %s9 = ssub.s32 %s3, 2
      %s22 = sadd.s32 1, %s13
      %p23 = scmp.ge.s32.totalorder %s22, 1
      %s24 = scalar_select %p23, 0, %s22
      %s25 = sadd.s32 1, %s12
      %s26 = scalar_select %p23, %s25, %s12
      %p27 = scmp.ge.s32.totalorder %s26, 1
      %s28 = scalar_select %p27, 0, %s26
      %s29 = sadd.s32 1, %s11
      %s30 = scalar_select %p27, %s29, %s11
      %p31 = scmp.ge.s32.totalorder %s30, 1
      %s32 = scalar_select %p31, 0, %s30
      %s33 = sadd.s32 1, %s10
      %s34 = scalar_select %p31, %s33, %s10
      %p35 = scmp.ge.s32.totalorder %s34, 4
      %s36 = scalar_select %p35, 0, %s34
      %p37 = scmp.le.s32.totalorder 1, %s3
      %p38 = scmp.lt.s32.totalorder %s3, 5
      %p39 = pnand %p37, %p38
      %p40 = pneg %p39
      // Predicated region
      $region9: #{custom-call.12} parent=5 // pred_check
        _
      $region10: #{custom-call.12} parent=5 // pred_check_branch
        %42 = sbr.rel (%p39) target = $region12
      $region11: #{custom-call.12} parent=5 // pred_region
        %s43 = ssub.s32 %s3, 1
      $region12: #{custom-call.12} parent=5 // pred_fallthru
        _
      %p44 = scmp.lt.s32.totalorder %s3, 4
      // Predicated region
      $region13: #{custom-call.12} parent=5 // pred_check
        %p45 = pneg %p44
      $region14: #{custom-call.12} parent=5 // pred_check_branch
        %47 = sbr.rel (%p45) target = $region16
      $region15: #{custom-call.12} parent=5 // pred_region
        %s48 = sand.u32 %s3, 1
        %s49 = sand.u32 %s3, 1
        %s50 = smul.addr %s49, 32
        %s51 = scalar_lea.vmem [#allocation0], %s50
        %s52 = sadd.s32 %s13, %s12
        %s53 = smul.addr %s11, 4
        %s54 = sadd.s32 %s52, %s53
        %s55 = smul.addr %s10, 4
        %s56 = sadd.s32 %s54, %s55
        %s57 = smul.addr %s56, 8
        %s58 = scalar_lea.vmem %s0, %s57
        // Predicated region
        $region17: #{custom-call.12} parent=15 // pred_check
          _
        $region18: #{custom-call.12} parent=15 // pred_check_branch
          %60 = sbr.rel (0) target = $region20
        $region19: #{custom-call.12} parent=15 // pred_region
          // Predicated region
          $region21: #{custom-call.12} parent=19 // pred_check
            _
          $region22: #{custom-call.12} parent=19 // pred_check_branch
            %62 = sbr.rel (0) target = $region24
          $region23: #{custom-call.12} parent=19 // pred_region
            // Predicated region
            $region36: #{custom-call.12} parent=23 // pred_check
              _
            $region37: #{custom-call.12} parent=23 // pred_check_branch
              %83 = sbr.rel (0) target = $region39
            $region38: #{custom-call.12} parent=23 // pred_region
              loop: start=0, step=1, limit=1
              $region40: #{custom-call.12} parent=38 // loop_pre_header
                _
              $region41: #{custom-call.12} parent=38 // loop_header
                %s85 = sphi 0, %s89
                %p86 = scmp.ge.s32.totalorder %s85, 1
                %s90 = sphi %s58, %s58
                %s91 = sphi %s51, %s51
              $region42: #{custom-call.12} parent=38 // loop_header_branch
                %88 = sbr.rel (%p86) target = $region46
              $region43: #{custom-call.12} parent=38 // loop_body
                %v92 = vld [vmem:[%s90] sm:$0xff]
                %93 = vst [vmem:[%s91] sm:$0xff] %v92
                %v94 = vld [vmem:[%s90 + $0x8] sm:$0xff]
                %95 = vst [vmem:[%s91 + $0x8] sm:$0xff] %v94
                %v96 = vld [vmem:[%s90 + $0x10] sm:$0xff]
                %97 = vst [vmem:[%s91 + $0x10] sm:$0xff] %v96
                %v98 = vld [vmem:[%s90 + $0x18] sm:$0xff]
                %99 = vst [vmem:[%s91 + $0x18] sm:$0xff] %v98
              $region44: #{custom-call.12} parent=38 // loop_footer
                %s89 = sadd.s32 1, %s85
              $region45: #{custom-call.12} parent=38 // loop_footer_branch
                %84 = sbr.rel target = $region41
              $region46: #{custom-call.12} parent=38 // loop_exit
                _
            $region39: #{custom-call.12} parent=23 // pred_fallthru
              _
            // Predicated region
            $region47: #{custom-call.12} parent=23 // pred_check
              _
            $region48: #{custom-call.12} parent=23 // pred_check_branch
              %101 = sbr.rel target = $region50
            $region49: #{custom-call.12} parent=23 // pred_region
              _
            $region50: #{custom-call.12} parent=23 // pred_fallthru
              _
          $region24: #{custom-call.12} parent=19 // pred_fallthru
            _
          // Predicated region
          $region25: #{custom-call.12} parent=19 // pred_check
            _
          $region26: #{custom-call.12} parent=19 // pred_check_branch
            %64 = sbr.rel target = $region28
          $region27: #{custom-call.12} parent=19 // pred_region
            loop: start=0, step=1, limit=1
            $region29: #{custom-call.12} parent=27 // loop_pre_header
              _
            $region30: #{custom-call.12} parent=27 // loop_header
              %s67 = sphi 0, %s71
              %p68 = scmp.ge.s32.totalorder %s67, 1
              %s72 = sphi %s58, %s58
              %s73 = sphi %s51, %s51
            $region31: #{custom-call.12} parent=27 // loop_header_branch
              %70 = sbr.rel (%p68) target = $region35
            $region32: #{custom-call.12} parent=27 // loop_body
              %v74 = vld [vmem:[%s72] sm:$0xff]
              %75 = vst [vmem:[%s73] sm:$0xff] %v74
              %v76 = vld [vmem:[%s72 + $0x8] sm:$0xff]
              %77 = vst [vmem:[%s73 + $0x8] sm:$0xff] %v76
              %v78 = vld [vmem:[%s72 + $0x10] sm:$0xff]
              %79 = vst [vmem:[%s73 + $0x10] sm:$0xff] %v78
              %v80 = vld [vmem:[%s72 + $0x18] sm:$0xff]
              %81 = vst [vmem:[%s73 + $0x18] sm:$0xff] %v80
            $region33: #{custom-call.12} parent=27 // loop_footer
              %s71 = sadd.s32 1, %s67
            $region34: #{custom-call.12} parent=27 // loop_footer_branch
              %66 = sbr.rel target = $region30
            $region35: #{custom-call.12} parent=27 // loop_exit
              _
          $region28: #{custom-call.12} parent=19 // pred_fallthru
            _
        $region20: #{custom-call.12} parent=15 // pred_fallthru
          _
        %102 = vnop
      $region16: #{custom-call.12} parent=5 // pred_fallthru
        _
      %p103 = scmp.le.s32.totalorder 1, %s3
      %p104 = scmp.lt.s32.totalorder %s3, 5
      %p105 = pnand %p103, %p104
      %p106 = pneg %p105
      // Predicated region
      $region51: #{custom-call.12} parent=5 // pred_check
        _
      $region52: #{custom-call.12} parent=5 // pred_check_branch
        %108 = sbr.rel (%p105) target = $region54
      $region53: #{custom-call.12} parent=5 // pred_region
        #allocation2 [shape = 'f32[32,32]{1,0}', space=vmem, size = 0x4000, scoped, tag = 'rescaled input a']
        %s109 = ssub.s32 %s3, 1
        %s110 = sand.u32 %s8, 1
        %s111 = sand.u32 %s8, 1
        %s112 = smul.addr %s111, 32
        %s113 = scalar_lea.vmem [#allocation0], %s112
        %s114 = sand.u32 %s8, 1
        %s115 = sand.u32 %s8, 1
        %s116 = smul.addr %s115, 32
        %s117 = scalar_lea.vmem [#allocation0], %s116
        %s118 = sand.u32 %s8, 1
        %s119 = sand.u32 %s8, 1
        %s120 = smul.addr %s119, 32
        %s121 = scalar_lea.vmem [#allocation1], %s120
        %v122 = vlaneseq
        %v123 = vand.u32 %v122, 127
        %vm124 = vcmp.lt.s32.totalorder %v123, 32
        %v125 = vlaneseq
        %v126 = vshrl.u32 %v125, 7
        %vm128 = vcmp.eq.s32.totalorder %v126, %v123
        %v129 = vld [vmem:[%s113] sm:$0xff]
        %v130 = vsel %vm128, %v129, 0.0
        %131 = vadd.xlane.f32.xlu0 %v130
        %v132 = vpop.xlane.xlu0 %131
        %vm133 = vcmp.le.s32.totalorder %v126, %v123
        %vm134 = vmand %vm133, %vm124
        %v135 = vsel %vm134, %v129, 0.0
        %v136 = vrcp.pop %v132
        %v137 = vmul.f32 %v135, %v136
        %138 = vst [vmem:[#allocation2] sm:$0xff] %v137
        %s139 = scalar_lea.vmem %s113, 8 [#allocation0]
        %s140 = scalar_lea.vmem [#allocation2], 8
        %v141 = vlaneseq
        %v142 = vshrl.u32 %v141, 7
        %v143 = vadd.s32 %v142, 8
        %vm144 = vcmp.eq.s32.totalorder %v143, %v123
        %v145 = vld [vmem:[%s139] sm:$0xff]
        %v146 = vsel %vm144, %v145, 0.0
        %147 = vadd.xlane.f32.xlu0 %v146
        %v148 = vpop.xlane.xlu0 %147
        %vm149 = vcmp.le.s32.totalorder %v143, %v123
        %vm150 = vmand %vm149, %vm124
        %v151 = vsel %vm150, %v145, 0.0
        %v152 = vrcp.pop %v148
        %v153 = vmul.f32 %v151, %v152
        %154 = vst [vmem:[%s140] sm:$0xff] %v153
        %s155 = scalar_lea.vmem %s113, 16 [#allocation0]
        %s156 = scalar_lea.vmem [#allocation2], 16
        %v157 = vlaneseq
        %v158 = vshrl.u32 %v157, 7
        %v159 = vadd.s32 %v158, 16
        %vm160 = vcmp.eq.s32.totalorder %v159, %v123
        %v161 = vld [vmem:[%s155] sm:$0xff]
        %v162 = vsel %vm160, %v161, 0.0
        %163 = vadd.xlane.f32.xlu0 %v162
        %v164 = vpop.xlane.xlu0 %163
        %vm165 = vcmp.le.s32.totalorder %v159, %v123
        %vm166 = vmand %vm165, %vm124
        %v167 = vsel %vm166, %v161, 0.0
        %v168 = vrcp.pop %v164
        %v169 = vmul.f32 %v167, %v168
        %170 = vst [vmem:[%s156] sm:$0xff] %v169
        %s171 = scalar_lea.vmem %s113, 24 [#allocation0]
        %s172 = scalar_lea.vmem [#allocation2], 24
        %v173 = vlaneseq
        %v174 = vshrl.u32 %v173, 7
        %v175 = vadd.s32 %v174, 24
        %vm176 = vcmp.eq.s32.totalorder %v175, %v123
        %v177 = vld [vmem:[%s171] sm:$0xff]
        %v178 = vsel %vm176, %v177, 0.0
        %179 = vadd.xlane.f32.xlu0 %v178
        %v180 = vpop.xlane.xlu0 %179
        %vm181 = vcmp.le.s32.totalorder %v175, %v123
        %vm182 = vmand %vm181, %vm124
        %v183 = vsel %vm182, %v177, 0.0
        %v184 = vrcp.pop %v180
        %v185 = vmul.f32 %v183, %v184
        %186 = vst [vmem:[%s172] sm:$0xff] %v185
        %v187 = vlaneseq
        %v188 = vand.u32 %v187, 127
        %v189 = vlaneseq
        %v190 = vshrl.u32 %v189, 7
        %vm192 = vcmp.eq.s32.totalorder %v188, %v190
        %v193 = vsel %vm192, -1.0, 0.0
        %v194 = vlaneseq
        %v195 = vand.u32 %v194, 127
        %v196 = vlaneseq
        %v197 = vshrl.u32 %v196, 7
        %v198 = vadd.s32 %v197, 8
        %vm199 = vcmp.eq.s32.totalorder %v195, %v198
        %v200 = vsel %vm199, -1.0, 0.0
        %v201 = vlaneseq
        %v202 = vand.u32 %v201, 127
        %v203 = vlaneseq
        %v204 = vshrl.u32 %v203, 7
        %v205 = vadd.s32 %v204, 16
        %vm206 = vcmp.eq.s32.totalorder %v202, %v205
        %v207 = vsel %vm206, -1.0, 0.0
        %v208 = vlaneseq
        %v209 = vand.u32 %v208, 127
        %v210 = vlaneseq
        %v211 = vshrl.u32 %v210, 7
        %v212 = vadd.s32 %v211, 24
        %vm213 = vcmp.eq.s32.totalorder %v209, %v212
        %v214 = vlaneseq
        %v215 = vand.u32 %v214, 127
        %vm216 = vcmp.eq.s32.totalorder %v215, 31
        %v217 = vsel %vm216, 1.0, -1.0
        %v218 = vsel %vm213, %v217, 0.0
        %s219 = scalar_lea.vmem [#allocation2], 30
        %v220 = vld [vmem:[%s219] ss:$0 sm:$0xff]
        %v221 = vxor.u32 %v220, 2147483648
        %v222 = vlaneseq
        %v223 = vand.u32 %v222, 127
        %vm224 = vcmp.eq.s32.totalorder %v223, 30
        %v225 = vmul.f32 %v221, %v218
        %226 = vadd.xlane.f32.xlu0 %v225
        %v227 = vpop.xlane.xlu0 %226
        %v228 = vsel %vm224, %v227, %v218
        %s229 = scalar_lea.vmem [#allocation2], 29
        %v230 = vld [vmem:[%s229] ss:$0 sm:$0xff]
        %v231 = vxor.u32 %v230, 2147483648
        %v232 = vlaneseq
        %v233 = vand.u32 %v232, 127
        %vm234 = vcmp.eq.s32.totalorder %v233, 29
        %v235 = vmul.f32 %v231, %v228
        %236 = vadd.xlane.f32.xlu0 %v235
        %v237 = vpop.xlane.xlu0 %236
        %v238 = vsel %vm234, %v237, %v228
        %s239 = scalar_lea.vmem [#allocation2], 28
        %v240 = vld [vmem:[%s239] ss:$0 sm:$0xff]
        %v241 = vxor.u32 %v240, 2147483648
        %v242 = vlaneseq
        %v243 = vand.u32 %v242, 127
        %vm244 = vcmp.eq.s32.totalorder %v243, 28
        %v245 = vmul.f32 %v241, %v238
        %246 = vadd.xlane.f32.xlu0 %v245
        %v247 = vpop.xlane.xlu0 %246
        %v248 = vsel %vm244, %v247, %v238
        %s249 = scalar_lea.vmem [#allocation2], 27
        %v250 = vld [vmem:[%s249] ss:$0 sm:$0xff]
        %v251 = vxor.u32 %v250, 2147483648
        %v252 = vlaneseq
        %v253 = vand.u32 %v252, 127
        %vm254 = vcmp.eq.s32.totalorder %v253, 27
        %v255 = vmul.f32 %v251, %v248
        %256 = vadd.xlane.f32.xlu0 %v255
        %v257 = vpop.xlane.xlu0 %256
        %v258 = vsel %vm254, %v257, %v248
        %s259 = scalar_lea.vmem [#allocation2], 26
        %v260 = vld [vmem:[%s259] ss:$0 sm:$0xff]
        %v261 = vxor.u32 %v260, 2147483648
        %v262 = vlaneseq
        %v263 = vand.u32 %v262, 127
        %vm264 = vcmp.eq.s32.totalorder %v263, 26
        %v265 = vmul.f32 %v261, %v258
        %266 = vadd.xlane.f32.xlu0 %v265
        %v267 = vpop.xlane.xlu0 %266
        %v268 = vsel %vm264, %v267, %v258
        %s269 = scalar_lea.vmem [#allocation2], 25
        %v270 = vld [vmem:[%s269] ss:$0 sm:$0xff]
        %v271 = vxor.u32 %v270, 2147483648
        %v272 = vlaneseq
        %v273 = vand.u32 %v272, 127
        %vm274 = vcmp.eq.s32.totalorder %v273, 25
        %v275 = vmul.f32 %v271, %v268
        %276 = vadd.xlane.f32.xlu0 %v275
        %v277 = vpop.xlane.xlu0 %276
        %v278 = vsel %vm274, %v277, %v268
        %s279 = scalar_lea.vmem [#allocation2], 24
        %v280 = vld [vmem:[%s279] ss:$0 sm:$0xff]
        %v281 = vxor.u32 %v280, 2147483648
        %v282 = vlaneseq
        %v283 = vand.u32 %v282, 127
        %vm284 = vcmp.eq.s32.totalorder %v283, 24
        %v285 = vmul.f32 %v281, %v278
        %286 = vadd.xlane.f32.xlu0 %v285
        %v287 = vpop.xlane.xlu0 %286
        %v288 = vsel %vm284, %v287, %v278
        %s289 = scalar_lea.vmem [#allocation2], 23
        %v290 = vld [vmem:[%s289] ss:$0 sm:$0xff]
        %v291 = vxor.u32 %v290, 2147483648
        %v292 = vlaneseq
        %v293 = vand.u32 %v292, 127
        %vm294 = vcmp.eq.s32.totalorder %v293, 23
        %v295 = vmul.f32 %v291, %v207
        %296 = vadd.xlane.f32.xlu0 %v295
        %v297 = vpop.xlane.xlu0 %296
        %v298 = vsel %vm294, %v297, %v207
        %v299 = vmul.f32 %v291, %v288
        %300 = vadd.xlane.f32.xlu0 %v299
        %v301 = vpop.xlane.xlu0 %300
        %v302 = vsel %vm294, %v301, %v288
        %s303 = scalar_lea.vmem [#allocation2], 22
        %v304 = vld [vmem:[%s303] ss:$0 sm:$0xff]
        %v305 = vxor.u32 %v304, 2147483648
        %v306 = vlaneseq
        %v307 = vand.u32 %v306, 127
        %vm308 = vcmp.eq.s32.totalorder %v307, 22
        %v309 = vmul.f32 %v305, %v298
        %310 = vadd.xlane.f32.xlu0 %v309
        %v311 = vpop.xlane.xlu0 %310
        %v312 = vsel %vm308, %v311, %v298
        %v313 = vmul.f32 %v305, %v302
        %314 = vadd.xlane.f32.xlu0 %v313
        %v315 = vpop.xlane.xlu0 %314
        %v316 = vsel %vm308, %v315, %v302
        %s317 = scalar_lea.vmem [#allocation2], 21
        %v318 = vld [vmem:[%s317] ss:$0 sm:$0xff]
        %v319 = vxor.u32 %v318, 2147483648
        %v320 = vlaneseq
        %v321 = vand.u32 %v320, 127
        %vm322 = vcmp.eq.s32.totalorder %v321, 21
        %v323 = vmul.f32 %v319, %v312
        %324 = vadd.xlane.f32.xlu0 %v323
        %v325 = vpop.xlane.xlu0 %324
        %v326 = vsel %vm322, %v325, %v312
        %v327 = vmul.f32 %v319, %v316
        %328 = vadd.xlane.f32.xlu0 %v327
        %v329 = vpop.xlane.xlu0 %328
        %v330 = vsel %vm322, %v329, %v316
        %s331 = scalar_lea.vmem [#allocation2], 20
        %v332 = vld [vmem:[%s331] ss:$0 sm:$0xff]
        %v333 = vxor.u32 %v332, 2147483648
        %v334 = vlaneseq
        %v335 = vand.u32 %v334, 127
        %vm336 = vcmp.eq.s32.totalorder %v335, 20
        %v337 = vmul.f32 %v333, %v326
        %338 = vadd.xlane.f32.xlu0 %v337
        %v339 = vpop.xlane.xlu0 %338
        %v340 = vsel %vm336, %v339, %v326
        %v341 = vmul.f32 %v333, %v330
        %342 = vadd.xlane.f32.xlu0 %v341
        %v343 = vpop.xlane.xlu0 %342
        %v344 = vsel %vm336, %v343, %v330
        %s345 = scalar_lea.vmem [#allocation2], 19
        %v346 = vld [vmem:[%s345] ss:$0 sm:$0xff]
        %v347 = vxor.u32 %v346, 2147483648
        %v348 = vlaneseq
        %v349 = vand.u32 %v348, 127
        %vm350 = vcmp.eq.s32.totalorder %v349, 19
        %v351 = vmul.f32 %v347, %v340
        %352 = vadd.xlane.f32.xlu0 %v351
        %v353 = vpop.xlane.xlu0 %352
        %v354 = vsel %vm350, %v353, %v340
        %v355 = vmul.f32 %v347, %v344
        %356 = vadd.xlane.f32.xlu0 %v355
        %v357 = vpop.xlane.xlu0 %356
        %v358 = vsel %vm350, %v357, %v344
        %s359 = scalar_lea.vmem [#allocation2], 18
        %v360 = vld [vmem:[%s359] ss:$0 sm:$0xff]
        %v361 = vxor.u32 %v360, 2147483648
        %v362 = vlaneseq
        %v363 = vand.u32 %v362, 127
        %vm364 = vcmp.eq.s32.totalorder %v363, 18
        %v365 = vmul.f32 %v361, %v354
        %366 = vadd.xlane.f32.xlu0 %v365
        %v367 = vpop.xlane.xlu0 %366
        %v368 = vsel %vm364, %v367, %v354
        %v369 = vmul.f32 %v361, %v358
        %370 = vadd.xlane.f32.xlu0 %v369
        %v371 = vpop.xlane.xlu0 %370
        %v372 = vsel %vm364, %v371, %v358
        %s373 = scalar_lea.vmem [#allocation2], 17
        %v374 = vld [vmem:[%s373] ss:$0 sm:$0xff]
        %v375 = vxor.u32 %v374, 2147483648
        %v376 = vlaneseq
        %v377 = vand.u32 %v376, 127
        %vm378 = vcmp.eq.s32.totalorder %v377, 17
        %v379 = vmul.f32 %v375, %v368
        %380 = vadd.xlane.f32.xlu0 %v379
        %v381 = vpop.xlane.xlu0 %380
        %v382 = vsel %vm378, %v381, %v368
        %v383 = vmul.f32 %v375, %v372
        %384 = vadd.xlane.f32.xlu0 %v383
        %v385 = vpop.xlane.xlu0 %384
        %v386 = vsel %vm378, %v385, %v372
        %s387 = scalar_lea.vmem [#allocation2], 16
        %v388 = vld [vmem:[%s387] ss:$0 sm:$0xff]
        %v389 = vxor.u32 %v388, 2147483648
        %v390 = vlaneseq
        %v391 = vand.u32 %v390, 127
        %vm392 = vcmp.eq.s32.totalorder %v391, 16
        %v393 = vmul.f32 %v389, %v382
        %394 = vadd.xlane.f32.xlu0 %v393
        %v395 = vpop.xlane.xlu0 %394
        %v396 = vsel %vm392, %v395, %v382
        %v397 = vmul.f32 %v389, %v386
        %398 = vadd.xlane.f32.xlu0 %v397
        %v399 = vpop.xlane.xlu0 %398
        %v400 = vsel %vm392, %v399, %v386
        %s401 = scalar_lea.vmem [#allocation2], 15
        %v402 = vld [vmem:[%s401] ss:$0 sm:$0xff]
        %v403 = vxor.u32 %v402, 2147483648
        %v404 = vlaneseq
        %v405 = vand.u32 %v404, 127
        %vm406 = vcmp.eq.s32.totalorder %v405, 15
        %v407 = vmul.f32 %v403, %v200
        %408 = vadd.xlane.f32.xlu0 %v407
        %v409 = vpop.xlane.xlu0 %408
        %v410 = vsel %vm406, %v409, %v200
        %v411 = vmul.f32 %v403, %v396
        %412 = vadd.xlane.f32.xlu0 %v411
        %v413 = vpop.xlane.xlu0 %412
        %v414 = vsel %vm406, %v413, %v396
        %v415 = vmul.f32 %v403, %v400
        %416 = vadd.xlane.f32.xlu0 %v415
        %v417 = vpop.xlane.xlu0 %416
        %v418 = vsel %vm406, %v417, %v400
        %s419 = scalar_lea.vmem [#allocation2], 14
        %v420 = vld [vmem:[%s419] ss:$0 sm:$0xff]
        %v421 = vxor.u32 %v420, 2147483648
        %v422 = vlaneseq
        %v423 = vand.u32 %v422, 127
        %vm424 = vcmp.eq.s32.totalorder %v423, 14
        %v425 = vmul.f32 %v421, %v410
        %426 = vadd.xlane.f32.xlu0 %v425
        %v427 = vpop.xlane.xlu0 %426
        %v428 = vsel %vm424, %v427, %v410
        %v429 = vmul.f32 %v421, %v414
        %430 = vadd.xlane.f32.xlu0 %v429
        %v431 = vpop.xlane.xlu0 %430
        %v432 = vsel %vm424, %v431, %v414
        %v433 = vmul.f32 %v421, %v418
        %434 = vadd.xlane.f32.xlu0 %v433
        %v435 = vpop.xlane.xlu0 %434
        %v436 = vsel %vm424, %v435, %v418
        %s437 = scalar_lea.vmem [#allocation2], 13
        %v438 = vld [vmem:[%s437] ss:$0 sm:$0xff]
        %v439 = vxor.u32 %v438, 2147483648
        %v440 = vlaneseq
        %v441 = vand.u32 %v440, 127
        %vm442 = vcmp.eq.s32.totalorder %v441, 13
        %v443 = vmul.f32 %v439, %v428
        %444 = vadd.xlane.f32.xlu0 %v443
        %v445 = vpop.xlane.xlu0 %444
        %v446 = vsel %vm442, %v445, %v428
        %v447 = vmul.f32 %v439, %v432
        %448 = vadd.xlane.f32.xlu0 %v447
        %v449 = vpop.xlane.xlu0 %448
        %v450 = vsel %vm442, %v449, %v432
        %v451 = vmul.f32 %v439, %v436
        %452 = vadd.xlane.f32.xlu0 %v451
        %v453 = vpop.xlane.xlu0 %452
        %v454 = vsel %vm442, %v453, %v436
        %s455 = scalar_lea.vmem [#allocation2], 12
        %v456 = vld [vmem:[%s455] ss:$0 sm:$0xff]
        %v457 = vxor.u32 %v456, 2147483648
        %v458 = vlaneseq
        %v459 = vand.u32 %v458, 127
        %vm460 = vcmp.eq.s32.totalorder %v459, 12
        %v461 = vmul.f32 %v457, %v446
        %462 = vadd.xlane.f32.xlu0 %v461
        %v463 = vpop.xlane.xlu0 %462
        %v464 = vsel %vm460, %v463, %v446
        %v465 = vmul.f32 %v457, %v450
        %466 = vadd.xlane.f32.xlu0 %v465
        %v467 = vpop.xlane.xlu0 %466
        %v468 = vsel %vm460, %v467, %v450
        %v469 = vmul.f32 %v457, %v454
        %470 = vadd.xlane.f32.xlu0 %v469
        %v471 = vpop.xlane.xlu0 %470
        %v472 = vsel %vm460, %v471, %v454
        %s473 = scalar_lea.vmem [#allocation2], 11
        %v474 = vld [vmem:[%s473] ss:$0 sm:$0xff]
        %v475 = vxor.u32 %v474, 2147483648
        %v476 = vlaneseq
        %v477 = vand.u32 %v476, 127
        %vm478 = vcmp.eq.s32.totalorder %v477, 11
        %v479 = vmul.f32 %v475, %v464
        %480 = vadd.xlane.f32.xlu0 %v479
        %v481 = vpop.xlane.xlu0 %480
        %v482 = vsel %vm478, %v481, %v464
        %v483 = vmul.f32 %v475, %v468
        %484 = vadd.xlane.f32.xlu0 %v483
        %v485 = vpop.xlane.xlu0 %484
        %v486 = vsel %vm478, %v485, %v468
        %v487 = vmul.f32 %v475, %v472
        %488 = vadd.xlane.f32.xlu0 %v487
        %v489 = vpop.xlane.xlu0 %488
        %v490 = vsel %vm478, %v489, %v472
        %s491 = scalar_lea.vmem [#allocation2], 10
        %v492 = vld [vmem:[%s491] ss:$0 sm:$0xff]
        %v493 = vxor.u32 %v492, 2147483648
        %v494 = vlaneseq
        %v495 = vand.u32 %v494, 127
        %vm496 = vcmp.eq.s32.totalorder %v495, 10
        %v497 = vmul.f32 %v493, %v482
        %498 = vadd.xlane.f32.xlu0 %v497
        %v499 = vpop.xlane.xlu0 %498
        %v500 = vsel %vm496, %v499, %v482
        %v501 = vmul.f32 %v493, %v486
        %502 = vadd.xlane.f32.xlu0 %v501
        %v503 = vpop.xlane.xlu0 %502
        %v504 = vsel %vm496, %v503, %v486
        %v505 = vmul.f32 %v493, %v490
        %506 = vadd.xlane.f32.xlu0 %v505
        %v507 = vpop.xlane.xlu0 %506
        %v508 = vsel %vm496, %v507, %v490
        %s509 = scalar_lea.vmem [#allocation2], 9
        %v510 = vld [vmem:[%s509] ss:$0 sm:$0xff]
        %v511 = vxor.u32 %v510, 2147483648
        %v512 = vlaneseq
        %v513 = vand.u32 %v512, 127
        %vm514 = vcmp.eq.s32.totalorder %v513, 9
        %v515 = vmul.f32 %v511, %v500
        %516 = vadd.xlane.f32.xlu0 %v515
        %v517 = vpop.xlane.xlu0 %516
        %v518 = vsel %vm514, %v517, %v500
        %v519 = vmul.f32 %v511, %v504
        %520 = vadd.xlane.f32.xlu0 %v519
        %v521 = vpop.xlane.xlu0 %520
        %v522 = vsel %vm514, %v521, %v504
        %v523 = vmul.f32 %v511, %v508
        %524 = vadd.xlane.f32.xlu0 %v523
        %v525 = vpop.xlane.xlu0 %524
        %v526 = vsel %vm514, %v525, %v508
        %s527 = scalar_lea.vmem [#allocation2], 8
        %v528 = vld [vmem:[%s527] ss:$0 sm:$0xff]
        %v529 = vxor.u32 %v528, 2147483648
        %v530 = vlaneseq
        %v531 = vand.u32 %v530, 127
        %vm532 = vcmp.eq.s32.totalorder %v531, 8
        %v533 = vmul.f32 %v529, %v518
        %534 = vadd.xlane.f32.xlu0 %v533
        %v535 = vpop.xlane.xlu0 %534
        %v536 = vsel %vm532, %v535, %v518
        %v537 = vmul.f32 %v529, %v522
        %538 = vadd.xlane.f32.xlu0 %v537
        %v539 = vpop.xlane.xlu0 %538
        %v540 = vsel %vm532, %v539, %v522
        %v541 = vmul.f32 %v529, %v526
        %542 = vadd.xlane.f32.xlu0 %v541
        %v543 = vpop.xlane.xlu0 %542
        %v544 = vsel %vm532, %v543, %v526
        %s545 = scalar_lea.vmem [#allocation2], 7
        %v546 = vld [vmem:[%s545] ss:$0 sm:$0xff]
        %v547 = vxor.u32 %v546, 2147483648
        %v548 = vlaneseq
        %v549 = vand.u32 %v548, 127
        %vm550 = vcmp.eq.s32.totalorder %v549, 7
        %v551 = vmul.f32 %v547, %v193
        %552 = vadd.xlane.f32.xlu0 %v551
        %v553 = vpop.xlane.xlu0 %552
        %v554 = vsel %vm550, %v553, %v193
        %v555 = vmul.f32 %v547, %v536
        %556 = vadd.xlane.f32.xlu0 %v555
        %v557 = vpop.xlane.xlu0 %556
        %v558 = vsel %vm550, %v557, %v536
        %v559 = vmul.f32 %v547, %v540
        %560 = vadd.xlane.f32.xlu0 %v559
        %v561 = vpop.xlane.xlu0 %560
        %v562 = vsel %vm550, %v561, %v540
        %v563 = vmul.f32 %v547, %v544
        %564 = vadd.xlane.f32.xlu0 %v563
        %v565 = vpop.xlane.xlu0 %564
        %v566 = vsel %vm550, %v565, %v544
        %s567 = scalar_lea.vmem [#allocation2], 6
        %v568 = vld [vmem:[%s567] ss:$0 sm:$0xff]
        %v569 = vxor.u32 %v568, 2147483648
        %v570 = vlaneseq
        %v571 = vand.u32 %v570, 127
        %vm572 = vcmp.eq.s32.totalorder %v571, 6
        %v573 = vmul.f32 %v569, %v554
        %574 = vadd.xlane.f32.xlu0 %v573
        %v575 = vpop.xlane.xlu0 %574
        %v576 = vsel %vm572, %v575, %v554
        %v577 = vmul.f32 %v569, %v558
        %578 = vadd.xlane.f32.xlu0 %v577
        %v579 = vpop.xlane.xlu0 %578
        %v580 = vsel %vm572, %v579, %v558
        %v581 = vmul.f32 %v569, %v562
        %582 = vadd.xlane.f32.xlu0 %v581
        %v583 = vpop.xlane.xlu0 %582
        %v584 = vsel %vm572, %v583, %v562
        %v585 = vmul.f32 %v569, %v566
        %586 = vadd.xlane.f32.xlu0 %v585
        %v587 = vpop.xlane.xlu0 %586
        %v588 = vsel %vm572, %v587, %v566
        %s589 = scalar_lea.vmem [#allocation2], 5
        %v590 = vld [vmem:[%s589] ss:$0 sm:$0xff]
        %v591 = vxor.u32 %v590, 2147483648
        %v592 = vlaneseq
        %v593 = vand.u32 %v592, 127
        %vm594 = vcmp.eq.s32.totalorder %v593, 5
        %v595 = vmul.f32 %v591, %v576
        %596 = vadd.xlane.f32.xlu0 %v595
        %v597 = vpop.xlane.xlu0 %596
        %v598 = vsel %vm594, %v597, %v576
        %v599 = vmul.f32 %v591, %v580
        %600 = vadd.xlane.f32.xlu0 %v599
        %v601 = vpop.xlane.xlu0 %600
        %v602 = vsel %vm594, %v601, %v580
        %v603 = vmul.f32 %v591, %v584
        %604 = vadd.xlane.f32.xlu0 %v603
        %v605 = vpop.xlane.xlu0 %604
        %v606 = vsel %vm594, %v605, %v584
        %v607 = vmul.f32 %v591, %v588
        %608 = vadd.xlane.f32.xlu0 %v607
        %v609 = vpop.xlane.xlu0 %608
        %v610 = vsel %vm594, %v609, %v588
        %s611 = scalar_lea.vmem [#allocation2], 4
        %v612 = vld [vmem:[%s611] ss:$0 sm:$0xff]
        %v613 = vxor.u32 %v612, 2147483648
        %v614 = vlaneseq
        %v615 = vand.u32 %v614, 127
        %vm616 = vcmp.eq.s32.totalorder %v615, 4
        %v617 = vmul.f32 %v613, %v598
        %618 = vadd.xlane.f32.xlu0 %v617
        %v619 = vpop.xlane.xlu0 %618
        %v620 = vsel %vm616, %v619, %v598
        %v621 = vmul.f32 %v613, %v602
        %622 = vadd.xlane.f32.xlu0 %v621
        %v623 = vpop.xlane.xlu0 %622
        %v624 = vsel %vm616, %v623, %v602
        %v625 = vmul.f32 %v613, %v606
        %626 = vadd.xlane.f32.xlu0 %v625
        %v627 = vpop.xlane.xlu0 %626
        %v628 = vsel %vm616, %v627, %v606
        %v629 = vmul.f32 %v613, %v610
        %630 = vadd.xlane.f32.xlu0 %v629
        %v631 = vpop.xlane.xlu0 %630
        %v632 = vsel %vm616, %v631, %v610
        %s633 = scalar_lea.vmem [#allocation2], 3
        %v634 = vld [vmem:[%s633] ss:$0 sm:$0xff]
        %v635 = vxor.u32 %v634, 2147483648
        %v636 = vlaneseq
        %v637 = vand.u32 %v636, 127
        %vm638 = vcmp.eq.s32.totalorder %v637, 3
        %v639 = vmul.f32 %v635, %v620
        %640 = vadd.xlane.f32.xlu0 %v639
        %v641 = vpop.xlane.xlu0 %640
        %v642 = vsel %vm638, %v641, %v620
        %v643 = vmul.f32 %v635, %v624
        %644 = vadd.xlane.f32.xlu0 %v643
        %v645 = vpop.xlane.xlu0 %644
        %v646 = vsel %vm638, %v645, %v624
        %v647 = vmul.f32 %v635, %v628
        %648 = vadd.xlane.f32.xlu0 %v647
        %v649 = vpop.xlane.xlu0 %648
        %v650 = vsel %vm638, %v649, %v628
        %v651 = vmul.f32 %v635, %v632
        %652 = vadd.xlane.f32.xlu0 %v651
        %v653 = vpop.xlane.xlu0 %652
        %v654 = vsel %vm638, %v653, %v632
        %s655 = scalar_lea.vmem [#allocation2], 2
        %v656 = vld [vmem:[%s655] ss:$0 sm:$0xff]
        %v657 = vxor.u32 %v656, 2147483648
        %v658 = vlaneseq
        %v659 = vand.u32 %v658, 127
        %vm660 = vcmp.eq.s32.totalorder %v659, 2
        %v661 = vmul.f32 %v657, %v642
        %662 = vadd.xlane.f32.xlu0 %v661
        %v663 = vpop.xlane.xlu0 %662
        %v664 = vsel %vm660, %v663, %v642
        %v665 = vmul.f32 %v657, %v646
        %666 = vadd.xlane.f32.xlu0 %v665
        %v667 = vpop.xlane.xlu0 %666
        %v668 = vsel %vm660, %v667, %v646
        %v669 = vmul.f32 %v657, %v650
        %670 = vadd.xlane.f32.xlu0 %v669
        %v671 = vpop.xlane.xlu0 %670
        %v672 = vsel %vm660, %v671, %v650
        %v673 = vmul.f32 %v657, %v654
        %674 = vadd.xlane.f32.xlu0 %v673
        %v675 = vpop.xlane.xlu0 %674
        %v676 = vsel %vm660, %v675, %v654
        %s677 = scalar_lea.vmem [#allocation2], 1
        %v678 = vld [vmem:[%s677] ss:$0 sm:$0xff]
        %v679 = vxor.u32 %v678, 2147483648
        %v680 = vlaneseq
        %v681 = vand.u32 %v680, 127
        %vm682 = vcmp.eq.s32.totalorder %v681, 1
        %v683 = vmul.f32 %v679, %v664
        %684 = vadd.xlane.f32.xlu0 %v683
        %v685 = vpop.xlane.xlu0 %684
        %v686 = vsel %vm682, %v685, %v664
        %v687 = vmul.f32 %v679, %v668
        %688 = vadd.xlane.f32.xlu0 %v687
        %v689 = vpop.xlane.xlu0 %688
        %v690 = vsel %vm682, %v689, %v668
        %v691 = vmul.f32 %v679, %v672
        %692 = vadd.xlane.f32.xlu0 %v691
        %v693 = vpop.xlane.xlu0 %692
        %v694 = vsel %vm682, %v693, %v672
        %v695 = vmul.f32 %v679, %v676
        %696 = vadd.xlane.f32.xlu0 %v695
        %v697 = vpop.xlane.xlu0 %696
        %v698 = vsel %vm682, %v697, %v676
        %v699 = vld [vmem:[#allocation2] ss:$0 sm:$0xff]
        %v700 = vxor.u32 %v699, 2147483648
        %v701 = vlaneseq
        %v702 = vand.u32 %v701, 127
        %vm703 = vcmp.eq.s32.totalorder %v702, 0
        %v704 = vmul.f32 %v700, %v686
        %705 = vadd.xlane.f32.xlu0 %v704
        %v706 = vpop.xlane.xlu0 %705
        %v707 = vsel %vm703, %v706, %v686
        %v708 = vmul.f32 %v700, %v690
        %709 = vadd.xlane.f32.xlu0 %v708
        %v710 = vpop.xlane.xlu0 %709
        %v711 = vsel %vm703, %v710, %v690
        %v712 = vmul.f32 %v700, %v694
        %713 = vadd.xlane.f32.xlu0 %v712
        %v714 = vpop.xlane.xlu0 %713
        %v715 = vsel %vm703, %v714, %v694
        %v716 = vmul.f32 %v700, %v698
        %717 = vadd.xlane.f32.xlu0 %v716
        %v718 = vpop.xlane.xlu0 %717
        %v719 = vsel %vm703, %v718, %v698
        %v720 = vrcp.pop %v132
        %v721 = vmul.f32 %v707, %v720
        %vm722 = vweird.f32 %v132
        %v723 = vsel %vm722, %v707, %v721
        %724 = vst [vmem:[%s121] sm:$0xff] %v723
        %v725 = vrcp.pop %v148
        %v726 = vmul.f32 %v711, %v725
        %vm727 = vweird.f32 %v148
        %v728 = vsel %vm727, %v711, %v726
        %s729 = scalar_lea.vmem %s121, 8 [#allocation1]
        %730 = vst [vmem:[%s729] sm:$0xff] %v728
        %v731 = vrcp.pop %v164
        %v732 = vmul.f32 %v715, %v731
        %vm733 = vweird.f32 %v164
        %v734 = vsel %vm733, %v715, %v732
        %s735 = scalar_lea.vmem %s121, 16 [#allocation1]
        %736 = vst [vmem:[%s735] sm:$0xff] %v734
        %v737 = vrcp.pop %v180
        %v738 = vmul.f32 %v719, %v737
        %vm739 = vweird.f32 %v180
        %v740 = vsel %vm739, %v719, %v738
        %s741 = scalar_lea.vmem %s121, 24 [#allocation1]
        %742 = vst [vmem:[%s741] sm:$0xff] %v740
        %s743 = sand.u32 %s8, 1
        %s744 = sand.u32 %s8, 1
        %s745 = smul.addr %s744, 32
        %s746 = scalar_lea.vmem [#allocation1], %s745
        %s747 = sadd.s32 %s17, %s16
        %s748 = smul.addr %s15, 4
        %s749 = sadd.s32 %s747, %s748
        %s750 = smul.addr %s14, 4
        %s751 = sadd.s32 %s749, %s750
        %s752 = smul.addr %s751, 8
        %s753 = scalar_lea.vmem %s1, %s752
        // Predicated region
        $region55: #{custom-call.12} parent=53 // pred_check
          _
        $region56: #{custom-call.12} parent=53 // pred_check_branch
          %755 = sbr.rel (0) target = $region58
        $region57: #{custom-call.12} parent=53 // pred_region
          // Predicated region
          $region59: #{custom-call.12} parent=57 // pred_check
            _
          $region60: #{custom-call.12} parent=57 // pred_check_branch
            %757 = sbr.rel (0) target = $region62
          $region61: #{custom-call.12} parent=57 // pred_region
            // Predicated region
            $region74: #{custom-call.12} parent=61 // pred_check
              _
            $region75: #{custom-call.12} parent=61 // pred_check_branch
              %778 = sbr.rel (0) target = $region77
            $region76: #{custom-call.12} parent=61 // pred_region
              loop: start=0, step=1, limit=1
              $region78: #{custom-call.12} parent=76 // loop_pre_header
                _
              $region79: #{custom-call.12} parent=76 // loop_header
                %s780 = sphi 0, %s784
                %p781 = scmp.ge.s32.totalorder %s780, 1
                %s785 = sphi %s746, %s746
                %s786 = sphi %s753, %s753
              $region80: #{custom-call.12} parent=76 // loop_header_branch
                %783 = sbr.rel (%p781) target = $region84
              $region81: #{custom-call.12} parent=76 // loop_body
                %v787 = vld [vmem:[%s785] sm:$0xff]
                %788 = vst [vmem:[%s786] sm:$0xff] %v787
                %v789 = vld [vmem:[%s785 + $0x8] sm:$0xff]
                %790 = vst [vmem:[%s786 + $0x8] sm:$0xff] %v789
                %v791 = vld [vmem:[%s785 + $0x10] sm:$0xff]
                %792 = vst [vmem:[%s786 + $0x10] sm:$0xff] %v791
                %v793 = vld [vmem:[%s785 + $0x18] sm:$0xff]
                %794 = vst [vmem:[%s786 + $0x18] sm:$0xff] %v793
              $region82: #{custom-call.12} parent=76 // loop_footer
                %s784 = sadd.s32 1, %s780
              $region83: #{custom-call.12} parent=76 // loop_footer_branch
                %779 = sbr.rel target = $region79
              $region84: #{custom-call.12} parent=76 // loop_exit
                _
            $region77: #{custom-call.12} parent=61 // pred_fallthru
              _
            // Predicated region
            $region85: #{custom-call.12} parent=61 // pred_check
              _
            $region86: #{custom-call.12} parent=61 // pred_check_branch
              %796 = sbr.rel target = $region88
            $region87: #{custom-call.12} parent=61 // pred_region
              _
            $region88: #{custom-call.12} parent=61 // pred_fallthru
              _
          $region62: #{custom-call.12} parent=57 // pred_fallthru
            _
          // Predicated region
          $region63: #{custom-call.12} parent=57 // pred_check
            _
          $region64: #{custom-call.12} parent=57 // pred_check_branch
            %759 = sbr.rel target = $region66
          $region65: #{custom-call.12} parent=57 // pred_region
            loop: start=0, step=1, limit=1
            $region67: #{custom-call.12} parent=65 // loop_pre_header
              _
            $region68: #{custom-call.12} parent=65 // loop_header
              %s762 = sphi 0, %s766
              %p763 = scmp.ge.s32.totalorder %s762, 1
              %s767 = sphi %s746, %s746
              %s768 = sphi %s753, %s753
            $region69: #{custom-call.12} parent=65 // loop_header_branch
              %765 = sbr.rel (%p763) target = $region73
            $region70: #{custom-call.12} parent=65 // loop_body
              %v769 = vld [vmem:[%s767] sm:$0xff]
              %770 = vst [vmem:[%s768] sm:$0xff] %v769
              %v771 = vld [vmem:[%s767 + $0x8] sm:$0xff]
              %772 = vst [vmem:[%s768 + $0x8] sm:$0xff] %v771
              %v773 = vld [vmem:[%s767 + $0x10] sm:$0xff]
              %774 = vst [vmem:[%s768 + $0x10] sm:$0xff] %v773
              %v775 = vld [vmem:[%s767 + $0x18] sm:$0xff]
              %776 = vst [vmem:[%s768 + $0x18] sm:$0xff] %v775
            $region71: #{custom-call.12} parent=65 // loop_footer
              %s766 = sadd.s32 1, %s762
            $region72: #{custom-call.12} parent=65 // loop_footer_branch
              %761 = sbr.rel target = $region68
            $region73: #{custom-call.12} parent=65 // loop_exit
              _
          $region66: #{custom-call.12} parent=57 // pred_fallthru
            _
        $region58: #{custom-call.12} parent=53 // pred_fallthru
          _
        %797 = vnop
      $region54: #{custom-call.12} parent=5 // pred_fallthru
        _
      %p798 = scmp.le.s32.totalorder 2, %s3
      // Predicated region
      $region89: #{custom-call.12} parent=5 // pred_check
        %p799 = pneg %p798
      $region90: #{custom-call.12} parent=5 // pred_check_branch
        %801 = sbr.rel (%p799) target = $region92
      $region91: #{custom-call.12} parent=5 // pred_region
        %s802 = ssub.s32 %s3, 2
        %s803 = sand.u32 %s9, 1
        %s804 = sand.u32 %s9, 1
        %s805 = smul.addr %s804, 32
        %s806 = scalar_lea.vmem [#allocation1], %s805
      $region92: #{custom-call.12} parent=5 // pred_fallthru
        _
    $region6: #{custom-call.12} parent=1 // loop_footer
      %s7 = sadd.s32 1, %s3
    $region7: #{custom-call.12} parent=1 // loop_footer_branch
      %2 = sbr.rel target = $region3
    $region8: #{custom-call.12} parent=1 // loop_exit
      _

// kernel: maha_classifier_forward.2
$region0: #{maha_classifier_forward.2}
  #allocation0 [shape = 'u32[]', space=smem, size = 0x4, offset = 0x4, fixed_abs, tag = 'smem constant byte address 0x4 - core index']
  #allocation1 [shape = 'u32[144,128]{1,0:T(1,128)}', space=vmem, size = 0x12000, scoped, tag = 'internal scratch']
  %s0 = inlined_call_operand.vmem [shape: f32[16,32], index: 0, kind: input, shape index: {}]
  %s1 = inlined_call_operand.vmem [shape: s32[16,1], index: 1, kind: input, shape index: {}]
  %s2 = inlined_call_operand.vmem [shape: f32[4,32], index: 2, kind: output, shape index: {0}]
  %s3 = inlined_call_operand.vmem [shape: f32[4,32,32], index: 3, kind: output, shape index: {1}]
  %4 = xla_tuple %s2, %s3
  %s5 = sld [smem:[#allocation0]]
  $region26: #{maha_classifier_forward.2} parent=0
    _
  %s7 = ssub.s32 1, %s5
  %s8 = scalar_select 0, %s7, %s5
  // Predicated region
  $region2: #{maha_classifier_forward.2} parent=0 // pred_check
    _
  $region3: #{maha_classifier_forward.2} parent=0 // pred_check_branch
    %10 = sbr.rel (0) target = $region5
  $region4: #{maha_classifier_forward.2} parent=0 // pred_region
    _
  $region5: #{maha_classifier_forward.2} parent=0 // pred_fallthru
    _
  // Predicated region
  $region6: #{maha_classifier_forward.2} parent=0 // pred_check
    _
  $region7: #{maha_classifier_forward.2} parent=0 // pred_check_branch
    %12 = sbr.rel (0) target = $region9
  $region8: #{maha_classifier_forward.2} parent=0 // pred_region
    _
  $region9: #{maha_classifier_forward.2} parent=0 // pred_fallthru
    _
  %v13 = vld [vmem:[%s0] sm:$0xff]
  %v14 = vld [vmem:[%s0 + $0x8] sm:$0xff]
  %v15 = vld [vmem:[%s1] sm:$0xff]
  %v16 = vld [vmem:[%s1 + $0x8] sm:$0xff]
  %v17 = vlaneseq
  %v18 = vand.u32 %v17, 127
  %19 = vset.pattern.permute.xlu0 0
  %20 = vperm.xlu0 %19, %v15
  %v21 = vpop.permute.xlu0 %20
  %22 = vset.pattern.permute.xlu0 0
  %23 = vperm.xlu0 %22, %v16
  %v24 = vpop.permute.xlu0 %23
  %vm25 = vcmp.eq.s32.totalorder %v18, %v21
  %vm26 = vcmp.eq.s32.totalorder %v18, %v24
  %v27 = vsel %vm25, 1, 0
  %v28 = vsel %vm26, 1, 0
  %v29 = vcvt.s32.f32 %v27
  %v30 = vcvt.s32.f32 %v28
  %31 = vxpose.xlu0.b32.start [1/16] %v29, 128
  %32 = vxpose.xlu0.b32.cont [2/16] %v30, 128
  %33 = vxpose.xlu0.b32.cont [3/16] 0.0, 128
  %34 = vxpose.xlu0.b32.cont [4/16] 0.0, 128
  %35 = vxpose.xlu0.b32.cont [5/16] 0.0, 128
  %36 = vxpose.xlu0.b32.cont [6/16] 0.0, 128
  %37 = vxpose.xlu0.b32.cont [7/16] 0.0, 128
  %38 = vxpose.xlu0.b32.cont [8/16] 0.0, 128
  %39 = vxpose.xlu0.b32.cont [9/16] 0.0, 128
  %40 = vxpose.xlu0.b32.cont [10/16] 0.0, 128
  %41 = vxpose.xlu0.b32.cont [11/16] 0.0, 128
  %42 = vxpose.xlu0.b32.cont [12/16] 0.0, 128
  %43 = vxpose.xlu0.b32.cont [13/16] 0.0, 128
  %44 = vxpose.xlu0.b32.cont [14/16] 0.0, 128
  %45 = vxpose.xlu0.b32.cont [15/16] 0.0, 128
  %46 = vxpose.xlu0.b32.end [16/16] 0.0, 128
  %v47 = vpop.trf.xlu0
  %v48 = vpop.trf.xlu0
  %v49 = vpop.trf.xlu0
  %v50 = vpop.trf.xlu0
  %v51 = vpop.trf.xlu0
  %v52 = vpop.trf.xlu0
  %v53 = vpop.trf.xlu0
  %v54 = vpop.trf.xlu0
  %v55 = vpop.trf.xlu0
  %v56 = vpop.trf.xlu0
  %v57 = vpop.trf.xlu0
  %v58 = vpop.trf.xlu0
  %v59 = vpop.trf.xlu0
  %v60 = vpop.trf.xlu0
  %v61 = vpop.trf.xlu0
  %v62 = vpop.trf.xlu0
  %vm63 = vcmask 130048
  %v65 = vsel %vm63, %v47, 0
  %67 = vmatprep.subr.mxu0 0.0
  %68 = vmatpush1.msra.mxu0 1.0
  %69 = vmatprep.subr.mxu0 0.0
  %70 = vmatpush1.msra.mxu0 1.0
  %71 = vmatprep.subr.mxu0 0.0
  %72 = vmatpush1.msra.mxu0 0.0
  %73 = vmatprep.subr.mxu0 0.0
  %74 = vmatpush1.msra.mxu0 0.0
  %75 = vmatprep.subr.mxu0 0.0
  %76 = vmatpush1.msra.mxu0 0.0
  %77 = vmatprep.subr.mxu0 0.0
  %78 = vmatpush1.msra.mxu0 0.0
  %79 = vmatprep.subr.mxu0 0.0
  %80 = vmatpush1.msra.mxu0 0.0
  %81 = vmatprep.subr.mxu0 0.0
  %82 = vmatpush1.msra.mxu0 0.0
  %83 = vmatprep.subr.mxu0 0.0
  %84 = vmatpush1.msra.mxu0 0.0
  %85 = vmatprep.subr.mxu0 0.0
  %86 = vmatpush1.msra.mxu0 0.0
  %87 = vmatprep.subr.mxu0 0.0
  %88 = vmatpush1.msra.mxu0 0.0
  %89 = vmatprep.subr.mxu0 0.0
  %90 = vmatpush1.msra.mxu0 0.0
  %91 = vmatprep.subr.mxu0 0.0
  %92 = vmatpush1.msra.mxu0 0.0
  %93 = vmatprep.subr.mxu0 0.0
  %94 = vmatpush1.msra.mxu0 0.0
  %95 = vmatprep.subr.mxu0 0.0
  %96 = vmatpush1.msra.mxu0 0.0
  %97 = vmatprep.subr.mxu0 0.0
  %98 = vmatpush1.msra.mxu0 0.0
  %99 = vmatprep.subr.mxu0 0.0
  %100 = vmatpush1.msra.mxu0 0.0
  %101 = vmatprep.subr.mxu0 0.0
  %102 = vmatpush1.msra.mxu0 0.0
  %103 = vmatprep.subr.mxu0 0.0
  %104 = vmatpush1.msra.mxu0 0.0
  %105 = vmatprep.subr.mxu0 0.0
  %106 = vmatpush1.msra.mxu0 0.0
  %107 = vmatprep.subr.mxu0 0.0
  %108 = vmatpush1.msra.mxu0 0.0
  %109 = vmatprep.subr.mxu0 0.0
  %110 = vmatpush1.msra.mxu0 0.0
  %111 = vmatprep.subr.mxu0 0.0
  %112 = vmatpush1.msra.mxu0 0.0
  %113 = vmatprep.subr.mxu0 0.0
  %114 = vmatpush1.msra.mxu0 0.0
  %115 = vmatprep.subr.mxu0 0.0
  %116 = vmatpush1.msra.mxu0 0.0
  %117 = vmatprep.subr.mxu0 0.0
  %118 = vmatpush1.msra.mxu0 0.0
  %119 = vmatprep.subr.mxu0 0.0
  %120 = vmatpush1.msra.mxu0 0.0
  %121 = vmatprep.subr.mxu0 0.0
  %122 = vmatpush1.msra.mxu0 0.0
  %123 = vmatprep.subr.mxu0 0.0
  %124 = vmatpush1.msra.mxu0 0.0
  %125 = vmatprep.subr.mxu0 0.0
  %126 = vmatpush1.msra.mxu0 0.0
  %127 = vmatprep.subr.mxu0 0.0
  %128 = vmatpush1.msra.mxu0 0.0
  %129 = vmatprep.subr.mxu0 0.0
  %130 = vmatpush1.msra.mxu0 0.0
  %131 = vmatprep.mubr.f32.mxu0 0.0
  %132 = vmatmul.mubr.f32.gmra.mrb[0].mxu0 %v65
  %v133 = vpop.f32.mrb[0].mxu0
  %v134 = vadd.f32 0.0, %v133
  %v135 = vpop.f32.mrb[0].mxu0
  %136 = vdwg.mxu0
  %137 = vmatprep.subr.mxu0 0.0
  %138 = vmatpush1.msra.mxu0 %v13
  %139 = vmatprep.subr.mxu0 0.0
  %140 = vmatpush1.msra.mxu0 %v14
  %141 = vmatprep.subr.mxu0 0.0
  %142 = vmatpush1.msra.mxu0 0.0
  %143 = vmatprep.subr.mxu0 0.0
  %144 = vmatpush1.msra.mxu0 0.0
  %145 = vmatprep.subr.mxu0 0.0
  %146 = vmatpush1.msra.mxu0 0.0
  %147 = vmatprep.subr.mxu0 0.0
  %148 = vmatpush1.msra.mxu0 0.0
  %149 = vmatprep.subr.mxu0 0.0
  %150 = vmatpush1.msra.mxu0 0.0
  %151 = vmatprep.subr.mxu0 0.0
  %152 = vmatpush1.msra.mxu0 0.0
  %153 = vmatprep.subr.mxu0 0.0
  %154 = vmatpush1.msra.mxu0 0.0
  %155 = vmatprep.subr.mxu0 0.0
  %156 = vmatpush1.msra.mxu0 0.0
  %157 = vmatprep.subr.mxu0 0.0
  %158 = vmatpush1.msra.mxu0 0.0
  %159 = vmatprep.subr.mxu0 0.0
  %160 = vmatpush1.msra.mxu0 0.0
  %161 = vmatprep.subr.mxu0 0.0
  %162 = vmatpush1.msra.mxu0 0.0
  %163 = vmatprep.subr.mxu0 0.0
  %164 = vmatpush1.msra.mxu0 0.0
  %165 = vmatprep.subr.mxu0 0.0
  %166 = vmatpush1.msra.mxu0 0.0
  %167 = vmatprep.subr.mxu0 0.0
  %168 = vmatpush1.msra.mxu0 0.0
  %169 = vmatprep.subr.mxu0 0.0
  %170 = vmatpush1.msra.mxu0 0.0
  %171 = vmatprep.subr.mxu0 0.0
  %172 = vmatpush1.msra.mxu0 0.0
  %173 = vmatprep.subr.mxu0 0.0
  %174 = vmatpush1.msra.mxu0 0.0
  %175 = vmatprep.subr.mxu0 0.0
  %176 = vmatpush1.msra.mxu0 0.0
  %177 = vmatprep.subr.mxu0 0.0
  %178 = vmatpush1.msra.mxu0 0.0
  %179 = vmatprep.subr.mxu0 0.0
  %180 = vmatpush1.msra.mxu0 0.0
  %181 = vmatprep.subr.mxu0 0.0
  %182 = vmatpush1.msra.mxu0 0.0
  %183 = vmatprep.subr.mxu0 0.0
  %184 = vmatpush1.msra.mxu0 0.0
  %185 = vmatprep.subr.mxu0 0.0
  %186 = vmatpush1.msra.mxu0 0.0
  %187 = vmatprep.subr.mxu0 0.0
  %188 = vmatpush1.msra.mxu0 0.0
  %189 = vmatprep.subr.mxu0 0.0
  %190 = vmatpush1.msra.mxu0 0.0
  %191 = vmatprep.subr.mxu0 0.0
  %192 = vmatpush1.msra.mxu0 0.0
  %193 = vmatprep.subr.mxu0 0.0
  %194 = vmatpush1.msra.mxu0 0.0
  %195 = vmatprep.subr.mxu0 0.0
  %196 = vmatpush1.msra.mxu0 0.0
  %197 = vmatprep.subr.mxu0 0.0
  %198 = vmatpush1.msra.mxu0 0.0
  %199 = vmatprep.subr.mxu0 0.0
  %200 = vmatpush1.msra.mxu0 0.0
  %201 = vmatprep.mubr.f32.mxu0 0.0
  %202 = vmatmul.mubr.f32.gmra.mrb[0].mxu0 %v65
  %v203 = vpop.f32.mrb[0].mxu0
  %v204 = vadd.f32 0.0, %v203
  %v205 = vpop.f32.mrb[0].mxu0
  %206 = vdwg.mxu0
  %208 = vset.pattern.permute.xlu0 0
  %209 = vperm.xlu0 %208, %v134
  %v210 = vpop.permute.xlu0 %209
  %v212 = vrcp.pop %v210
  %v213 = vmul.f32 %v204, %v212
  %vm214 = vcmask 257024
  %215 = vst.msk [vmem:[%s2] sm:$0xf] %vm214, %v213
  %vm216 = vcmask 261120
  %v217 = vsel %vm216, %v13, 0.0
  %v218 = vsel %vm216, %v14, 0.0
  %v219 = vadd.f32 %v217, %v218
  %v220 = vrot.slane %v219, 4
  %v221 = vadd.f32 %v219, %v220
  %v222 = vrot.slane %v221, 2
  %v223 = vadd.f32 %v221, %v222
  %v224 = vrot.slane %v223, 1
  %v225 = vadd.f32 %v223, %v224
  %v226 = vrcp.pop 16.0
  %v227 = vmul.f32 %v225, %v226
  %v228 = vsub.f32 %v13, %v227
  %v229 = vsub.f32 %v14, %v227
  %230 = vxpose.xlu0.b32.start [1/16] %v228, 128
  %231 = vxpose.xlu0.b32.cont [2/16] %v229, 128
  %232 = vxpose.xlu0.b32.cont [3/16] 0.0, 128
  %233 = vxpose.xlu0.b32.cont [4/16] 0.0, 128
  %234 = vxpose.xlu0.b32.cont [5/16] 0.0, 128
  %235 = vxpose.xlu0.b32.cont [6/16] 0.0, 128
  %236 = vxpose.xlu0.b32.cont [7/16] 0.0, 128
  %237 = vxpose.xlu0.b32.cont [8/16] 0.0, 128
  %238 = vxpose.xlu0.b32.cont [9/16] 0.0, 128
  %239 = vxpose.xlu0.b32.cont [10/16] 0.0, 128
  %240 = vxpose.xlu0.b32.cont [11/16] 0.0, 128
  %241 = vxpose.xlu0.b32.cont [12/16] 0.0, 128
  %242 = vxpose.xlu0.b32.cont [13/16] 0.0, 128
  %243 = vxpose.xlu0.b32.cont [14/16] 0.0, 128
  %244 = vxpose.xlu0.b32.cont [15/16] 0.0, 128
  %245 = vxpose.xlu0.b32.end [16/16] 0.0, 128
  %v246 = vpop.trf.xlu0
  %v247 = vpop.trf.xlu0
  %v248 = vpop.trf.xlu0
  %v249 = vpop.trf.xlu0
  %v250 = vpop.trf.xlu0
  %v251 = vpop.trf.xlu0
  %v252 = vpop.trf.xlu0
  %v253 = vpop.trf.xlu0
  %v254 = vpop.trf.xlu0
  %v255 = vpop.trf.xlu0
  %v256 = vpop.trf.xlu0
  %v257 = vpop.trf.xlu0
  %v258 = vpop.trf.xlu0
  %v259 = vpop.trf.xlu0
  %v260 = vpop.trf.xlu0
  %v261 = vpop.trf.xlu0
  %v263 = vsel %vm63, %v246, 0
  %v266 = vsel %vm63, %v247, 0
  %v269 = vsel %vm63, %v248, 0
  %v272 = vsel %vm63, %v249, 0
  %274 = vmatprep.subr.mxu0 0.0
  %275 = vmatpush1.msra.mxu0 %v228
  %276 = vmatprep.subr.mxu0 0.0
  %277 = vmatpush1.msra.mxu0 %v229
  %278 = vmatprep.subr.mxu0 0.0
  %279 = vmatpush1.msra.mxu0 0.0
  %280 = vmatprep.subr.mxu0 0.0
  %281 = vmatpush1.msra.mxu0 0.0
  %282 = vmatprep.subr.mxu0 0.0
  %283 = vmatpush1.msra.mxu0 0.0
  %284 = vmatprep.subr.mxu0 0.0
  %285 = vmatpush1.msra.mxu0 0.0
  %286 = vmatprep.subr.mxu0 0.0
  %287 = vmatpush1.msra.mxu0 0.0
  %288 = vmatprep.subr.mxu0 0.0
  %289 = vmatpush1.msra.mxu0 0.0
  %290 = vmatprep.subr.mxu0 0.0
  %291 = vmatpush1.msra.mxu0 0.0
  %292 = vmatprep.subr.mxu0 0.0
  %293 = vmatpush1.msra.mxu0 0.0
  %294 = vmatprep.subr.mxu0 0.0
  %295 = vmatpush1.msra.mxu0 0.0
  %296 = vmatprep.subr.mxu0 0.0
  %297 = vmatpush1.msra.mxu0 0.0
  %298 = vmatprep.subr.mxu0 0.0
  %299 = vmatpush1.msra.mxu0 0.0
  %300 = vmatprep.subr.mxu0 0.0
  %301 = vmatpush1.msra.mxu0 0.0
  %302 = vmatprep.subr.mxu0 0.0
  %303 = vmatpush1.msra.mxu0 0.0
  %304 = vmatprep.subr.mxu0 0.0
  %305 = vmatpush1.msra.mxu0 0.0
  %306 = vmatprep.subr.mxu0 0.0
  %307 = vmatpush1.msra.mxu0 0.0
  %308 = vmatprep.subr.mxu0 0.0
  %309 = vmatpush1.msra.mxu0 0.0
  %310 = vmatprep.subr.mxu0 0.0
  %311 = vmatpush1.msra.mxu0 0.0
  %312 = vmatprep.subr.mxu0 0.0
  %313 = vmatpush1.msra.mxu0 0.0
  %314 = vmatprep.subr.mxu0 0.0
  %315 = vmatpush1.msra.mxu0 0.0
  %316 = vmatprep.subr.mxu0 0.0
  %317 = vmatpush1.msra.mxu0 0.0
  %318 = vmatprep.subr.mxu0 0.0
  %319 = vmatpush1.msra.mxu0 0.0
  %320 = vmatprep.subr.mxu0 0.0
  %321 = vmatpush1.msra.mxu0 0.0
  %322 = vmatprep.subr.mxu0 0.0
  %323 = vmatpush1.msra.mxu0 0.0
  %324 = vmatprep.subr.mxu0 0.0
  %325 = vmatpush1.msra.mxu0 0.0
  %326 = vmatprep.subr.mxu0 0.0
  %327 = vmatpush1.msra.mxu0 0.0
  %328 = vmatprep.subr.mxu0 0.0
  %329 = vmatpush1.msra.mxu0 0.0
  %330 = vmatprep.subr.mxu0 0.0
  %331 = vmatpush1.msra.mxu0 0.0
  %332 = vmatprep.subr.mxu0 0.0
  %333 = vmatpush1.msra.mxu0 0.0
  %334 = vmatprep.subr.mxu0 0.0
  %335 = vmatpush1.msra.mxu0 0.0
  %336 = vmatprep.subr.mxu0 0.0
  %337 = vmatpush1.msra.mxu0 0.0
  %338 = vmatprep.mubr.f32.mxu0 0.0
  %339 = vmatmul.mubr.f32.gmra.mrb[0].mxu0 %v263
  %v340 = vpop.f32.mrb[0].mxu0
  %v341 = vadd.f32 0.0, %v340
  %v342 = vpop.f32.mrb[0].mxu0
  %343 = vmatprep.mubr.f32.mxu0 0.0
  %344 = vmatmul.mubr.f32.gmra.mrb[0].mxu0 %v266
  %v345 = vpop.f32.mrb[0].mxu0
  %v346 = vadd.f32 0.0, %v345
  %v347 = vpop.f32.mrb[0].mxu0
  %348 = vmatprep.mubr.f32.mxu0 0.0
  %349 = vmatmul.mubr.f32.gmra.mrb[0].mxu0 %v269
  %v350 = vpop.f32.mrb[0].mxu0
  %v351 = vadd.f32 0.0, %v350
  %v352 = vpop.f32.mrb[0].mxu0
  %353 = vmatprep.mubr.f32.mxu0 0.0
  %354 = vmatmul.mubr.f32.gmra.mrb[0].mxu0 %v272
  %v355 = vpop.f32.mrb[0].mxu0
  %v356 = vadd.f32 0.0, %v355
  %v357 = vpop.f32.mrb[0].mxu0
  %358 = vdwg.mxu0
  %v359 = vmul.f32 %v341, 0.06666667
  %v360 = vmul.f32 %v346, 0.06666667
  %v361 = vmul.f32 %v351, 0.06666667
  %v362 = vmul.f32 %v356, 0.06666667
  %v363 = vlaneseq
  %v364 = vshrl.u32 %v363, 7
  %v365 = vadd.s32 %v364, 8
  %v366 = vadd.s32 %v364, 16
  %v367 = vadd.s32 %v364, 24
  %vm368 = vcmp.eq.s32.totalorder %v364, %v18
  %vm369 = vcmp.eq.s32.totalorder %v365, %v18
  %vm370 = vcmp.eq.s32.totalorder %v366, %v18
  %vm371 = vcmp.eq.s32.totalorder %v367, %v18
  %v372 = vsel %vm368, 1, 0
  %v373 = vsel %vm369, 1, 0
  %v374 = vsel %vm370, 1, 0
  %v375 = vsel %vm371, 1, 0
  %v376 = vcvt.s32.f32 %v372
  %v377 = vcvt.s32.f32 %v373
  %v378 = vcvt.s32.f32 %v374
  %v379 = vcvt.s32.f32 %v375
  %v380 = vlaneseq
  %v381 = vshrl.u32 %v380, 7
  %v382 = vsub.s32 0, %v381
  %v383 = vrot.slane %v213, %v382
  %v384 = vsub.f32 %v13, %v383
  %v385 = vsub.f32 %v14, %v383
  %387 = vset.pattern.permute.xlu0 0
  %388 = vperm.xlu0 %387, %v29
  %v389 = vpop.permute.xlu0 %388
  %392 = vset.pattern.permute.xlu0 0
  %393 = vperm.xlu0 %392, %v30
  %v394 = vpop.permute.xlu0 %393
  %v396 = vmul.f32 %v384, %v389
  %v397 = vmul.f32 %v385, %v394
  %398 = vxpose.xlu0.b32.start [1/16] %v396, 128
  %399 = vxpose.xlu0.b32.cont [2/16] %v397, 128
  %400 = vxpose.xlu0.b32.cont [3/16] 0.0, 128
  %401 = vxpose.xlu0.b32.cont [4/16] 0.0, 128
  %402 = vxpose.xlu0.b32.cont [5/16] 0.0, 128
  %403 = vxpose.xlu0.b32.cont [6/16] 0.0, 128
  %404 = vxpose.xlu0.b32.cont [7/16] 0.0, 128
  %405 = vxpose.xlu0.b32.cont [8/16] 0.0, 128
  %406 = vxpose.xlu0.b32.cont [9/16] 0.0, 128
  %407 = vxpose.xlu0.b32.cont [10/16] 0.0, 128
  %408 = vxpose.xlu0.b32.cont [11/16] 0.0, 128
  %409 = vxpose.xlu0.b32.cont [12/16] 0.0, 128
  %410 = vxpose.xlu0.b32.cont [13/16] 0.0, 128
  %411 = vxpose.xlu0.b32.cont [14/16] 0.0, 128
  %412 = vxpose.xlu0.b32.cont [15/16] 0.0, 128
  %413 = vxpose.xlu0.b32.end [16/16] 0.0, 128
  %v414 = vpop.trf.xlu0
  %v415 = vpop.trf.xlu0
  %v416 = vpop.trf.xlu0
  %v417 = vpop.trf.xlu0
  %v418 = vpop.trf.xlu0
  %v419 = vpop.trf.xlu0
  %v420 = vpop.trf.xlu0
  %v421 = vpop.trf.xlu0
  %v422 = vpop.trf.xlu0
  %v423 = vpop.trf.xlu0
  %v424 = vpop.trf.xlu0
  %v425 = vpop.trf.xlu0
  %v426 = vpop.trf.xlu0
  %v427 = vpop.trf.xlu0
  %v428 = vpop.trf.xlu0
  %v429 = vpop.trf.xlu0
  %v431 = vsel %vm63, %v414, 0
  %v434 = vsel %vm63, %v415, 0
  %v437 = vsel %vm63, %v416, 0
  %v440 = vsel %vm63, %v417, 0
  %442 = vmatprep.subr.mxu0 0.0
  %443 = vmatpush1.msra.mxu0 %v396
  %444 = vmatprep.subr.mxu0 0.0
  %445 = vmatpush1.msra.mxu0 %v397
  %446 = vmatprep.subr.mxu0 0.0
  %447 = vmatpush1.msra.mxu0 0.0
  %448 = vmatprep.subr.mxu0 0.0
  %449 = vmatpush1.msra.mxu0 0.0
  %450 = vmatprep.subr.mxu0 0.0
  %451 = vmatpush1.msra.mxu0 0.0
  %452 = vmatprep.subr.mxu0 0.0
  %453 = vmatpush1.msra.mxu0 0.0
  %454 = vmatprep.subr.mxu0 0.0
  %455 = vmatpush1.msra.mxu0 0.0
  %456 = vmatprep.subr.mxu0 0.0
  %457 = vmatpush1.msra.mxu0 0.0
  %458 = vmatprep.subr.mxu0 0.0
  %459 = vmatpush1.msra.mxu0 0.0
  %460 = vmatprep.subr.mxu0 0.0
  %461 = vmatpush1.msra.mxu0 0.0
  %462 = vmatprep.subr.mxu0 0.0
  %463 = vmatpush1.msra.mxu0 0.0
  %464 = vmatprep.subr.mxu0 0.0
  %465 = vmatpush1.msra.mxu0 0.0
  %466 = vmatprep.subr.mxu0 0.0
  %467 = vmatpush1.msra.mxu0 0.0
  %468 = vmatprep.subr.mxu0 0.0
  %469 = vmatpush1.msra.mxu0 0.0
  %470 = vmatprep.subr.mxu0 0.0
  %471 = vmatpush1.msra.mxu0 0.0
  %472 = vmatprep.subr.mxu0 0.0
  %473 = vmatpush1.msra.mxu0 0.0
  %474 = vmatprep.subr.mxu0 0.0
  %475 = vmatpush1.msra.mxu0 0.0
  %476 = vmatprep.subr.mxu0 0.0
  %477 = vmatpush1.msra.mxu0 0.0
  %478 = vmatprep.subr.mxu0 0.0
  %479 = vmatpush1.msra.mxu0 0.0
  %480 = vmatprep.subr.mxu0 0.0
  %481 = vmatpush1.msra.mxu0 0.0
  %482 = vmatprep.subr.mxu0 0.0
  %483 = vmatpush1.msra.mxu0 0.0
  %484 = vmatprep.subr.mxu0 0.0
  %485 = vmatpush1.msra.mxu0 0.0
  %486 = vmatprep.subr.mxu0 0.0
  %487 = vmatpush1.msra.mxu0 0.0
  %488 = vmatprep.subr.mxu0 0.0
  %489 = vmatpush1.msra.mxu0 0.0
  %490 = vmatprep.subr.mxu0 0.0
  %491 = vmatpush1.msra.mxu0 0.0
  %492 = vmatprep.subr.mxu0 0.0
  %493 = vmatpush1.msra.mxu0 0.0
  %494 = vmatprep.subr.mxu0 0.0
  %495 = vmatpush1.msra.mxu0 0.0
  %496 = vmatprep.subr.mxu0 0.0
  %497 = vmatpush1.msra.mxu0 0.0
  %498 = vmatprep.subr.mxu0 0.0
  %499 = vmatpush1.msra.mxu0 0.0
  %500 = vmatprep.subr.mxu0 0.0
  %501 = vmatpush1.msra.mxu0 0.0
  %502 = vmatprep.subr.mxu0 0.0
  %503 = vmatpush1.msra.mxu0 0.0
  %504 = vmatprep.subr.mxu0 0.0
  %505 = vmatpush1.msra.mxu0 0.0
  %506 = vmatprep.mubr.f32.mxu0 0.0
  %507 = vmatmul.mubr.f32.gmra.mrb[0].mxu0 %v431
  %v508 = vpop.f32.mrb[0].mxu0
  %v509 = vadd.f32 0.0, %v508
  %v510 = vpop.f32.mrb[0].mxu0
  %511 = vmatprep.mubr.f32.mxu0 0.0
  %512 = vmatmul.mubr.f32.gmra.mrb[0].mxu0 %v434
  %v513 = vpop.f32.mrb[0].mxu0
  %v514 = vadd.f32 0.0, %v513
  %v515 = vpop.f32.mrb[0].mxu0
  %516 = vmatprep.mubr.f32.mxu0 0.0
  %517 = vmatmul.mubr.f32.gmra.mrb[0].mxu0 %v437
  %v518 = vpop.f32.mrb[0].mxu0
  %v519 = vadd.f32 0.0, %v518
  %v520 = vpop.f32.mrb[0].mxu0
  %521 = vmatprep.mubr.f32.mxu0 0.0
  %522 = vmatmul.mubr.f32.gmra.mrb[0].mxu0 %v440
  %v523 = vpop.f32.mrb[0].mxu0
  %v524 = vadd.f32 0.0, %v523
  %v525 = vpop.f32.mrb[0].mxu0
  %526 = vdwg.mxu0
  %v527 = vsub.f32 %v134, 1.0
  %s529 = vtos %v527
  %v530 = vstv %s529
  %v532 = vrcp.pop %v530
  %v533 = vmul.f32 %v509, %v532
  %v534 = vmul.f32 %v514, %v532
  %v535 = vmul.f32 %v519, %v532
  %v536 = vmul.f32 %v524, %v532
  %v537 = vadd.f32 %v134, 1.0
  %v538 = vrcp.pop %v537
  %v539 = vmul.f32 %v134, %v538
  %s541 = vtos %v539
  %v542 = vstv %s541
  %v544 = vmul.f32 %v542, %v533
  %v545 = vmul.f32 %v542, %v534
  %v546 = vmul.f32 %v542, %v535
  %v547 = vmul.f32 %v542, %v536
  %v548 = vsub.f32 1.0, %v539
  %s550 = vtos %v548
  %v551 = vstv %s550
  %v553 = vmul.f32 %v551, %v359
  %v554 = vmul.f32 %v551, %v360
  %v555 = vmul.f32 %v551, %v361
  %v556 = vmul.f32 %v551, %v362
  %v557 = vadd.f32 %v544, %v553
  %v558 = vadd.f32 %v545, %v554
  %v559 = vadd.f32 %v546, %v555
  %v560 = vadd.f32 %v547, %v556
  %v561 = vadd.f32 %v557, %v376
  %v562 = vadd.f32 %v558, %v377
  %v563 = vadd.f32 %v559, %v378
  %v564 = vadd.f32 %v560, %v379
  %565 = vst.msk [vmem:[%s3] sm:$0xff] %vm216, %v561
  %566 = vst.msk [vmem:[%s3 + $0x8] sm:$0xff] %vm216, %v562
  %567 = vst.msk [vmem:[%s3 + $0x10] sm:$0xff] %vm216, %v563
  %568 = vst.msk [vmem:[%s3 + $0x18] sm:$0xff] %vm216, %v564
  %v569 = vlaneseq
  %v570 = vshrl.u32 %v569, 7
  %v571 = vsub.s32 1, %v570
  %v572 = vrot.slane %v213, %v571
  %v573 = vsub.f32 %v13, %v572
  %v574 = vsub.f32 %v14, %v572
  %575 = vset.pattern.permute.xlu0 1
  %576 = vperm.xlu0 %575, %v29
  %v577 = vpop.permute.xlu0 %576
  %579 = vset.pattern.permute.xlu0 1
  %580 = vperm.xlu0 %579, %v30
  %v581 = vpop.permute.xlu0 %580
  %v583 = vmul.f32 %v573, %v577
  %v584 = vmul.f32 %v574, %v581
  %585 = vxpose.xlu0.b32.start [1/16] %v583, 128
  %586 = vxpose.xlu0.b32.cont [2/16] %v584, 128
  %587 = vxpose.xlu0.b32.cont [3/16] 0.0, 128
  %588 = vxpose.xlu0.b32.cont [4/16] 0.0, 128
  %589 = vxpose.xlu0.b32.cont [5/16] 0.0, 128
  %590 = vxpose.xlu0.b32.cont [6/16] 0.0, 128
  %591 = vxpose.xlu0.b32.cont [7/16] 0.0, 128
  %592 = vxpose.xlu0.b32.cont [8/16] 0.0, 128
  %593 = vxpose.xlu0.b32.cont [9/16] 0.0, 128
  %594 = vxpose.xlu0.b32.cont [10/16] 0.0, 128
  %595 = vxpose.xlu0.b32.cont [11/16] 0.0, 128
  %596 = vxpose.xlu0.b32.cont [12/16] 0.0, 128
  %597 = vxpose.xlu0.b32.cont [13/16] 0.0, 128
  %598 = vxpose.xlu0.b32.cont [14/16] 0.0, 128
  %599 = vxpose.xlu0.b32.cont [15/16] 0.0, 128
  %600 = vxpose.xlu0.b32.end [16/16] 0.0, 128
  %v601 = vpop.trf.xlu0
  %v602 = vpop.trf.xlu0
  %v603 = vpop.trf.xlu0
  %v604 = vpop.trf.xlu0
  %v605 = vpop.trf.xlu0
  %v606 = vpop.trf.xlu0
  %v607 = vpop.trf.xlu0
  %v608 = vpop.trf.xlu0
  %v609 = vpop.trf.xlu0
  %v610 = vpop.trf.xlu0
  %v611 = vpop.trf.xlu0
  %v612 = vpop.trf.xlu0
  %v613 = vpop.trf.xlu0
  %v614 = vpop.trf.xlu0
  %v615 = vpop.trf.xlu0
  %v616 = vpop.trf.xlu0
  %v618 = vsel %vm63, %v601, 0
  %v621 = vsel %vm63, %v602, 0
  %v624 = vsel %vm63, %v603, 0
  %v627 = vsel %vm63, %v604, 0
  %629 = vmatprep.subr.mxu0 0.0
  %630 = vmatpush1.msra.mxu0 %v583
  %631 = vmatprep.subr.mxu0 0.0
  %632 = vmatpush1.msra.mxu0 %v584
  %633 = vmatprep.subr.mxu0 0.0
  %634 = vmatpush1.msra.mxu0 0.0
  %635 = vmatprep.subr.mxu0 0.0
  %636 = vmatpush1.msra.mxu0 0.0
  %637 = vmatprep.subr.mxu0 0.0
  %638 = vmatpush1.msra.mxu0 0.0
  %639 = vmatprep.subr.mxu0 0.0
  %640 = vmatpush1.msra.mxu0 0.0
  %641 = vmatprep.subr.mxu0 0.0
  %642 = vmatpush1.msra.mxu0 0.0
  %643 = vmatprep.subr.mxu0 0.0
  %644 = vmatpush1.msra.mxu0 0.0
  %645 = vmatprep.subr.mxu0 0.0
  %646 = vmatpush1.msra.mxu0 0.0
  %647 = vmatprep.subr.mxu0 0.0
  %648 = vmatpush1.msra.mxu0 0.0
  %649 = vmatprep.subr.mxu0 0.0
  %650 = vmatpush1.msra.mxu0 0.0
  %651 = vmatprep.subr.mxu0 0.0
  %652 = vmatpush1.msra.mxu0 0.0
  %653 = vmatprep.subr.mxu0 0.0
  %654 = vmatpush1.msra.mxu0 0.0
  %655 = vmatprep.subr.mxu0 0.0
  %656 = vmatpush1.msra.mxu0 0.0
  %657 = vmatprep.subr.mxu0 0.0
  %658 = vmatpush1.msra.mxu0 0.0
  %659 = vmatprep.subr.mxu0 0.0
  %660 = vmatpush1.msra.mxu0 0.0
  %661 = vmatprep.subr.mxu0 0.0
  %662 = vmatpush1.msra.mxu0 0.0
  %663 = vmatprep.subr.mxu0 0.0
  %664 = vmatpush1.msra.mxu0 0.0
  %665 = vmatprep.subr.mxu0 0.0
  %666 = vmatpush1.msra.mxu0 0.0
  %667 = vmatprep.subr.mxu0 0.0
  %668 = vmatpush1.msra.mxu0 0.0
  %669 = vmatprep.subr.mxu0 0.0
  %670 = vmatpush1.msra.mxu0 0.0
  %671 = vmatprep.subr.mxu0 0.0
  %672 = vmatpush1.msra.mxu0 0.0
  %673 = vmatprep.subr.mxu0 0.0
  %674 = vmatpush1.msra.mxu0 0.0
  %675 = vmatprep.subr.mxu0 0.0
  %676 = vmatpush1.msra.mxu0 0.0
  %677 = vmatprep.subr.mxu0 0.0
  %678 = vmatpush1.msra.mxu0 0.0
  %679 = vmatprep.subr.mxu0 0.0
  %680 = vmatpush1.msra.mxu0 0.0
  %681 = vmatprep.subr.mxu0 0.0
  %682 = vmatpush1.msra.mxu0 0.0
  %683 = vmatprep.subr.mxu0 0.0
  %684 = vmatpush1.msra.mxu0 0.0
  %685 = vmatprep.subr.mxu0 0.0
  %686 = vmatpush1.msra.mxu0 0.0
  %687 = vmatprep.subr.mxu0 0.0
  %688 = vmatpush1.msra.mxu0 0.0
  %689 = vmatprep.subr.mxu0 0.0
  %690 = vmatpush1.msra.mxu0 0.0
  %691 = vmatprep.subr.mxu0 0.0
  %692 = vmatpush1.msra.mxu0 0.0
  %693 = vmatprep.mubr.f32.mxu0 0.0
  %694 = vmatmul.mubr.f32.gmra.mrb[0].mxu0 %v618
  %v695 = vpop.f32.mrb[0].mxu0
  %v696 = vadd.f32 0.0, %v695
  %v697 = vpop.f32.mrb[0].mxu0
  %698 = vmatprep.mubr.f32.mxu0 0.0
  %699 = vmatmul.mubr.f32.gmra.mrb[0].mxu0 %v621
  %v700 = vpop.f32.mrb[0].mxu0
  %v701 = vadd.f32 0.0, %v700
  %v702 = vpop.f32.mrb[0].mxu0
  %703 = vmatprep.mubr.f32.mxu0 0.0
  %704 = vmatmul.mubr.f32.gmra.mrb[0].mxu0 %v624
  %v705 = vpop.f32.mrb[0].mxu0
  %v706 = vadd.f32 0.0, %v705
  %v707 = vpop.f32.mrb[0].mxu0
  %708 = vmatprep.mubr.f32.mxu0 0.0
  %709 = vmatmul.mubr.f32.gmra.mrb[0].mxu0 %v627
  %v710 = vpop.f32.mrb[0].mxu0
  %v711 = vadd.f32 0.0, %v710
  %v712 = vpop.f32.mrb[0].mxu0
  %713 = vdwg.mxu0
  %v714 = vrot.slane %v527, 1
  %s715 = vtos %v714
  %v716 = vstv %s715
  %v718 = vrcp.pop %v716
  %v719 = vmul.f32 %v696, %v718
  %v720 = vmul.f32 %v701, %v718
  %v721 = vmul.f32 %v706, %v718
  %v722 = vmul.f32 %v711, %v718
  %v723 = vrot.slane %v539, 1
  %s724 = vtos %v723
  %v725 = vstv %s724
  %v727 = vmul.f32 %v725, %v719
  %v728 = vmul.f32 %v725, %v720
  %v729 = vmul.f32 %v725, %v721
  %v730 = vmul.f32 %v725, %v722
  %v731 = vrot.slane %v548, 1
  %s732 = vtos %v731
  %v733 = vstv %s732
  %v735 = vmul.f32 %v733, %v359
  %v736 = vmul.f32 %v733, %v360
  %v737 = vmul.f32 %v733, %v361
  %v738 = vmul.f32 %v733, %v362
  %v739 = vadd.f32 %v727, %v735
  %v740 = vadd.f32 %v728, %v736
  %v741 = vadd.f32 %v729, %v737
  %v742 = vadd.f32 %v730, %v738
  %v743 = vadd.f32 %v739, %v376
  %v744 = vadd.f32 %v740, %v377
  %v745 = vadd.f32 %v741, %v378
  %v746 = vadd.f32 %v742, %v379
  %s747 = scalar_lea.vmem %s3, 32
  %748 = vst.msk [vmem:[%s747] sm:$0xff] %vm216, %v743
  %749 = vst.msk [vmem:[%s747 + $0x8] sm:$0xff] %vm216, %v744
  %750 = vst.msk [vmem:[%s747 + $0x10] sm:$0xff] %vm216, %v745
  %751 = vst.msk [vmem:[%s747 + $0x18] sm:$0xff] %vm216, %v746
  %v752 = vlaneseq
  %v753 = vshrl.u32 %v752, 7
  %v754 = vsub.s32 2, %v753
  %v755 = vrot.slane %v213, %v754
  %v756 = vsub.f32 %v13, %v755
  %v757 = vsub.f32 %v14, %v755
  %758 = vset.pattern.permute.xlu0 2
  %759 = vperm.xlu0 %758, %v29
  %v760 = vpop.permute.xlu0 %759
  %762 = vset.pattern.permute.xlu0 2
  %763 = vperm.xlu0 %762, %v30
  %v764 = vpop.permute.xlu0 %763
  %v766 = vmul.f32 %v756, %v760
  %v767 = vmul.f32 %v757, %v764
  %768 = vxpose.xlu0.b32.start [1/16] %v766, 128
  %769 = vxpose.xlu0.b32.cont [2/16] %v767, 128
  %770 = vxpose.xlu0.b32.cont [3/16] 0.0, 128
  %771 = vxpose.xlu0.b32.cont [4/16] 0.0, 128
  %772 = vxpose.xlu0.b32.cont [5/16] 0.0, 128
  %773 = vxpose.xlu0.b32.cont [6/16] 0.0, 128
  %774 = vxpose.xlu0.b32.cont [7/16] 0.0, 128
  %775 = vxpose.xlu0.b32.cont [8/16] 0.0, 128
  %776 = vxpose.xlu0.b32.cont [9/16] 0.0, 128
  %777 = vxpose.xlu0.b32.cont [10/16] 0.0, 128
  %778 = vxpose.xlu0.b32.cont [11/16] 0.0, 128
  %779 = vxpose.xlu0.b32.cont [12/16] 0.0, 128
  %780 = vxpose.xlu0.b32.cont [13/16] 0.0, 128
  %781 = vxpose.xlu0.b32.cont [14/16] 0.0, 128
  %782 = vxpose.xlu0.b32.cont [15/16] 0.0, 128
  %783 = vxpose.xlu0.b32.end [16/16] 0.0, 128
  %v784 = vpop.trf.xlu0
  %v785 = vpop.trf.xlu0
  %v786 = vpop.trf.xlu0
  %v787 = vpop.trf.xlu0
  %v788 = vpop.trf.xlu0
  %v789 = vpop.trf.xlu0
  %v790 = vpop.trf.xlu0
  %v791 = vpop.trf.xlu0
  %v792 = vpop.trf.xlu0
  %v793 = vpop.trf.xlu0
  %v794 = vpop.trf.xlu0
  %v795 = vpop.trf.xlu0
  %v796 = vpop.trf.xlu0
  %v797 = vpop.trf.xlu0
  %v798 = vpop.trf.xlu0
  %v799 = vpop.trf.xlu0
  %v801 = vsel %vm63, %v784, 0
  %v804 = vsel %vm63, %v785, 0
  %v807 = vsel %vm63, %v786, 0
  %v810 = vsel %vm63, %v787, 0
  %812 = vmatprep.subr.mxu0 0.0
  %813 = vmatpush1.msra.mxu0 %v766
  %814 = vmatprep.subr.mxu0 0.0
  %815 = vmatpush1.msra.mxu0 %v767
  %816 = vmatprep.subr.mxu0 0.0
  %817 = vmatpush1.msra.mxu0 0.0
  %818 = vmatprep.subr.mxu0 0.0
  %819 = vmatpush1.msra.mxu0 0.0
  %820 = vmatprep.subr.mxu0 0.0
  %821 = vmatpush1.msra.mxu0 0.0
  %822 = vmatprep.subr.mxu0 0.0
  %823 = vmatpush1.msra.mxu0 0.0
  %824 = vmatprep.subr.mxu0 0.0
  %825 = vmatpush1.msra.mxu0 0.0
  %826 = vmatprep.subr.mxu0 0.0
  %827 = vmatpush1.msra.mxu0 0.0
  %828 = vmatprep.subr.mxu0 0.0
  %829 = vmatpush1.msra.mxu0 0.0
  %830 = vmatprep.subr.mxu0 0.0
  %831 = vmatpush1.msra.mxu0 0.0
  %832 = vmatprep.subr.mxu0 0.0
  %833 = vmatpush1.msra.mxu0 0.0
  %834 = vmatprep.subr.mxu0 0.0
  %835 = vmatpush1.msra.mxu0 0.0
  %836 = vmatprep.subr.mxu0 0.0
  %837 = vmatpush1.msra.mxu0 0.0
  %838 = vmatprep.subr.mxu0 0.0
  %839 = vmatpush1.msra.mxu0 0.0
  %840 = vmatprep.subr.mxu0 0.0
  %841 = vmatpush1.msra.mxu0 0.0
  %842 = vmatprep.subr.mxu0 0.0
  %843 = vmatpush1.msra.mxu0 0.0
  %844 = vmatprep.subr.mxu0 0.0
  %845 = vmatpush1.msra.mxu0 0.0
  %846 = vmatprep.subr.mxu0 0.0
  %847 = vmatpush1.msra.mxu0 0.0
  %848 = vmatprep.subr.mxu0 0.0
  %849 = vmatpush1.msra.mxu0 0.0
  %850 = vmatprep.subr.mxu0 0.0
  %851 = vmatpush1.msra.mxu0 0.0
  %852 = vmatprep.subr.mxu0 0.0
  %853 = vmatpush1.msra.mxu0 0.0
  %854 = vmatprep.subr.mxu0 0.0
  %855 = vmatpush1.msra.mxu0 0.0
  %856 = vmatprep.subr.mxu0 0.0
  %857 = vmatpush1.msra.mxu0 0.0
  %858 = vmatprep.subr.mxu0 0.0
  %859 = vmatpush1.msra.mxu0 0.0
  %860 = vmatprep.subr.mxu0 0.0
  %861 = vmatpush1.msra.mxu0 0.0
  %862 = vmatprep.subr.mxu0 0.0
  %863 = vmatpush1.msra.mxu0 0.0
  %864 = vmatprep.subr.mxu0 0.0
  %865 = vmatpush1.msra.mxu0 0.0
  %866 = vmatprep.subr.mxu0 0.0
  %867 = vmatpush1.msra.mxu0 0.0
  %868 = vmatprep.subr.mxu0 0.0
  %869 = vmatpush1.msra.mxu0 0.0
  %870 = vmatprep.subr.mxu0 0.0
  %871 = vmatpush1.msra.mxu0 0.0
  %872 = vmatprep.subr.mxu0 0.0
  %873 = vmatpush1.msra.mxu0 0.0
  %874 = vmatprep.subr.mxu0 0.0
  %875 = vmatpush1.msra.mxu0 0.0
  %876 = vmatprep.mubr.f32.mxu0 0.0
  %877 = vmatmul.mubr.f32.gmra.mrb[0].mxu0 %v801
  %v878 = vpop.f32.mrb[0].mxu0
  %v879 = vadd.f32 0.0, %v878
  %v880 = vpop.f32.mrb[0].mxu0
  %881 = vmatprep.mubr.f32.mxu0 0.0
  %882 = vmatmul.mubr.f32.gmra.mrb[0].mxu0 %v804
  %v883 = vpop.f32.mrb[0].mxu0
  %v884 = vadd.f32 0.0, %v883
  %v885 = vpop.f32.mrb[0].mxu0
  %886 = vmatprep.mubr.f32.mxu0 0.0
  %887 = vmatmul.mubr.f32.gmra.mrb[0].mxu0 %v807
  %v888 = vpop.f32.mrb[0].mxu0
  %v889 = vadd.f32 0.0, %v888
  %v890 = vpop.f32.mrb[0].mxu0
  %891 = vmatprep.mubr.f32.mxu0 0.0
  %892 = vmatmul.mubr.f32.gmra.mrb[0].mxu0 %v810
  %v893 = vpop.f32.mrb[0].mxu0
  %v894 = vadd.f32 0.0, %v893
  %v895 = vpop.f32.mrb[0].mxu0
  %896 = vdwg.mxu0
  %v897 = vrot.slane %v527, 2
  %s898 = vtos %v897
  %v899 = vstv %s898
  %v901 = vrcp.pop %v899
  %v902 = vmul.f32 %v879, %v901
  %v903 = vmul.f32 %v884, %v901
  %v904 = vmul.f32 %v889, %v901
  %v905 = vmul.f32 %v894, %v901
  %v906 = vrot.slane %v539, 2
  %s907 = vtos %v906
  %v908 = vstv %s907
  %v910 = vmul.f32 %v908, %v902
  %v911 = vmul.f32 %v908, %v903
  %v912 = vmul.f32 %v908, %v904
  %v913 = vmul.f32 %v908, %v905
  %v914 = vrot.slane %v548, 2
  %s915 = vtos %v914
  %v916 = vstv %s915
  %v918 = vmul.f32 %v916, %v359
  %v919 = vmul.f32 %v916, %v360
  %v920 = vmul.f32 %v916, %v361
  %v921 = vmul.f32 %v916, %v362
  %v922 = vadd.f32 %v910, %v918
  %v923 = vadd.f32 %v911, %v919
  %v924 = vadd.f32 %v912, %v920
  %v925 = vadd.f32 %v913, %v921
  %v926 = vadd.f32 %v922, %v376
  %v927 = vadd.f32 %v923, %v377
  %v928 = vadd.f32 %v924, %v378
  %v929 = vadd.f32 %v925, %v379
  %s930 = scalar_lea.vmem %s3, 64
  %931 = vst.msk [vmem:[%s930] sm:$0xff] %vm216, %v926
  %932 = vst.msk [vmem:[%s930 + $0x8] sm:$0xff] %vm216, %v927
  %933 = vst.msk [vmem:[%s930 + $0x10] sm:$0xff] %vm216, %v928
  %934 = vst.msk [vmem:[%s930 + $0x18] sm:$0xff] %vm216, %v929
  %v935 = vlaneseq
  %v936 = vshrl.u32 %v935, 7
  %v937 = vsub.s32 3, %v936
  %v938 = vrot.slane %v213, %v937
  %v939 = vsub.f32 %v13, %v938
  %v940 = vsub.f32 %v14, %v938
  %941 = vset.pattern.permute.xlu0 3
  %942 = vperm.xlu0 %941, %v29
  %v943 = vpop.permute.xlu0 %942
  %945 = vset.pattern.permute.xlu0 3
  %946 = vperm.xlu0 %945, %v30
  %v947 = vpop.permute.xlu0 %946
  %v949 = vmul.f32 %v939, %v943
  %v950 = vmul.f32 %v940, %v947
  %951 = vxpose.xlu0.b32.start [1/16] %v949, 128
  %952 = vxpose.xlu0.b32.cont [2/16] %v950, 128
  %953 = vxpose.xlu0.b32.cont [3/16] 0.0, 128
  %954 = vxpose.xlu0.b32.cont [4/16] 0.0, 128
  %955 = vxpose.xlu0.b32.cont [5/16] 0.0, 128
  %956 = vxpose.xlu0.b32.cont [6/16] 0.0, 128
  %957 = vxpose.xlu0.b32.cont [7/16] 0.0, 128
  %958 = vxpose.xlu0.b32.cont [8/16] 0.0, 128
  %959 = vxpose.xlu0.b32.cont [9/16] 0.0, 128
  %960 = vxpose.xlu0.b32.cont [10/16] 0.0, 128
  %961 = vxpose.xlu0.b32.cont [11/16] 0.0, 128
  %962 = vxpose.xlu0.b32.cont [12/16] 0.0, 128
  %963 = vxpose.xlu0.b32.cont [13/16] 0.0, 128
  %964 = vxpose.xlu0.b32.cont [14/16] 0.0, 128
  %965 = vxpose.xlu0.b32.cont [15/16] 0.0, 128
  %966 = vxpose.xlu0.b32.end [16/16] 0.0, 128
  %v967 = vpop.trf.xlu0
  %v968 = vpop.trf.xlu0
  %v969 = vpop.trf.xlu0
  %v970 = vpop.trf.xlu0
  %v971 = vpop.trf.xlu0
  %v972 = vpop.trf.xlu0
  %v973 = vpop.trf.xlu0
  %v974 = vpop.trf.xlu0
  %v975 = vpop.trf.xlu0
  %v976 = vpop.trf.xlu0
  %v977 = vpop.trf.xlu0
  %v978 = vpop.trf.xlu0
  %v979 = vpop.trf.xlu0
  %v980 = vpop.trf.xlu0
  %v981 = vpop.trf.xlu0
  %v982 = vpop.trf.xlu0
  %v984 = vsel %vm63, %v967, 0
  %v987 = vsel %vm63, %v968, 0
  %v990 = vsel %vm63, %v969, 0
  %v993 = vsel %vm63, %v970, 0
  %995 = vmatprep.subr.mxu0 0.0
  %996 = vmatpush1.msra.mxu0 %v949
  %997 = vmatprep.subr.mxu0 0.0
  %998 = vmatpush1.msra.mxu0 %v950
  %999 = vmatprep.subr.mxu0 0.0
  %1000 = vmatpush1.msra.mxu0 0.0
  %1001 = vmatprep.subr.mxu0 0.0
  %1002 = vmatpush1.msra.mxu0 0.0
  %1003 = vmatprep.subr.mxu0 0.0
  %1004 = vmatpush1.msra.mxu0 0.0
  %1005 = vmatprep.subr.mxu0 0.0
  %1006 = vmatpush1.msra.mxu0 0.0
  %1007 = vmatprep.subr.mxu0 0.0
  %1008 = vmatpush1.msra.mxu0 0.0
  %1009 = vmatprep.subr.mxu0 0.0
  %1010 = vmatpush1.msra.mxu0 0.0
  %1011 = vmatprep.subr.mxu0 0.0
  %1012 = vmatpush1.msra.mxu0 0.0
  %1013 = vmatprep.subr.mxu0 0.0
  %1014 = vmatpush1.msra.mxu0 0.0
  %1015 = vmatprep.subr.mxu0 0.0
  %1016 = vmatpush1.msra.mxu0 0.0
  %1017 = vmatprep.subr.mxu0 0.0
  %1018 = vmatpush1.msra.mxu0 0.0
  %1019 = vmatprep.subr.mxu0 0.0
  %1020 = vmatpush1.msra.mxu0 0.0
  %1021 = vmatprep.subr.mxu0 0.0
  %1022 = vmatpush1.msra.mxu0 0.0
  %1023 = vmatprep.subr.mxu0 0.0
  %1024 = vmatpush1.msra.mxu0 0.0
  %1025 = vmatprep.subr.mxu0 0.0
  %1026 = vmatpush1.msra.mxu0 0.0
  %1027 = vmatprep.subr.mxu0 0.0
  %1028 = vmatpush1.msra.mxu0 0.0
  %1029 = vmatprep.subr.mxu0 0.0
  %1030 = vmatpush1.msra.mxu0 0.0
  %1031 = vmatprep.subr.mxu0 0.0
  %1032 = vmatpush1.msra.mxu0 0.0
  %1033 = vmatprep.subr.mxu0 0.0
  %1034 = vmatpush1.msra.mxu0 0.0
  %1035 = vmatprep.subr.mxu0 0.0
  %1036 = vmatpush1.msra.mxu0 0.0
  %1037 = vmatprep.subr.mxu0 0.0
  %1038 = vmatpush1.msra.mxu0 0.0
  %1039 = vmatprep.subr.mxu0 0.0
  %1040 = vmatpush1.msra.mxu0 0.0
  %1041 = vmatprep.subr.mxu0 0.0
  %1042 = vmatpush1.msra.mxu0 0.0
  %1043 = vmatprep.subr.mxu0 0.0
  %1044 = vmatpush1.msra.mxu0 0.0
  %1045 = vmatprep.subr.mxu0 0.0
  %1046 = vmatpush1.msra.mxu0 0.0
  %1047 = vmatprep.subr.mxu0 0.0
  %1048 = vmatpush1.msra.mxu0 0.0
  %1049 = vmatprep.subr.mxu0 0.0
  %1050 = vmatpush1.msra.mxu0 0.0
  %1051 = vmatprep.subr.mxu0 0.0
  %1052 = vmatpush1.msra.mxu0 0.0
  %1053 = vmatprep.subr.mxu0 0.0
  %1054 = vmatpush1.msra.mxu0 0.0
  %1055 = vmatprep.subr.mxu0 0.0
  %1056 = vmatpush1.msra.mxu0 0.0
  %1057 = vmatprep.subr.mxu0 0.0
  %1058 = vmatpush1.msra.mxu0 0.0
  %1059 = vmatprep.mubr.f32.mxu0 0.0
  %1060 = vmatmul.mubr.f32.gmra.mrb[0].mxu0 %v984
  %v1061 = vpop.f32.mrb[0].mxu0
  %v1062 = vadd.f32 0.0, %v1061
  %v1063 = vpop.f32.mrb[0].mxu0
  %1064 = vmatprep.mubr.f32.mxu0 0.0
  %1065 = vmatmul.mubr.f32.gmra.mrb[0].mxu0 %v987
  %v1066 = vpop.f32.mrb[0].mxu0
  %v1067 = vadd.f32 0.0, %v1066
  %v1068 = vpop.f32.mrb[0].mxu0
  %1069 = vmatprep.mubr.f32.mxu0 0.0
  %1070 = vmatmul.mubr.f32.gmra.mrb[0].mxu0 %v990
  %v1071 = vpop.f32.mrb[0].mxu0
  %v1072 = vadd.f32 0.0, %v1071
  %v1073 = vpop.f32.mrb[0].mxu0
  %1074 = vmatprep.mubr.f32.mxu0 0.0
  %1075 = vmatmul.mubr.f32.gmra.mrb[0].mxu0 %v993
  %v1076 = vpop.f32.mrb[0].mxu0
  %v1077 = vadd.f32 0.0, %v1076
  %v1078 = vpop.f32.mrb[0].mxu0
  %1079 = vdwg.mxu0
  %v1080 = vrot.slane %v527, 3
  %s1081 = vtos %v1080
  %v1082 = vstv %s1081
  %v1084 = vrcp.pop %v1082
  %v1085 = vmul.f32 %v1062, %v1084
  %v1086 = vmul.f32 %v1067, %v1084
  %v1087 = vmul.f32 %v1072, %v1084
  %v1088 = vmul.f32 %v1077, %v1084
  %v1089 = vrot.slane %v539, 3
  %s1090 = vtos %v1089
  %v1091 = vstv %s1090
  %v1093 = vmul.f32 %v1091, %v1085
  %v1094 = vmul.f32 %v1091, %v1086
  %v1095 = vmul.f32 %v1091, %v1087
  %v1096 = vmul.f32 %v1091, %v1088
  %v1097 = vrot.slane %v548, 3
  %s1098 = vtos %v1097
  %v1099 = vstv %s1098
  %v1101 = vmul.f32 %v1099, %v359
  %v1102 = vmul.f32 %v1099, %v360
  %v1103 = vmul.f32 %v1099, %v361
  %v1104 = vmul.f32 %v1099, %v362
  %v1105 = vadd.f32 %v1093, %v1101
  %v1106 = vadd.f32 %v1094, %v1102
  %v1107 = vadd.f32 %v1095, %v1103
  %v1108 = vadd.f32 %v1096, %v1104
  %v1109 = vadd.f32 %v1105, %v376
  %v1110 = vadd.f32 %v1106, %v377
  %v1111 = vadd.f32 %v1107, %v378
  %v1112 = vadd.f32 %v1108, %v379
  %s1113 = scalar_lea.vmem %s3, 96
  %1114 = vst.msk [vmem:[%s1113] sm:$0xff] %vm216, %v1109
  %1115 = vst.msk [vmem:[%s1113 + $0x8] sm:$0xff] %vm216, %v1110
  %1116 = vst.msk [vmem:[%s1113 + $0x10] sm:$0xff] %vm216, %v1111
  %1117 = vst.msk [vmem:[%s1113 + $0x18] sm:$0xff] %vm216, %v1112
  // Predicated region
  $region10: #{maha_classifier_forward.2} parent=0 // pred_check
    _
  $region11: #{maha_classifier_forward.2} parent=0 // pred_check_branch
    %1119 = sbr.rel (0) target = $region13
  $region12: #{maha_classifier_forward.2} parent=0 // pred_region
    _
  $region13: #{maha_classifier_forward.2} parent=0 // pred_fallthru
    _
  // Predicated region
  $region14: #{maha_classifier_forward.2} parent=0 // pred_check
    _
  $region15: #{maha_classifier_forward.2} parent=0 // pred_check_branch
    %1121 = sbr.rel (0) target = $region17
  $region16: #{maha_classifier_forward.2} parent=0 // pred_region
    _
  $region17: #{maha_classifier_forward.2} parent=0 // pred_fallthru
    _
  // Predicated region
  $region18: #{maha_classifier_forward.2} parent=0 // pred_check
    _
  $region19: #{maha_classifier_forward.2} parent=0 // pred_check_branch
    %1123 = sbr.rel (0) target = $region21
  $region20: #{maha_classifier_forward.2} parent=0 // pred_region
    _
  $region21: #{maha_classifier_forward.2} parent=0 // pred_fallthru
    _
  // Predicated region
  $region22: #{maha_classifier_forward.2} parent=0 // pred_check
    _
  $region23: #{maha_classifier_forward.2} parent=0 // pred_check_branch
    %1125 = sbr.rel (0) target = $region25
  $region24: #{maha_classifier_forward.2} parent=0 // pred_region
    _
  $region25: #{maha_classifier_forward.2} parent=0 // pred_fallthru
    _

// kernel: maha_classifier_forward.3
$region0: #{maha_classifier_forward.3}
  #allocation0 [shape = 'u32[]', space=smem, size = 0x4, offset = 0x4, fixed_abs, tag = 'smem constant byte address 0x4 - core index']
  #allocation1 [shape = 'u32[144,128]{1,0:T(1,128)}', space=vmem, size = 0x12000, scoped, tag = 'internal scratch']
  %s0 = inlined_call_operand.vmem [shape: f32[4,32], index: 0, kind: input, shape index: {}]
  %s1 = inlined_call_operand.vmem [shape: f32[4,32,32], index: 1, kind: input, shape index: {}]
  %s2 = inlined_call_operand.vmem [shape: f32[8,32], index: 2, kind: input, shape index: {}]
  %s3 = inlined_call_operand.vmem [shape: f32[8,4], index: 3, kind: output, shape index: {}]
  %s4 = sld [smem:[#allocation0]]
  $region22: #{maha_classifier_forward.3} parent=0
    _
  %s6 = ssub.s32 1, %s4
  %s7 = scalar_select 0, %s6, %s4
  // Predicated region
  $region2: #{maha_classifier_forward.3} parent=0 // pred_check
    _
  $region3: #{maha_classifier_forward.3} parent=0 // pred_check_branch
    %9 = sbr.rel (0) target = $region5
  $region4: #{maha_classifier_forward.3} parent=0 // pred_region
    _
  $region5: #{maha_classifier_forward.3} parent=0 // pred_fallthru
    _
  // Predicated region
  $region6: #{maha_classifier_forward.3} parent=0 // pred_check
    _
  $region7: #{maha_classifier_forward.3} parent=0 // pred_check_branch
    %11 = sbr.rel (0) target = $region9
  $region8: #{maha_classifier_forward.3} parent=0 // pred_region
    _
  $region9: #{maha_classifier_forward.3} parent=0 // pred_fallthru
    _
  // Predicated region
  $region10: #{maha_classifier_forward.3} parent=0 // pred_check
    _
  $region11: #{maha_classifier_forward.3} parent=0 // pred_check_branch
    %13 = sbr.rel (0) target = $region13
  $region12: #{maha_classifier_forward.3} parent=0 // pred_region
    _
  $region13: #{maha_classifier_forward.3} parent=0 // pred_fallthru
    _
  %v14 = vld [vmem:[%s2] sm:$0xff]
  %v15 = vld [vmem:[%s0] sm:$0x1]
  %v16 = vlaneseq
  %v17 = vshrl.u32 %v16, 7
  %v18 = vsub.s32 0, %v17
  %v19 = vrot.slane %v15, %v18
  %v20 = vsub.f32 %v19, %v14
  %v21 = vld [vmem:[%s1] sm:$0xff]
  %v22 = vld [vmem:[%s1 + $0x8] sm:$0xff]
  %v23 = vld [vmem:[%s1 + $0x10] sm:$0xff]
  %v24 = vld [vmem:[%s1 + $0x18] sm:$0xff]
  %vm25 = vcmask 261120
  %v27 = vsel %vm25, %v20, 0
  %29 = vmatprep.subr.mxu0 0.0
  %30 = vmatpush1.msra.mxu0 %v21
  %31 = vmatprep.subr.mxu0 0.0
  %32 = vmatpush1.msra.mxu0 %v22
  %33 = vmatprep.subr.mxu0 0.0
  %34 = vmatpush1.msra.mxu0 %v23
  %35 = vmatprep.subr.mxu0 0.0
  %36 = vmatpush1.msra.mxu0 %v24
  %37 = vmatprep.subr.mxu0 0.0
  %38 = vmatpush1.msra.mxu0 0.0
  %39 = vmatprep.subr.mxu0 0.0
  %40 = vmatpush1.msra.mxu0 0.0
  %41 = vmatprep.subr.mxu0 0.0
  %42 = vmatpush1.msra.mxu0 0.0
  %43 = vmatprep.subr.mxu0 0.0
  %44 = vmatpush1.msra.mxu0 0.0
  %45 = vmatprep.subr.mxu0 0.0
  %46 = vmatpush1.msra.mxu0 0.0
  %47 = vmatprep.subr.mxu0 0.0
  %48 = vmatpush1.msra.mxu0 0.0
  %49 = vmatprep.subr.mxu0 0.0
  %50 = vmatpush1.msra.mxu0 0.0
  %51 = vmatprep.subr.mxu0 0.0
  %52 = vmatpush1.msra.mxu0 0.0
  %53 = vmatprep.subr.mxu0 0.0
  %54 = vmatpush1.msra.mxu0 0.0
  %55 = vmatprep.subr.mxu0 0.0
  %56 = vmatpush1.msra.mxu0 0.0
  %57 = vmatprep.subr.mxu0 0.0
  %58 = vmatpush1.msra.mxu0 0.0
  %59 = vmatprep.subr.mxu0 0.0
  %60 = vmatpush1.msra.mxu0 0.0
  %61 = vmatprep.subr.mxu0 0.0
  %62 = vmatpush1.msra.mxu0 0.0
  %63 = vmatprep.subr.mxu0 0.0
  %64 = vmatpush1.msra.mxu0 0.0
  %65 = vmatprep.subr.mxu0 0.0
  %66 = vmatpush1.msra.mxu0 0.0
  %67 = vmatprep.subr.mxu0 0.0
  %68 = vmatpush1.msra.mxu0 0.0
  %69 = vmatprep.subr.mxu0 0.0
  %70 = vmatpush1.msra.mxu0 0.0
  %71 = vmatprep.subr.mxu0 0.0
  %72 = vmatpush1.msra.mxu0 0.0
  %73 = vmatprep.subr.mxu0 0.0
  %74 = vmatpush1.msra.mxu0 0.0
  %75 = vmatprep.subr.mxu0 0.0
  %76 = vmatpush1.msra.mxu0 0.0
  %77 = vmatprep.subr.mxu0 0.0
  %78 = vmatpush1.msra.mxu0 0.0
  %79 = vmatprep.subr.mxu0 0.0
  %80 = vmatpush1.msra.mxu0 0.0
  %81 = vmatprep.subr.mxu0 0.0
  %82 = vmatpush1.msra.mxu0 0.0
  %83 = vmatprep.subr.mxu0 0.0
  %84 = vmatpush1.msra.mxu0 0.0
  %85 = vmatprep.subr.mxu0 0.0
  %86 = vmatpush1.msra.mxu0 0.0
  %87 = vmatprep.subr.mxu0 0.0
  %88 = vmatpush1.msra.mxu0 0.0
  %89 = vmatprep.subr.mxu0 0.0
  %90 = vmatpush1.msra.mxu0 0.0
  %91 = vmatprep.subr.mxu0 0.0
  %92 = vmatpush1.msra.mxu0 0.0
  %93 = vmatprep.mubr.f32.mxu0 0.0
  %94 = vmatmul.mubr.f32.gmra.mrb[0].mxu0 %v27
  %v95 = vpop.f32.mrb[0].mxu0
  %v96 = vadd.f32 0.0, %v95
  %v97 = vpop.f32.mrb[0].mxu0
  %98 = vdwg.mxu0
  %v99 = vmul.f32 %v96, %v20
  %v100 = vsel %vm25, %v99, 0.0
  %101 = vadd.xlane.f32.xlu0 %v100
  %v102 = vpop.xlane.xlu0 %101
  %v103 = vsub.f32 0.0, %v102
  %vm104 = vcmask 7168
  %105 = vst.msk [vmem:[%s3] sm:$0xff] %vm104, %v103
  %v106 = vld [vmem:[%s0 + $0x1] sm:$0x1]
  %v107 = vlaneseq
  %v108 = vshrl.u32 %v107, 7
  %v109 = vsub.s32 0, %v108
  %v110 = vrot.slane %v106, %v109
  %v111 = vsub.f32 %v110, %v14
  %s112 = scalar_lea.vmem %s1, 32
  %v113 = vld [vmem:[%s112] sm:$0xff]
  %v114 = vld [vmem:[%s112 + $0x8] sm:$0xff]
  %v115 = vld [vmem:[%s112 + $0x10] sm:$0xff]
  %v116 = vld [vmem:[%s112 + $0x18] sm:$0xff]
  %v118 = vsel %vm25, %v111, 0
  %120 = vmatprep.subr.mxu0 0.0
  %121 = vmatpush1.msra.mxu0 %v113
  %122 = vmatprep.subr.mxu0 0.0
  %123 = vmatpush1.msra.mxu0 %v114
  %124 = vmatprep.subr.mxu0 0.0
  %125 = vmatpush1.msra.mxu0 %v115
  %126 = vmatprep.subr.mxu0 0.0
  %127 = vmatpush1.msra.mxu0 %v116
  %128 = vmatprep.subr.mxu0 0.0
  %129 = vmatpush1.msra.mxu0 0.0
  %130 = vmatprep.subr.mxu0 0.0
  %131 = vmatpush1.msra.mxu0 0.0
  %132 = vmatprep.subr.mxu0 0.0
  %133 = vmatpush1.msra.mxu0 0.0
  %134 = vmatprep.subr.mxu0 0.0
  %135 = vmatpush1.msra.mxu0 0.0
  %136 = vmatprep.subr.mxu0 0.0
  %137 = vmatpush1.msra.mxu0 0.0
  %138 = vmatprep.subr.mxu0 0.0
  %139 = vmatpush1.msra.mxu0 0.0
  %140 = vmatprep.subr.mxu0 0.0
  %141 = vmatpush1.msra.mxu0 0.0
  %142 = vmatprep.subr.mxu0 0.0
  %143 = vmatpush1.msra.mxu0 0.0
  %144 = vmatprep.subr.mxu0 0.0
  %145 = vmatpush1.msra.mxu0 0.0
  %146 = vmatprep.subr.mxu0 0.0
  %147 = vmatpush1.msra.mxu0 0.0
  %148 = vmatprep.subr.mxu0 0.0
  %149 = vmatpush1.msra.mxu0 0.0
  %150 = vmatprep.subr.mxu0 0.0
  %151 = vmatpush1.msra.mxu0 0.0
  %152 = vmatprep.subr.mxu0 0.0
  %153 = vmatpush1.msra.mxu0 0.0
  %154 = vmatprep.subr.mxu0 0.0
  %155 = vmatpush1.msra.mxu0 0.0
  %156 = vmatprep.subr.mxu0 0.0
  %157 = vmatpush1.msra.mxu0 0.0
  %158 = vmatprep.subr.mxu0 0.0
  %159 = vmatpush1.msra.mxu0 0.0
  %160 = vmatprep.subr.mxu0 0.0
  %161 = vmatpush1.msra.mxu0 0.0
  %162 = vmatprep.subr.mxu0 0.0
  %163 = vmatpush1.msra.mxu0 0.0
  %164 = vmatprep.subr.mxu0 0.0
  %165 = vmatpush1.msra.mxu0 0.0
  %166 = vmatprep.subr.mxu0 0.0
  %167 = vmatpush1.msra.mxu0 0.0
  %168 = vmatprep.subr.mxu0 0.0
  %169 = vmatpush1.msra.mxu0 0.0
  %170 = vmatprep.subr.mxu0 0.0
  %171 = vmatpush1.msra.mxu0 0.0
  %172 = vmatprep.subr.mxu0 0.0
  %173 = vmatpush1.msra.mxu0 0.0
  %174 = vmatprep.subr.mxu0 0.0
  %175 = vmatpush1.msra.mxu0 0.0
  %176 = vmatprep.subr.mxu0 0.0
  %177 = vmatpush1.msra.mxu0 0.0
  %178 = vmatprep.subr.mxu0 0.0
  %179 = vmatpush1.msra.mxu0 0.0
  %180 = vmatprep.subr.mxu0 0.0
  %181 = vmatpush1.msra.mxu0 0.0
  %182 = vmatprep.subr.mxu0 0.0
  %183 = vmatpush1.msra.mxu0 0.0
  %184 = vmatprep.mubr.f32.mxu0 0.0
  %185 = vmatmul.mubr.f32.gmra.mrb[0].mxu0 %v118
  %v186 = vpop.f32.mrb[0].mxu0
  %v187 = vadd.f32 0.0, %v186
  %v188 = vpop.f32.mrb[0].mxu0
  %189 = vdwg.mxu0
  %v190 = vmul.f32 %v187, %v111
  %v191 = vsel %vm25, %v190, 0.0
  %192 = vadd.xlane.f32.xlu0 %v191
  %v193 = vpop.xlane.xlu0 %192
  %v194 = vsub.f32 0.0, %v193
  %vm195 = vcmask 15368
  %196 = vst.msk [vmem:[%s3] sm:$0xff] %vm195, %v194
  %v197 = vld [vmem:[%s0 + $0x2] sm:$0x1]
  %v198 = vlaneseq
  %v199 = vshrl.u32 %v198, 7
  %v200 = vsub.s32 0, %v199
  %v201 = vrot.slane %v197, %v200
  %v202 = vsub.f32 %v201, %v14
  %s203 = scalar_lea.vmem %s1, 64
  %v204 = vld [vmem:[%s203] sm:$0xff]
  %v205 = vld [vmem:[%s203 + $0x8] sm:$0xff]
  %v206 = vld [vmem:[%s203 + $0x10] sm:$0xff]
  %v207 = vld [vmem:[%s203 + $0x18] sm:$0xff]
  %v209 = vsel %vm25, %v202, 0
  %211 = vmatprep.subr.mxu0 0.0
  %212 = vmatpush1.msra.mxu0 %v204
  %213 = vmatprep.subr.mxu0 0.0
  %214 = vmatpush1.msra.mxu0 %v205
  %215 = vmatprep.subr.mxu0 0.0
  %216 = vmatpush1.msra.mxu0 %v206
  %217 = vmatprep.subr.mxu0 0.0
  %218 = vmatpush1.msra.mxu0 %v207
  %219 = vmatprep.subr.mxu0 0.0
  %220 = vmatpush1.msra.mxu0 0.0
  %221 = vmatprep.subr.mxu0 0.0
  %222 = vmatpush1.msra.mxu0 0.0
  %223 = vmatprep.subr.mxu0 0.0
  %224 = vmatpush1.msra.mxu0 0.0
  %225 = vmatprep.subr.mxu0 0.0
  %226 = vmatpush1.msra.mxu0 0.0
  %227 = vmatprep.subr.mxu0 0.0
  %228 = vmatpush1.msra.mxu0 0.0
  %229 = vmatprep.subr.mxu0 0.0
  %230 = vmatpush1.msra.mxu0 0.0
  %231 = vmatprep.subr.mxu0 0.0
  %232 = vmatpush1.msra.mxu0 0.0
  %233 = vmatprep.subr.mxu0 0.0
  %234 = vmatpush1.msra.mxu0 0.0
  %235 = vmatprep.subr.mxu0 0.0
  %236 = vmatpush1.msra.mxu0 0.0
  %237 = vmatprep.subr.mxu0 0.0
  %238 = vmatpush1.msra.mxu0 0.0
  %239 = vmatprep.subr.mxu0 0.0
  %240 = vmatpush1.msra.mxu0 0.0
  %241 = vmatprep.subr.mxu0 0.0
  %242 = vmatpush1.msra.mxu0 0.0
  %243 = vmatprep.subr.mxu0 0.0
  %244 = vmatpush1.msra.mxu0 0.0
  %245 = vmatprep.subr.mxu0 0.0
  %246 = vmatpush1.msra.mxu0 0.0
  %247 = vmatprep.subr.mxu0 0.0
  %248 = vmatpush1.msra.mxu0 0.0
  %249 = vmatprep.subr.mxu0 0.0
  %250 = vmatpush1.msra.mxu0 0.0
  %251 = vmatprep.subr.mxu0 0.0
  %252 = vmatpush1.msra.mxu0 0.0
  %253 = vmatprep.subr.mxu0 0.0
  %254 = vmatpush1.msra.mxu0 0.0
  %255 = vmatprep.subr.mxu0 0.0
  %256 = vmatpush1.msra.mxu0 0.0
  %257 = vmatprep.subr.mxu0 0.0
  %258 = vmatpush1.msra.mxu0 0.0
  %259 = vmatprep.subr.mxu0 0.0
  %260 = vmatpush1.msra.mxu0 0.0
  %261 = vmatprep.subr.mxu0 0.0
  %262 = vmatpush1.msra.mxu0 0.0
  %263 = vmatprep.subr.mxu0 0.0
  %264 = vmatpush1.msra.mxu0 0.0
  %265 = vmatprep.subr.mxu0 0.0
  %266 = vmatpush1.msra.mxu0 0.0
  %267 = vmatprep.subr.mxu0 0.0
  %268 = vmatpush1.msra.mxu0 0.0
  %269 = vmatprep.subr.mxu0 0.0
  %270 = vmatpush1.msra.mxu0 0.0
  %271 = vmatprep.subr.mxu0 0.0
  %272 = vmatpush1.msra.mxu0 0.0
  %273 = vmatprep.subr.mxu0 0.0
  %274 = vmatpush1.msra.mxu0 0.0
  %275 = vmatprep.mubr.f32.mxu0 0.0
  %276 = vmatmul.mubr.f32.gmra.mrb[0].mxu0 %v209
  %v277 = vpop.f32.mrb[0].mxu0
  %v278 = vadd.f32 0.0, %v277
  %v279 = vpop.f32.mrb[0].mxu0
  %280 = vdwg.mxu0
  %v281 = vmul.f32 %v278, %v202
  %v282 = vsel %vm25, %v281, 0.0
  %283 = vadd.xlane.f32.xlu0 %v282
  %v284 = vpop.xlane.xlu0 %283
  %v285 = vsub.f32 0.0, %v284
  %vm286 = vcmask 23568
  %287 = vst.msk [vmem:[%s3] sm:$0xff] %vm286, %v285
  %v288 = vld [vmem:[%s0 + $0x3] sm:$0x1]
  %v289 = vlaneseq
  %v290 = vshrl.u32 %v289, 7
  %v291 = vsub.s32 0, %v290
  %v292 = vrot.slane %v288, %v291
  %v293 = vsub.f32 %v292, %v14
  %s294 = scalar_lea.vmem %s1, 96
  %v295 = vld [vmem:[%s294] sm:$0xff]
  %v296 = vld [vmem:[%s294 + $0x8] sm:$0xff]
  %v297 = vld [vmem:[%s294 + $0x10] sm:$0xff]
  %v298 = vld [vmem:[%s294 + $0x18] sm:$0xff]
  %v300 = vsel %vm25, %v293, 0
  %302 = vmatprep.subr.mxu0 0.0
  %303 = vmatpush1.msra.mxu0 %v295
  %304 = vmatprep.subr.mxu0 0.0
  %305 = vmatpush1.msra.mxu0 %v296
  %306 = vmatprep.subr.mxu0 0.0
  %307 = vmatpush1.msra.mxu0 %v297
  %308 = vmatprep.subr.mxu0 0.0
  %309 = vmatpush1.msra.mxu0 %v298
  %310 = vmatprep.subr.mxu0 0.0
  %311 = vmatpush1.msra.mxu0 0.0
  %312 = vmatprep.subr.mxu0 0.0
  %313 = vmatpush1.msra.mxu0 0.0
  %314 = vmatprep.subr.mxu0 0.0
  %315 = vmatpush1.msra.mxu0 0.0
  %316 = vmatprep.subr.mxu0 0.0
  %317 = vmatpush1.msra.mxu0 0.0
  %318 = vmatprep.subr.mxu0 0.0
  %319 = vmatpush1.msra.mxu0 0.0
  %320 = vmatprep.subr.mxu0 0.0
  %321 = vmatpush1.msra.mxu0 0.0
  %322 = vmatprep.subr.mxu0 0.0
  %323 = vmatpush1.msra.mxu0 0.0
  %324 = vmatprep.subr.mxu0 0.0
  %325 = vmatpush1.msra.mxu0 0.0
  %326 = vmatprep.subr.mxu0 0.0
  %327 = vmatpush1.msra.mxu0 0.0
  %328 = vmatprep.subr.mxu0 0.0
  %329 = vmatpush1.msra.mxu0 0.0
  %330 = vmatprep.subr.mxu0 0.0
  %331 = vmatpush1.msra.mxu0 0.0
  %332 = vmatprep.subr.mxu0 0.0
  %333 = vmatpush1.msra.mxu0 0.0
  %334 = vmatprep.subr.mxu0 0.0
  %335 = vmatpush1.msra.mxu0 0.0
  %336 = vmatprep.subr.mxu0 0.0
  %337 = vmatpush1.msra.mxu0 0.0
  %338 = vmatprep.subr.mxu0 0.0
  %339 = vmatpush1.msra.mxu0 0.0
  %340 = vmatprep.subr.mxu0 0.0
  %341 = vmatpush1.msra.mxu0 0.0
  %342 = vmatprep.subr.mxu0 0.0
  %343 = vmatpush1.msra.mxu0 0.0
  %344 = vmatprep.subr.mxu0 0.0
  %345 = vmatpush1.msra.mxu0 0.0
  %346 = vmatprep.subr.mxu0 0.0
  %347 = vmatpush1.msra.mxu0 0.0
  %348 = vmatprep.subr.mxu0 0.0
  %349 = vmatpush1.msra.mxu0 0.0
  %350 = vmatprep.subr.mxu0 0.0
  %351 = vmatpush1.msra.mxu0 0.0
  %352 = vmatprep.subr.mxu0 0.0
  %353 = vmatpush1.msra.mxu0 0.0
  %354 = vmatprep.subr.mxu0 0.0
  %355 = vmatpush1.msra.mxu0 0.0
  %356 = vmatprep.subr.mxu0 0.0
  %357 = vmatpush1.msra.mxu0 0.0
  %358 = vmatprep.subr.mxu0 0.0
  %359 = vmatpush1.msra.mxu0 0.0
  %360 = vmatprep.subr.mxu0 0.0
  %361 = vmatpush1.msra.mxu0 0.0
  %362 = vmatprep.subr.mxu0 0.0
  %363 = vmatpush1.msra.mxu0 0.0
  %364 = vmatprep.subr.mxu0 0.0
  %365 = vmatpush1.msra.mxu0 0.0
  %366 = vmatprep.mubr.f32.mxu0 0.0
  %367 = vmatmul.mubr.f32.gmra.mrb[0].mxu0 %v300
  %v368 = vpop.f32.mrb[0].mxu0
  %v369 = vadd.f32 0.0, %v368
  %v370 = vpop.f32.mrb[0].mxu0
  %371 = vdwg.mxu0
  %v372 = vmul.f32 %v369, %v293
  %v373 = vsel %vm25, %v372, 0.0
  %374 = vadd.xlane.f32.xlu0 %v373
  %v375 = vpop.xlane.xlu0 %374
  %v376 = vsub.f32 0.0, %v375
  %vm377 = vcmask 31768
  %378 = vst.msk [vmem:[%s3] sm:$0xff] %vm377, %v376
  // Predicated region
  $region14: #{maha_classifier_forward.3} parent=0 // pred_check
    _
  $region15: #{maha_classifier_forward.3} parent=0 // pred_check_branch
    %380 = sbr.rel (0) target = $region17
  $region16: #{maha_classifier_forward.3} parent=0 // pred_region
    _
  $region17: #{maha_classifier_forward.3} parent=0 // pred_fallthru
    _
  // Predicated region
  $region18: #{maha_classifier_forward.3} parent=0 // pred_check
    _
  $region19: #{maha_classifier_forward.3} parent=0 // pred_check_branch
    %382 = sbr.rel (0) target = $region21
  $region20: #{maha_classifier_forward.3} parent=0 // pred_region
    _
  $region21: #{maha_classifier_forward.3} parent=0 // pred_fallthru
    _

</llo_original>
